<compile_context>
chip_gen: v7x
topology: tpu7x:2x2x1
jax: 0.10.0
libtpu: 0.0.40
codegen_flags: <defaults>
</compile_context>

<pallas_src>
import numpy as np

import jax
import jax.numpy as jnp
from jax.experimental import pallas as pl
from jax.experimental.pallas import tpu as pltpu


# -----------------------------------------------------------------------------
# Fused per-layer kernel: deconv GEMM + concat + conv3x3+ReLU + conv3x3+ReLU,
# all in sub-pixel phase layout (4 phase planes over the low-res (H, W) grid).
# -----------------------------------------------------------------------------
def _build_layer_kernel(*, Ch, Cu, Cout, W, NL):
    # 16 tap slots: (input row-phase, input col-phase, row-shift, col-shift)
    slots = [(a, b, di, dj)
             for a in (0, 1) for b in (0, 1) for di in (0, 1) for dj in (0, 1)]

    def kernel(x_ref, hid_ref, wup_ref, w1h_ref, w1u_ref, b1_ref, w2_ref, b2_ref,
               o_ref, hid_buf, up_buf, z1_buf):
        bf16 = jnp.bfloat16

        def shifted(v, di, dj):
            # shifted[:, p] = v[:, p + di*W + dj]  (wrap only pollutes cropped outputs)
            s = di * W + dj
            if s == 0:
                return v
            return pltpu.roll(v, shift=NL - s, axis=1)

        # --- ConvTranspose2d(k=2, s=2): one GEMM -> 4 phase planes (bias folded into b1)
        up = jnp.dot(wup_ref[...], x_ref[...],
                     preferred_element_type=jnp.float32)            # (4*Cu, NL) f32

        # --- stacked-tap operands for conv1 (16 slots along the contraction axis)
        for u, (a_in, b_in, di, dj) in enumerate(slots):
            p = a_in * 2 + b_in
            hid_buf[u * Ch:(u + 1) * Ch, :] = shifted(
                hid_ref[p].astype(jnp.float32), di, dj)
            up_buf[u * Cu:(u + 1) * Cu, :] = shifted(
                up[p * Cu:(p + 1) * Cu], di, dj)

        # --- conv1 (3x3 valid, concat folded in) + ReLU: two stacked-K MXU matmuls
        z1 = jnp.dot(w1h_ref[...], hid_buf[...].astype(bf16),
                     preferred_element_type=jnp.float32)
        z1 = z1 + jnp.dot(w1u_ref[...], up_buf[...].astype(bf16),
                          preferred_element_type=jnp.float32)
        z1 = jnp.maximum(z1 + b1_ref[...], 0.0)                     # (4*Cout, NL) f32

        # --- stacked-tap operand for conv2
        for u, (a_in, b_in, di, dj) in enumerate(slots):
            p = a_in * 2 + b_in
            z1_buf[u * Cout:(u + 1) * Cout, :] = shifted(
                z1[p * Cout:(p + 1) * Cout], di, dj)

        # --- conv2 (3x3 valid) + ReLU: one stacked-K matmul
        z2 = jnp.dot(w2_ref[...], z1_buf[...].astype(bf16),
                     preferred_element_type=jnp.float32)
        o_ref[...] = jnp.maximum(z2 + b2_ref[...], 0.0)

    return kernel


def _fused_layer(x_flat, hid_phase, lp, *, W, NL):
    Cin = x_flat.shape[0]
    Ch = hid_phase.shape[1]
    Cu = lp["wup_s"].shape[0] // 4
    Cout = lp["w2_s"].shape[0] // 4
    kernel = _build_layer_kernel(Ch=Ch, Cu=Cu, Cout=Cout, W=W, NL=NL)
    return pl.pallas_call(
        kernel,
        out_shape=jax.ShapeDtypeStruct((4 * Cout, NL), jnp.float32),
        grid_spec=pltpu.PrefetchScalarGridSpec(
            num_scalar_prefetch=0,
            grid=(1,),
            in_specs=[
                pl.BlockSpec((Cin, NL), lambda i: (0, 0)),
                pl.BlockSpec((4, Ch, NL), lambda i: (0, 0, 0)),
                pl.BlockSpec((4 * Cu, Cin), lambda i: (0, 0)),
                pl.BlockSpec((4 * Cout, 16 * Ch), lambda i: (0, 0)),
                pl.BlockSpec((4 * Cout, 16 * Cu), lambda i: (0, 0)),
                pl.BlockSpec((4 * Cout, 1), lambda i: (0, 0)),
                pl.BlockSpec((4 * Cout, 16 * Cout), lambda i: (0, 0)),
                pl.BlockSpec((4 * Cout, 1), lambda i: (0, 0)),
            ],
            out_specs=pl.BlockSpec((4 * Cout, NL), lambda i: (0, 0)),
            scratch_shapes=[
                pltpu.VMEM((16 * Ch, NL), jnp.float32),
                pltpu.VMEM((16 * Cu, NL), jnp.float32),
                pltpu.VMEM((16 * Cout, NL), jnp.float32),
            ],
        ),
        compiler_params=pltpu.CompilerParams(dimension_semantics=("arbitrary",)),
    )(x_flat, hid_phase, lp["wup_s"], lp["w1h_s"], lp["w1u_s"], lp["b1"],
      lp["w2_s"], lp["b2"])


# -----------------------------------------------------------------------------
# One-time parameter preprocessing (outside jit): pack phase/tap-stacked weights.
# -----------------------------------------------------------------------------
def preprocess_params(params):
    def slot(a_in, b_in, di, dj):
        return ((a_in * 2 + b_in) * 2 + di) * 2 + dj

    pp = []
    for p in params:
        up_w = np.asarray(p["up_w"], np.float32)   # (Cin, Cu, 2, 2)
        up_b = np.asarray(p["up_b"], np.float32)   # (Cu,)
        c1_w = np.asarray(p["c1_w"], np.float32)   # (Cout, Ch+Cu, 3, 3)
        c1_b = np.asarray(p["c1_b"], np.float32)
        c2_w = np.asarray(p["c2_w"], np.float32)   # (Cout, Cout, 3, 3)
        c2_b = np.asarray(p["c2_b"], np.float32)
        Cin, Cu = up_w.shape[0], up_w.shape[1]
        Cout = c1_w.shape[0]
        Ch = c1_w.shape[1] - Cu                    # skip-connection channels

        # deconv as one stacked-phase GEMM: rows (a*2+b)*Cu + co
        wup_s = np.zeros((4 * Cu, Cin), np.float32)
        for a in range(2):
            for b in range(2):
                wup_s[(a * 2 + b) * Cu:(a * 2 + b + 1) * Cu] = up_w[:, :, a, b].T

        # 3x3 convs as one stacked-K matmul per conv over 16 (phase, shift) slots
        w1h_s = np.zeros((4 * Cout, 16 * Ch), np.float32)
        w1u_s = np.zeros((4 * Cout, 16 * Cu), np.float32)
        w2_s = np.zeros((4 * Cout, 16 * Cout), np.float32)
        for a in range(2):
            for b in range(2):
                ro = (a * 2 + b) * Cout
                for dy in range(3):
                    for dx in range(3):
                        a_s, b_s = a + dy, b + dx
                        u = slot(a_s % 2, b_s % 2, a_s // 2, b_s // 2)
                        w1h_s[ro:ro + Cout, u * Ch:(u + 1) * Ch] += c1_w[:, :Ch, dy, dx]
                        w1u_s[ro:ro + Cout, u * Cu:(u + 1) * Cu] += c1_w[:, Ch:, dy, dx]
                        w2_s[ro:ro + Cout, u * Cout:(u + 1) * Cout] += c2_w[:, :, dy, dx]

        # fold the ConvTranspose2d bias into conv1's bias (deconv becomes a pure GEMM)
        b1_eff = c1_b + c1_w[:, Ch:].sum(axis=(2, 3)) @ up_b
        b1 = np.tile(b1_eff, 4).reshape(4 * Cout, 1)
        b2 = np.tile(c2_b, 4).reshape(4 * Cout, 1)

        pp.append(dict(
            wup_s=jnp.asarray(wup_s, jnp.bfloat16),
            w1h_s=jnp.asarray(w1h_s, jnp.bfloat16),
            w1u_s=jnp.asarray(w1u_s, jnp.bfloat16),
            w2_s=jnp.asarray(w2_s, jnp.bfloat16),
            b1=jnp.asarray(b1, jnp.float32),
            b2=jnp.asarray(b2, jnp.float32),
        ))
    return pp


# -----------------------------------------------------------------------------
# UNetDecoder forward (use_bilinear_upsampling=False path)
# -----------------------------------------------------------------------------
def init_params(key, middle_channel, channel_in_between):
    cib = [middle_channel] + list(channel_in_between)
    params = []
    for idx in range(len(cib) - 1):
        in_c, out_c = cib[idx], cib[idx + 1]
        key, k0, k1, k2, k3, k4, k5 = jax.random.split(key, 7)
        params.append(dict(
            up_w=0.1 * jax.random.normal(k0, (in_c, out_c, 2, 2), jnp.float32),
            up_b=0.1 * jax.random.normal(k1, (out_c,), jnp.float32),
            c1_w=0.1 * jax.random.normal(k2, (out_c, in_c, 3, 3), jnp.float32),
            c1_b=0.1 * jax.random.normal(k3, (out_c,), jnp.float32),
            c2_w=0.1 * jax.random.normal(k4, (out_c, out_c, 3, 3), jnp.float32),
            c2_b=0.1 * jax.random.normal(k5, (out_c,), jnp.float32),
        ))
    return params


def unet_decoder_forward(x, hidden_xs, pparams):
    """x: NCHW f32; hidden_xs: list of NCHW f32; pparams: preprocess_params output."""
    N, C, H, W = x.shape
    x_flat = x.transpose(1, 0, 2, 3).reshape(C, N * H * W).astype(jnp.bfloat16)
    out = None
    n_layers = len(pparams)
    for li, (lp, hidden) in enumerate(zip(pparams, hidden_xs)):
        Cu = lp["wup_s"].shape[0] // 4
        Cout = lp["w2_s"].shape[0] // 4
        Ch = lp["w1h_s"].shape[1] // 16
        H2, W2 = 2 * H, 2 * W
        NL = N * H * W

        # center-crop the skip connection (torchvision center_crop) and split it into
        # its 4 sub-pixel phase planes -> (4, Ch, N*H*W), lanes = (n, i, j)
        Hh, Wh = hidden.shape[2], hidden.shape[3]
        top = int(round((Hh - H2) / 2.0))
        left = int(round((Wh - W2) / 2.0))
        hc = hidden[:, :, top:top + H2, left:left + W2]
        hid_phase = (hc.reshape(N, Ch, H, 2, W, 2)
                       .transpose(3, 5, 1, 0, 2, 4)
                       .reshape(4, Ch, NL)
                       .astype(jnp.bfloat16))

        # one fused Pallas call: deconv + concat + conv3x3+ReLU + conv3x3+ReLU
        z2 = _fused_layer(x_flat, hid_phase, lp, W=W, NL=NL)       # (4*Cout, NL) f32

        # phase layout -> standard layout, dropping the 3x3-valid-conv border
        zp = z2.reshape(2, 2, Cout, N, H, W)[:, :, :, :, :H - 2, :W - 2]
        Hn, Wn = H2 - 4, W2 - 4
        if li + 1 < n_layers:
            x_flat = (zp.transpose(2, 3, 4, 0, 5, 1)
                        .reshape(Cout, N * Hn * Wn).astype(jnp.bfloat16))
        else:
            out = zp.transpose(3, 2, 4, 0, 5, 1).reshape(N, Cout, Hn, Wn)
        H, W = Hn, Wn
    return out


# -----------------------------------------------------------------------------
# Pure-JAX NCHW reference (numerical sanity check)
# -----------------------------------------------------------------------------
_HI = jax.lax.Precision.HIGHEST


def _ref_conv_transpose(x, w, b):
    N, Cin, H, W = x.shape
    Cout = w.shape[1]
    parts = jnp.einsum("nchw,cdab->ndhawb", x, w, precision=_HI)
    return parts.reshape(N, Cout, 2 * H, 2 * W) + b.reshape(1, Cout, 1, 1)


def _ref_conv3x3_relu(x, w, b):
    N, Cin, H, W = x.shape
    Cout = w.shape[0]
    Ho, Wo = H - 2, W - 2
    acc = jnp.zeros((N, Cout, Ho, Wo), jnp.float32)
    for dy in range(3):
        for dx in range(3):
            acc = acc + jnp.einsum("nchw,dc->ndhw",
                                   x[:, :, dy:dy + Ho, dx:dx + Wo],
                                   w[:, :, dy, dx], precision=_HI)
    return jnp.maximum(acc + b.reshape(1, Cout, 1, 1), 0.0)


def ref_forward(x, hidden_xs, params):
    for p, hidden in zip(params, hidden_xs):
        x = _ref_conv_transpose(x, p["up_w"], p["up_b"])
        h, w = x.shape[2], x.shape[3]
        H, W = hidden.shape[2], hidden.shape[3]
        top = int(round((H - h) / 2.0))
        left = int(round((W - w) / 2.0))
        hc = hidden[:, :, top:top + h, left:left + w]
        x = jnp.concatenate([hc, x], axis=1)
        x = _ref_conv3x3_relu(x, p["c1_w"], p["c1_b"])
        x = _ref_conv3x3_relu(x, p["c2_w"], p["c2_b"])
    return x


if __name__ == "__main__":
    key = jax.random.PRNGKey(0)
    k_x, k_h0, k_h1, k_p = jax.random.split(key, 4)

    middle_channel = 16
    channel_in_between = [8, 4]
    B = 2

    # x starts at 8x8; hidden feature maps are larger (UNet skip connections) and
    # get center-cropped to the upsampled spatial size.
    x = jax.random.normal(k_x, (B, middle_channel, 8, 8), jnp.float32)
    hidden_xs = [
        jax.random.normal(k_h0, (B, 8, 20, 20), jnp.float32),
        jax.random.normal(k_h1, (B, 4, 28, 28), jnp.float32),
    ]
    params = init_params(k_p, middle_channel, channel_in_between)
    pparams = preprocess_params(params)          # one-time weight packing (outside jit)

    fwd = jax.jit(unet_decoder_forward)
    out = jax.block_until_ready(fwd(x, hidden_xs, pparams))
    assert out.shape == (B, 4, 20, 20), out.shape

    ref = ref_forward(x, hidden_xs, params)
    err = float(jnp.max(jnp.abs(out - ref)))
    assert jnp.allclose(out, ref, atol=5e-2, rtol=5e-2), f"max abs err {err}"

    print("KERNEL_OK")
</pallas_src>

<mosaic_0001>
module attributes {stable_mosaic.version = 11 : i64} {
  func.func @kernel(%arg0: i32, %arg1: memref<16x128xbf16, #tpu.memory_space<vmem>>, %arg2: memref<4x8x128xbf16, #tpu.memory_space<vmem>>, %arg3: memref<32x16xbf16, #tpu.memory_space<vmem>>, %arg4: memref<32x128xbf16, #tpu.memory_space<vmem>>, %arg5: memref<32x128xbf16, #tpu.memory_space<vmem>>, %arg6: memref<32x1xf32, #tpu.memory_space<vmem>>, %arg7: memref<32x128xbf16, #tpu.memory_space<vmem>>, %arg8: memref<32x1xf32, #tpu.memory_space<vmem>>, %arg9: memref<32x128xf32, #tpu.memory_space<vmem>>, %arg10: memref<128x128xf32, #tpu.memory_space<vmem>>, %arg11: memref<128x128xf32, #tpu.memory_space<vmem>>, %arg12: memref<128x128xf32, #tpu.memory_space<vmem>>) attributes {dimension_semantics = [#tpu.dimension_semantics<arbitrary>], iteration_bounds = array<i64: 1>, scalar_prefetch = 0 : i64, scratch_operands = 3 : i64, tpu.core_type = #tpu.core_type<tc>, window_params = [{pipeline_mode = #tpu.pipeline_mode<synchronous>, transform_indices = @transform_0, window_bounds = array<i64: 16, 128>}, {pipeline_mode = #tpu.pipeline_mode<synchronous>, transform_indices = @transform_1, window_bounds = array<i64: 4, 8, 128>}, {pipeline_mode = #tpu.pipeline_mode<synchronous>, transform_indices = @transform_2, window_bounds = array<i64: 32, 16>}, {pipeline_mode = #tpu.pipeline_mode<synchronous>, transform_indices = @transform_3, window_bounds = array<i64: 32, 128>}, {pipeline_mode = #tpu.pipeline_mode<synchronous>, transform_indices = @transform_4, window_bounds = array<i64: 32, 128>}, {pipeline_mode = #tpu.pipeline_mode<synchronous>, transform_indices = @transform_5, window_bounds = array<i64: 32, 1>}, {pipeline_mode = #tpu.pipeline_mode<synchronous>, transform_indices = @transform_6, window_bounds = array<i64: 32, 128>}, {pipeline_mode = #tpu.pipeline_mode<synchronous>, transform_indices = @transform_7, window_bounds = array<i64: 32, 1>}, {pipeline_mode = #tpu.pipeline_mode<synchronous>, transform_indices = @transform_8, window_bounds = array<i64: 32, 128>}]} {
    %c0 = arith.constant 0 : index
    %c0_0 = arith.constant 0 : index
    %0 = vector.load %arg3[%c0, %c0_0] : memref<32x16xbf16, #tpu.memory_space<vmem>>, vector<32x16xbf16>
    %c0_1 = arith.constant 0 : index
    %c0_2 = arith.constant 0 : index
    %1 = vector.load %arg1[%c0_1, %c0_2] : memref<16x128xbf16, #tpu.memory_space<vmem>>, vector<16x128xbf16>
    %cst = arith.constant dense<0.000000e+00> : vector<32x128xf32>
    %2 = tpu.matmul %0, %1, %cst {dimension_numbers = #tpu.dot_dimension_numbers<[1], [0], [0], [1], [0, 0, 1, 1], [], []>} : vector<32x16xbf16>, vector<16x128xbf16>, vector<32x128xf32> -> vector<32x128xf32>
    %c0_3 = arith.constant 0 : index
    %c0_4 = arith.constant 0 : index
    %c0_5 = arith.constant 0 : index
    %3 = vector.load %arg2[%c0_3, %c0_4, %c0_5] : memref<4x8x128xbf16, #tpu.memory_space<vmem>>, vector<1x8x128xbf16>
    %4 = vector.shape_cast %3 : vector<1x8x128xbf16> to vector<8x128xbf16>
    %5 = arith.extf %4 : vector<8x128xbf16> to vector<8x128xf32>
    %c0_6 = arith.constant 0 : index
    %c0_7 = arith.constant 0 : index
    %6 = vector.load %arg10[%c0_6, %c0_7] : memref<128x128xf32, #tpu.memory_space<vmem>>, vector<8x128xf32>
    tpu.vector_store %arg10[%c0_6, %c0_7], %5 {strides = array<i32>} : memref<128x128xf32, #tpu.memory_space<vmem>>, vector<8x128xf32>,
    %7 = vector.extract_strided_slice %2 {offsets = [0, 0], sizes = [8, 128], strides = [1, 1]} : vector<32x128xf32> to vector<8x128xf32>
    %c0_8 = arith.constant 0 : index
    %c0_9 = arith.constant 0 : index
    %8 = vector.load %arg11[%c0_8, %c0_9] : memref<128x128xf32, #tpu.memory_space<vmem>>, vector<8x128xf32>
    tpu.vector_store %arg11[%c0_8, %c0_9], %7 {strides = array<i32>} : memref<128x128xf32, #tpu.memory_space<vmem>>, vector<8x128xf32>,
    %c0_10 = arith.constant 0 : index
    %c0_11 = arith.constant 0 : index
    %c0_12 = arith.constant 0 : index
    %9 = vector.load %arg2[%c0_10, %c0_11, %c0_12] : memref<4x8x128xbf16, #tpu.memory_space<vmem>>, vector<1x8x128xbf16>
    %10 = vector.shape_cast %9 : vector<1x8x128xbf16> to vector<8x128xbf16>
    %11 = arith.extf %10 : vector<8x128xbf16> to vector<8x128xf32>
    %c127_i32 = arith.constant 127 : i32
    %12 = tpu.dynamic_rotate %11 by %c127_i32 dim 1 : vector<8x128xf32>, i32 -> vector<8x128xf32>
    %c8 = arith.constant 8 : index
    %c0_13 = arith.constant 0 : index
    %13 = vector.load %arg10[%c8, %c0_13] : memref<128x128xf32, #tpu.memory_space<vmem>>, vector<8x128xf32>
    tpu.vector_store %arg10[%c8, %c0_13], %12 {strides = array<i32>} : memref<128x128xf32, #tpu.memory_space<vmem>>, vector<8x128xf32>,
    %14 = vector.extract_strided_slice %2 {offsets = [0, 0], sizes = [8, 128], strides = [1, 1]} : vector<32x128xf32> to vector<8x128xf32>
    %c127_i32_14 = arith.constant 127 : i32
    %15 = tpu.dynamic_rotate %14 by %c127_i32_14 dim 1 : vector<8x128xf32>, i32 -> vector<8x128xf32>
    %c8_15 = arith.constant 8 : index
    %c0_16 = arith.constant 0 : index
    %16 = vector.load %arg11[%c8_15, %c0_16] : memref<128x128xf32, #tpu.memory_space<vmem>>, vector<8x128xf32>
    tpu.vector_store %arg11[%c8_15, %c0_16], %15 {strides = array<i32>} : memref<128x128xf32, #tpu.memory_space<vmem>>, vector<8x128xf32>,
    %c0_17 = arith.constant 0 : index
    %c0_18 = arith.constant 0 : index
    %c0_19 = arith.constant 0 : index
    %17 = vector.load %arg2[%c0_17, %c0_18, %c0_19] : memref<4x8x128xbf16, #tpu.memory_space<vmem>>, vector<1x8x128xbf16>
    %18 = vector.shape_cast %17 : vector<1x8x128xbf16> to vector<8x128xbf16>
    %19 = arith.extf %18 : vector<8x128xbf16> to vector<8x128xf32>
    %c120_i32 = arith.constant 120 : i32
    %20 = tpu.dynamic_rotate %19 by %c120_i32 dim 1 : vector<8x128xf32>, i32 -> vector<8x128xf32>
    %c16 = arith.constant 16 : index
    %c0_20 = arith.constant 0 : index
    %21 = vector.load %arg10[%c16, %c0_20] : memref<128x128xf32, #tpu.memory_space<vmem>>, vector<8x128xf32>
    tpu.vector_store %arg10[%c16, %c0_20], %20 {strides = array<i32>} : memref<128x128xf32, #tpu.memory_space<vmem>>, vector<8x128xf32>,
    %22 = vector.extract_strided_slice %2 {offsets = [0, 0], sizes = [8, 128], strides = [1, 1]} : vector<32x128xf32> to vector<8x128xf32>
    %c120_i32_21 = arith.constant 120 : i32
    %23 = tpu.dynamic_rotate %22 by %c120_i32_21 dim 1 : vector<8x128xf32>, i32 -> vector<8x128xf32>
    %c16_22 = arith.constant 16 : index
    %c0_23 = arith.constant 0 : index
    %24 = vector.load %arg11[%c16_22, %c0_23] : memref<128x128xf32, #tpu.memory_space<vmem>>, vector<8x128xf32>
    tpu.vector_store %arg11[%c16_22, %c0_23], %23 {strides = array<i32>} : memref<128x128xf32, #tpu.memory_space<vmem>>, vector<8x128xf32>,
    %c0_24 = arith.constant 0 : index
    %c0_25 = arith.constant 0 : index
    %c0_26 = arith.constant 0 : index
    %25 = vector.load %arg2[%c0_24, %c0_25, %c0_26] : memref<4x8x128xbf16, #tpu.memory_space<vmem>>, vector<1x8x128xbf16>
    %26 = vector.shape_cast %25 : vector<1x8x128xbf16> to vector<8x128xbf16>
    %27 = arith.extf %26 : vector<8x128xbf16> to vector<8x128xf32>
    %c119_i32 = arith.constant 119 : i32
    %28 = tpu.dynamic_rotate %27 by %c119_i32 dim 1 : vector<8x128xf32>, i32 -> vector<8x128xf32>
    %c24 = arith.constant 24 : index
    %c0_27 = arith.constant 0 : index
    %29 = vector.load %arg10[%c24, %c0_27] : memref<128x128xf32, #tpu.memory_space<vmem>>, vector<8x128xf32>
    tpu.vector_store %arg10[%c24, %c0_27], %28 {strides = array<i32>} : memref<128x128xf32, #tpu.memory_space<vmem>>, vector<8x128xf32>,
    %30 = vector.extract_strided_slice %2 {offsets = [0, 0], sizes = [8, 128], strides = [1, 1]} : vector<32x128xf32> to vector<8x128xf32>
    %c119_i32_28 = arith.constant 119 : i32
    %31 = tpu.dynamic_rotate %30 by %c119_i32_28 dim 1 : vector<8x128xf32>, i32 -> vector<8x128xf32>
    %c24_29 = arith.constant 24 : index
    %c0_30 = arith.constant 0 : index
    %32 = vector.load %arg11[%c24_29, %c0_30] : memref<128x128xf32, #tpu.memory_space<vmem>>, vector<8x128xf32>
    tpu.vector_store %arg11[%c24_29, %c0_30], %31 {strides = array<i32>} : memref<128x128xf32, #tpu.memory_space<vmem>>, vector<8x128xf32>,
    %c1 = arith.constant 1 : index
    %c0_31 = arith.constant 0 : index
    %c0_32 = arith.constant 0 : index
    %33 = vector.load %arg2[%c1, %c0_31, %c0_32] : memref<4x8x128xbf16, #tpu.memory_space<vmem>>, vector<1x8x128xbf16>
    %34 = vector.shape_cast %33 : vector<1x8x128xbf16> to vector<8x128xbf16>
    %35 = arith.extf %34 : vector<8x128xbf16> to vector<8x128xf32>
    %c32 = arith.constant 32 : index
    %c0_33 = arith.constant 0 : index
    %36 = vector.load %arg10[%c32, %c0_33] : memref<128x128xf32, #tpu.memory_space<vmem>>, vector<8x128xf32>
    tpu.vector_store %arg10[%c32, %c0_33], %35 {strides = array<i32>} : memref<128x128xf32, #tpu.memory_space<vmem>>, vector<8x128xf32>,
    %37 = vector.extract_strided_slice %2 {offsets = [8, 0], sizes = [8, 128], strides = [1, 1]} : vector<32x128xf32> to vector<8x128xf32>
    %c32_34 = arith.constant 32 : index
    %c0_35 = arith.constant 0 : index
    %38 = vector.load %arg11[%c32_34, %c0_35] : memref<128x128xf32, #tpu.memory_space<vmem>>, vector<8x128xf32>
    tpu.vector_store %arg11[%c32_34, %c0_35], %37 {strides = array<i32>} : memref<128x128xf32, #tpu.memory_space<vmem>>, vector<8x128xf32>,
    %c1_36 = arith.constant 1 : index
    %c0_37 = arith.constant 0 : index
    %c0_38 = arith.constant 0 : index
    %39 = vector.load %arg2[%c1_36, %c0_37, %c0_38] : memref<4x8x128xbf16, #tpu.memory_space<vmem>>, vector<1x8x128xbf16>
    %40 = vector.shape_cast %39 : vector<1x8x128xbf16> to vector<8x128xbf16>
    %41 = arith.extf %40 : vector<8x128xbf16> to vector<8x128xf32>
    %c127_i32_39 = arith.constant 127 : i32
    %42 = tpu.dynamic_rotate %41 by %c127_i32_39 dim 1 : vector<8x128xf32>, i32 -> vector<8x128xf32>
    %c40 = arith.constant 40 : index
    %c0_40 = arith.constant 0 : index
    %43 = vector.load %arg10[%c40, %c0_40] : memref<128x128xf32, #tpu.memory_space<vmem>>, vector<8x128xf32>
    tpu.vector_store %arg10[%c40, %c0_40], %42 {strides = array<i32>} : memref<128x128xf32, #tpu.memory_space<vmem>>, vector<8x128xf32>,
    %44 = vector.extract_strided_slice %2 {offsets = [8, 0], sizes = [8, 128], strides = [1, 1]} : vector<32x128xf32> to vector<8x128xf32>
    %c127_i32_41 = arith.constant 127 : i32
    %45 = tpu.dynamic_rotate %44 by %c127_i32_41 dim 1 : vector<8x128xf32>, i32 -> vector<8x128xf32>
    %c40_42 = arith.constant 40 : index
    %c0_43 = arith.constant 0 : index
    %46 = vector.load %arg11[%c40_42, %c0_43] : memref<128x128xf32, #tpu.memory_space<vmem>>, vector<8x128xf32>
    tpu.vector_store %arg11[%c40_42, %c0_43], %45 {strides = array<i32>} : memref<128x128xf32, #tpu.memory_space<vmem>>, vector<8x128xf32>,
    %c1_44 = arith.constant 1 : index
    %c0_45 = arith.constant 0 : index
    %c0_46 = arith.constant 0 : index
    %47 = vector.load %arg2[%c1_44, %c0_45, %c0_46] : memref<4x8x128xbf16, #tpu.memory_space<vmem>>, vector<1x8x128xbf16>
    %48 = vector.shape_cast %47 : vector<1x8x128xbf16> to vector<8x128xbf16>
    %49 = arith.extf %48 : vector<8x128xbf16> to vector<8x128xf32>
    %c120_i32_47 = arith.constant 120 : i32
    %50 = tpu.dynamic_rotate %49 by %c120_i32_47 dim 1 : vector<8x128xf32>, i32 -> vector<8x128xf32>
    %c48 = arith.constant 48 : index
    %c0_48 = arith.constant 0 : index
    %51 = vector.load %arg10[%c48, %c0_48] : memref<128x128xf32, #tpu.memory_space<vmem>>, vector<8x128xf32>
    tpu.vector_store %arg10[%c48, %c0_48], %50 {strides = array<i32>} : memref<128x128xf32, #tpu.memory_space<vmem>>, vector<8x128xf32>,
    %52 = vector.extract_strided_slice %2 {offsets = [8, 0], sizes = [8, 128], strides = [1, 1]} : vector<32x128xf32> to vector<8x128xf32>
    %c120_i32_49 = arith.constant 120 : i32
    %53 = tpu.dynamic_rotate %52 by %c120_i32_49 dim 1 : vector<8x128xf32>, i32 -> vector<8x128xf32>
    %c48_50 = arith.constant 48 : index
    %c0_51 = arith.constant 0 : index
    %54 = vector.load %arg11[%c48_50, %c0_51] : memref<128x128xf32, #tpu.memory_space<vmem>>, vector<8x128xf32>
    tpu.vector_store %arg11[%c48_50, %c0_51], %53 {strides = array<i32>} : memref<128x128xf32, #tpu.memory_space<vmem>>, vector<8x128xf32>,
    %c1_52 = arith.constant 1 : index
    %c0_53 = arith.constant 0 : index
    %c0_54 = arith.constant 0 : index
    %55 = vector.load %arg2[%c1_52, %c0_53, %c0_54] : memref<4x8x128xbf16, #tpu.memory_space<vmem>>, vector<1x8x128xbf16>
    %56 = vector.shape_cast %55 : vector<1x8x128xbf16> to vector<8x128xbf16>
    %57 = arith.extf %56 : vector<8x128xbf16> to vector<8x128xf32>
    %c119_i32_55 = arith.constant 119 : i32
    %58 = tpu.dynamic_rotate %57 by %c119_i32_55 dim 1 : vector<8x128xf32>, i32 -> vector<8x128xf32>
    %c56 = arith.constant 56 : index
    %c0_56 = arith.constant 0 : index
    %59 = vector.load %arg10[%c56, %c0_56] : memref<128x128xf32, #tpu.memory_space<vmem>>, vector<8x128xf32>
    tpu.vector_store %arg10[%c56, %c0_56], %58 {strides = array<i32>} : memref<128x128xf32, #tpu.memory_space<vmem>>, vector<8x128xf32>,
    %60 = vector.extract_strided_slice %2 {offsets = [8, 0], sizes = [8, 128], strides = [1, 1]} : vector<32x128xf32> to vector<8x128xf32>
    %c119_i32_57 = arith.constant 119 : i32
    %61 = tpu.dynamic_rotate %60 by %c119_i32_57 dim 1 : vector<8x128xf32>, i32 -> vector<8x128xf32>
    %c56_58 = arith.constant 56 : index
    %c0_59 = arith.constant 0 : index
    %62 = vector.load %arg11[%c56_58, %c0_59] : memref<128x128xf32, #tpu.memory_space<vmem>>, vector<8x128xf32>
    tpu.vector_store %arg11[%c56_58, %c0_59], %61 {strides = array<i32>} : memref<128x128xf32, #tpu.memory_space<vmem>>, vector<8x128xf32>,
    %c2 = arith.constant 2 : index
    %c0_60 = arith.constant 0 : index
    %c0_61 = arith.constant 0 : index
    %63 = vector.load %arg2[%c2, %c0_60, %c0_61] : memref<4x8x128xbf16, #tpu.memory_space<vmem>>, vector<1x8x128xbf16>
    %64 = vector.shape_cast %63 : vector<1x8x128xbf16> to vector<8x128xbf16>
    %65 = arith.extf %64 : vector<8x128xbf16> to vector<8x128xf32>
    %c64 = arith.constant 64 : index
    %c0_62 = arith.constant 0 : index
    %66 = vector.load %arg10[%c64, %c0_62] : memref<128x128xf32, #tpu.memory_space<vmem>>, vector<8x128xf32>
    tpu.vector_store %arg10[%c64, %c0_62], %65 {strides = array<i32>} : memref<128x128xf32, #tpu.memory_space<vmem>>, vector<8x128xf32>,
    %67 = vector.extract_strided_slice %2 {offsets = [16, 0], sizes = [8, 128], strides = [1, 1]} : vector<32x128xf32> to vector<8x128xf32>
    %c64_63 = arith.constant 64 : index
    %c0_64 = arith.constant 0 : index
    %68 = vector.load %arg11[%c64_63, %c0_64] : memref<128x128xf32, #tpu.memory_space<vmem>>, vector<8x128xf32>
    tpu.vector_store %arg11[%c64_63, %c0_64], %67 {strides = array<i32>} : memref<128x128xf32, #tpu.memory_space<vmem>>, vector<8x128xf32>,
    %c2_65 = arith.constant 2 : index
    %c0_66 = arith.constant 0 : index
    %c0_67 = arith.constant 0 : index
    %69 = vector.load %arg2[%c2_65, %c0_66, %c0_67] : memref<4x8x128xbf16, #tpu.memory_space<vmem>>, vector<1x8x128xbf16>
    %70 = vector.shape_cast %69 : vector<1x8x128xbf16> to vector<8x128xbf16>
    %71 = arith.extf %70 : vector<8x128xbf16> to vector<8x128xf32>
    %c127_i32_68 = arith.constant 127 : i32
    %72 = tpu.dynamic_rotate %71 by %c127_i32_68 dim 1 : vector<8x128xf32>, i32 -> vector<8x128xf32>
    %c72 = arith.constant 72 : index
    %c0_69 = arith.constant 0 : index
    %73 = vector.load %arg10[%c72, %c0_69] : memref<128x128xf32, #tpu.memory_space<vmem>>, vector<8x128xf32>
    tpu.vector_store %arg10[%c72, %c0_69], %72 {strides = array<i32>} : memref<128x128xf32, #tpu.memory_space<vmem>>, vector<8x128xf32>,
    %74 = vector.extract_strided_slice %2 {offsets = [16, 0], sizes = [8, 128], strides = [1, 1]} : vector<32x128xf32> to vector<8x128xf32>
    %c127_i32_70 = arith.constant 127 : i32
    %75 = tpu.dynamic_rotate %74 by %c127_i32_70 dim 1 : vector<8x128xf32>, i32 -> vector<8x128xf32>
    %c72_71 = arith.constant 72 : index
    %c0_72 = arith.constant 0 : index
    %76 = vector.load %arg11[%c72_71, %c0_72] : memref<128x128xf32, #tpu.memory_space<vmem>>, vector<8x128xf32>
    tpu.vector_store %arg11[%c72_71, %c0_72], %75 {strides = array<i32>} : memref<128x128xf32, #tpu.memory_space<vmem>>, vector<8x128xf32>,
    %c2_73 = arith.constant 2 : index
    %c0_74 = arith.constant 0 : index
    %c0_75 = arith.constant 0 : index
    %77 = vector.load %arg2[%c2_73, %c0_74, %c0_75] : memref<4x8x128xbf16, #tpu.memory_space<vmem>>, vector<1x8x128xbf16>
    %78 = vector.shape_cast %77 : vector<1x8x128xbf16> to vector<8x128xbf16>
    %79 = arith.extf %78 : vector<8x128xbf16> to vector<8x128xf32>
    %c120_i32_76 = arith.constant 120 : i32
    %80 = tpu.dynamic_rotate %79 by %c120_i32_76 dim 1 : vector<8x128xf32>, i32 -> vector<8x128xf32>
    %c80 = arith.constant 80 : index
    %c0_77 = arith.constant 0 : index
    %81 = vector.load %arg10[%c80, %c0_77] : memref<128x128xf32, #tpu.memory_space<vmem>>, vector<8x128xf32>
    tpu.vector_store %arg10[%c80, %c0_77], %80 {strides = array<i32>} : memref<128x128xf32, #tpu.memory_space<vmem>>, vector<8x128xf32>,
    %82 = vector.extract_strided_slice %2 {offsets = [16, 0], sizes = [8, 128], strides = [1, 1]} : vector<32x128xf32> to vector<8x128xf32>
    %c120_i32_78 = arith.constant 120 : i32
    %83 = tpu.dynamic_rotate %82 by %c120_i32_78 dim 1 : vector<8x128xf32>, i32 -> vector<8x128xf32>
    %c80_79 = arith.constant 80 : index
    %c0_80 = arith.constant 0 : index
    %84 = vector.load %arg11[%c80_79, %c0_80] : memref<128x128xf32, #tpu.memory_space<vmem>>, vector<8x128xf32>
    tpu.vector_store %arg11[%c80_79, %c0_80], %83 {strides = array<i32>} : memref<128x128xf32, #tpu.memory_space<vmem>>, vector<8x128xf32>,
    %c2_81 = arith.constant 2 : index
    %c0_82 = arith.constant 0 : index
    %c0_83 = arith.constant 0 : index
    %85 = vector.load %arg2[%c2_81, %c0_82, %c0_83] : memref<4x8x128xbf16, #tpu.memory_space<vmem>>, vector<1x8x128xbf16>
    %86 = vector.shape_cast %85 : vector<1x8x128xbf16> to vector<8x128xbf16>
    %87 = arith.extf %86 : vector<8x128xbf16> to vector<8x128xf32>
    %c119_i32_84 = arith.constant 119 : i32
    %88 = tpu.dynamic_rotate %87 by %c119_i32_84 dim 1 : vector<8x128xf32>, i32 -> vector<8x128xf32>
    %c88 = arith.constant 88 : index
    %c0_85 = arith.constant 0 : index
    %89 = vector.load %arg10[%c88, %c0_85] : memref<128x128xf32, #tpu.memory_space<vmem>>, vector<8x128xf32>
    tpu.vector_store %arg10[%c88, %c0_85], %88 {strides = array<i32>} : memref<128x128xf32, #tpu.memory_space<vmem>>, vector<8x128xf32>,
    %90 = vector.extract_strided_slice %2 {offsets = [16, 0], sizes = [8, 128], strides = [1, 1]} : vector<32x128xf32> to vector<8x128xf32>
    %c119_i32_86 = arith.constant 119 : i32
    %91 = tpu.dynamic_rotate %90 by %c119_i32_86 dim 1 : vector<8x128xf32>, i32 -> vector<8x128xf32>
    %c88_87 = arith.constant 88 : index
    %c0_88 = arith.constant 0 : index
    %92 = vector.load %arg11[%c88_87, %c0_88] : memref<128x128xf32, #tpu.memory_space<vmem>>, vector<8x128xf32>
    tpu.vector_store %arg11[%c88_87, %c0_88], %91 {strides = array<i32>} : memref<128x128xf32, #tpu.memory_space<vmem>>, vector<8x128xf32>,
    %c3 = arith.constant 3 : index
    %c0_89 = arith.constant 0 : index
    %c0_90 = arith.constant 0 : index
    %93 = vector.load %arg2[%c3, %c0_89, %c0_90] : memref<4x8x128xbf16, #tpu.memory_space<vmem>>, vector<1x8x128xbf16>
    %94 = vector.shape_cast %93 : vector<1x8x128xbf16> to vector<8x128xbf16>
    %95 = arith.extf %94 : vector<8x128xbf16> to vector<8x128xf32>
    %c96 = arith.constant 96 : index
    %c0_91 = arith.constant 0 : index
    %96 = vector.load %arg10[%c96, %c0_91] : memref<128x128xf32, #tpu.memory_space<vmem>>, vector<8x128xf32>
    tpu.vector_store %arg10[%c96, %c0_91], %95 {strides = array<i32>} : memref<128x128xf32, #tpu.memory_space<vmem>>, vector<8x128xf32>,
    %97 = vector.extract_strided_slice %2 {offsets = [24, 0], sizes = [8, 128], strides = [1, 1]} : vector<32x128xf32> to vector<8x128xf32>
    %c96_92 = arith.constant 96 : index
    %c0_93 = arith.constant 0 : index
    %98 = vector.load %arg11[%c96_92, %c0_93] : memref<128x128xf32, #tpu.memory_space<vmem>>, vector<8x128xf32>
    tpu.vector_store %arg11[%c96_92, %c0_93], %97 {strides = array<i32>} : memref<128x128xf32, #tpu.memory_space<vmem>>, vector<8x128xf32>,
    %c3_94 = arith.constant 3 : index
    %c0_95 = arith.constant 0 : index
    %c0_96 = arith.constant 0 : index
    %99 = vector.load %arg2[%c3_94, %c0_95, %c0_96] : memref<4x8x128xbf16, #tpu.memory_space<vmem>>, vector<1x8x128xbf16>
    %100 = vector.shape_cast %99 : vector<1x8x128xbf16> to vector<8x128xbf16>
    %101 = arith.extf %100 : vector<8x128xbf16> to vector<8x128xf32>
    %c127_i32_97 = arith.constant 127 : i32
    %102 = tpu.dynamic_rotate %101 by %c127_i32_97 dim 1 : vector<8x128xf32>, i32 -> vector<8x128xf32>
    %c104 = arith.constant 104 : index
    %c0_98 = arith.constant 0 : index
    %103 = vector.load %arg10[%c104, %c0_98] : memref<128x128xf32, #tpu.memory_space<vmem>>, vector<8x128xf32>
    tpu.vector_store %arg10[%c104, %c0_98], %102 {strides = array<i32>} : memref<128x128xf32, #tpu.memory_space<vmem>>, vector<8x128xf32>,
    %104 = vector.extract_strided_slice %2 {offsets = [24, 0], sizes = [8, 128], strides = [1, 1]} : vector<32x128xf32> to vector<8x128xf32>
    %c127_i32_99 = arith.constant 127 : i32
    %105 = tpu.dynamic_rotate %104 by %c127_i32_99 dim 1 : vector<8x128xf32>, i32 -> vector<8x128xf32>
    %c104_100 = arith.constant 104 : index
    %c0_101 = arith.constant 0 : index
    %106 = vector.load %arg11[%c104_100, %c0_101] : memref<128x128xf32, #tpu.memory_space<vmem>>, vector<8x128xf32>
    tpu.vector_store %arg11[%c104_100, %c0_101], %105 {strides = array<i32>} : memref<128x128xf32, #tpu.memory_space<vmem>>, vector<8x128xf32>,
    %c3_102 = arith.constant 3 : index
    %c0_103 = arith.constant 0 : index
    %c0_104 = arith.constant 0 : index
    %107 = vector.load %arg2[%c3_102, %c0_103, %c0_104] : memref<4x8x128xbf16, #tpu.memory_space<vmem>>, vector<1x8x128xbf16>
    %108 = vector.shape_cast %107 : vector<1x8x128xbf16> to vector<8x128xbf16>
    %109 = arith.extf %108 : vector<8x128xbf16> to vector<8x128xf32>
    %c120_i32_105 = arith.constant 120 : i32
    %110 = tpu.dynamic_rotate %109 by %c120_i32_105 dim 1 : vector<8x128xf32>, i32 -> vector<8x128xf32>
    %c112 = arith.constant 112 : index
    %c0_106 = arith.constant 0 : index
    %111 = vector.load %arg10[%c112, %c0_106] : memref<128x128xf32, #tpu.memory_space<vmem>>, vector<8x128xf32>
    tpu.vector_store %arg10[%c112, %c0_106], %110 {strides = array<i32>} : memref<128x128xf32, #tpu.memory_space<vmem>>, vector<8x128xf32>,
    %112 = vector.extract_strided_slice %2 {offsets = [24, 0], sizes = [8, 128], strides = [1, 1]} : vector<32x128xf32> to vector<8x128xf32>
    %c120_i32_107 = arith.constant 120 : i32
    %113 = tpu.dynamic_rotate %112 by %c120_i32_107 dim 1 : vector<8x128xf32>, i32 -> vector<8x128xf32>
    %c112_108 = arith.constant 112 : index
    %c0_109 = arith.constant 0 : index
    %114 = vector.load %arg11[%c112_108, %c0_109] : memref<128x128xf32, #tpu.memory_space<vmem>>, vector<8x128xf32>
    tpu.vector_store %arg11[%c112_108, %c0_109], %113 {strides = array<i32>} : memref<128x128xf32, #tpu.memory_space<vmem>>, vector<8x128xf32>,
    %c3_110 = arith.constant 3 : index
    %c0_111 = arith.constant 0 : index
    %c0_112 = arith.constant 0 : index
    %115 = vector.load %arg2[%c3_110, %c0_111, %c0_112] : memref<4x8x128xbf16, #tpu.memory_space<vmem>>, vector<1x8x128xbf16>
    %116 = vector.shape_cast %115 : vector<1x8x128xbf16> to vector<8x128xbf16>
    %117 = arith.extf %116 : vector<8x128xbf16> to vector<8x128xf32>
    %c119_i32_113 = arith.constant 119 : i32
    %118 = tpu.dynamic_rotate %117 by %c119_i32_113 dim 1 : vector<8x128xf32>, i32 -> vector<8x128xf32>
    %c120 = arith.constant 120 : index
    %c0_114 = arith.constant 0 : index
    %119 = vector.load %arg10[%c120, %c0_114] : memref<128x128xf32, #tpu.memory_space<vmem>>, vector<8x128xf32>
    tpu.vector_store %arg10[%c120, %c0_114], %118 {strides = array<i32>} : memref<128x128xf32, #tpu.memory_space<vmem>>, vector<8x128xf32>,
    %120 = vector.extract_strided_slice %2 {offsets = [24, 0], sizes = [8, 128], strides = [1, 1]} : vector<32x128xf32> to vector<8x128xf32>
    %c119_i32_115 = arith.constant 119 : i32
    %121 = tpu.dynamic_rotate %120 by %c119_i32_115 dim 1 : vector<8x128xf32>, i32 -> vector<8x128xf32>
    %c120_116 = arith.constant 120 : index
    %c0_117 = arith.constant 0 : index
    %122 = vector.load %arg11[%c120_116, %c0_117] : memref<128x128xf32, #tpu.memory_space<vmem>>, vector<8x128xf32>
    tpu.vector_store %arg11[%c120_116, %c0_117], %121 {strides = array<i32>} : memref<128x128xf32, #tpu.memory_space<vmem>>, vector<8x128xf32>,
    %c0_118 = arith.constant 0 : index
    %c0_119 = arith.constant 0 : index
    %123 = vector.load %arg4[%c0_118, %c0_119] : memref<32x128xbf16, #tpu.memory_space<vmem>>, vector<32x128xbf16>
    %c0_120 = arith.constant 0 : index
    %c0_121 = arith.constant 0 : index
    %124 = vector.load %arg10[%c0_120, %c0_121] : memref<128x128xf32, #tpu.memory_space<vmem>>, vector<128x128xf32>
    %125 = arith.truncf %124 : vector<128x128xf32> to vector<128x128xbf16>
    %cst_122 = arith.constant dense<0.000000e+00> : vector<32x128xf32>
    %126 = tpu.matmul %123, %125, %cst_122 {dimension_numbers = #tpu.dot_dimension_numbers<[1], [0], [0], [1], [0, 0, 1, 1], [], []>} : vector<32x128xbf16>, vector<128x128xbf16>, vector<32x128xf32> -> vector<32x128xf32>
    %c0_123 = arith.constant 0 : index
    %c0_124 = arith.constant 0 : index
    %127 = vector.load %arg5[%c0_123, %c0_124] : memref<32x128xbf16, #tpu.memory_space<vmem>>, vector<32x128xbf16>
    %c0_125 = arith.constant 0 : index
    %c0_126 = arith.constant 0 : index
    %128 = vector.load %arg11[%c0_125, %c0_126] : memref<128x128xf32, #tpu.memory_space<vmem>>, vector<128x128xf32>
    %129 = arith.truncf %128 : vector<128x128xf32> to vector<128x128xbf16>
    %cst_127 = arith.constant dense<0.000000e+00> : vector<32x128xf32>
    %130 = tpu.matmul %127, %129, %cst_127 {dimension_numbers = #tpu.dot_dimension_numbers<[1], [0], [0], [1], [0, 0, 1, 1], [], []>} : vector<32x128xbf16>, vector<128x128xbf16>, vector<32x128xf32> -> vector<32x128xf32>
    %131 = arith.addf %126, %130 : vector<32x128xf32>
    %c0_128 = arith.constant 0 : index
    %c0_129 = arith.constant 0 : index
    %132 = vector.load %arg6[%c0_128, %c0_129] : memref<32x1xf32, #tpu.memory_space<vmem>>, vector<32x1xf32>
    %133 = vector.broadcast %132 : vector<32x1xf32> to vector<32x128xf32>
    %134 = arith.addf %131, %133 : vector<32x128xf32>
    %cst_130 = arith.constant 0.000000e+00 : f32
    %135 = vector.broadcast %cst_130 : f32 to vector<32x128xf32>
    %136 = arith.maximumf %134, %135 : vector<32x128xf32>
    %137 = vector.extract_strided_slice %136 {offsets = [0, 0], sizes = [8, 128], strides = [1, 1]} : vector<32x128xf32> to vector<8x128xf32>
    %c0_131 = arith.constant 0 : index
    %c0_132 = arith.constant 0 : index
    %138 = vector.load %arg12[%c0_131, %c0_132] : memref<128x128xf32, #tpu.memory_space<vmem>>, vector<8x128xf32>
    tpu.vector_store %arg12[%c0_131, %c0_132], %137 {strides = array<i32>} : memref<128x128xf32, #tpu.memory_space<vmem>>, vector<8x128xf32>,
    %139 = vector.extract_strided_slice %136 {offsets = [0, 0], sizes = [8, 128], strides = [1, 1]} : vector<32x128xf32> to vector<8x128xf32>
    %c127_i32_133 = arith.constant 127 : i32
    %140 = tpu.dynamic_rotate %139 by %c127_i32_133 dim 1 : vector<8x128xf32>, i32 -> vector<8x128xf32>
    %c8_134 = arith.constant 8 : index
    %c0_135 = arith.constant 0 : index
    %141 = vector.load %arg12[%c8_134, %c0_135] : memref<128x128xf32, #tpu.memory_space<vmem>>, vector<8x128xf32>
    tpu.vector_store %arg12[%c8_134, %c0_135], %140 {strides = array<i32>} : memref<128x128xf32, #tpu.memory_space<vmem>>, vector<8x128xf32>,
    %142 = vector.extract_strided_slice %136 {offsets = [0, 0], sizes = [8, 128], strides = [1, 1]} : vector<32x128xf32> to vector<8x128xf32>
    %c120_i32_136 = arith.constant 120 : i32
    %143 = tpu.dynamic_rotate %142 by %c120_i32_136 dim 1 : vector<8x128xf32>, i32 -> vector<8x128xf32>
    %c16_137 = arith.constant 16 : index
    %c0_138 = arith.constant 0 : index
    %144 = vector.load %arg12[%c16_137, %c0_138] : memref<128x128xf32, #tpu.memory_space<vmem>>, vector<8x128xf32>
    tpu.vector_store %arg12[%c16_137, %c0_138], %143 {strides = array<i32>} : memref<128x128xf32, #tpu.memory_space<vmem>>, vector<8x128xf32>,
    %145 = vector.extract_strided_slice %136 {offsets = [0, 0], sizes = [8, 128], strides = [1, 1]} : vector<32x128xf32> to vector<8x128xf32>
    %c119_i32_139 = arith.constant 119 : i32
    %146 = tpu.dynamic_rotate %145 by %c119_i32_139 dim 1 : vector<8x128xf32>, i32 -> vector<8x128xf32>
    %c24_140 = arith.constant 24 : index
    %c0_141 = arith.constant 0 : index
    %147 = vector.load %arg12[%c24_140, %c0_141] : memref<128x128xf32, #tpu.memory_space<vmem>>, vector<8x128xf32>
    tpu.vector_store %arg12[%c24_140, %c0_141], %146 {strides = array<i32>} : memref<128x128xf32, #tpu.memory_space<vmem>>, vector<8x128xf32>,
    %148 = vector.extract_strided_slice %136 {offsets = [8, 0], sizes = [8, 128], strides = [1, 1]} : vector<32x128xf32> to vector<8x128xf32>
    %c32_142 = arith.constant 32 : index
    %c0_143 = arith.constant 0 : index
    %149 = vector.load %arg12[%c32_142, %c0_143] : memref<128x128xf32, #tpu.memory_space<vmem>>, vector<8x128xf32>
    tpu.vector_store %arg12[%c32_142, %c0_143], %148 {strides = array<i32>} : memref<128x128xf32, #tpu.memory_space<vmem>>, vector<8x128xf32>,
    %150 = vector.extract_strided_slice %136 {offsets = [8, 0], sizes = [8, 128], strides = [1, 1]} : vector<32x128xf32> to vector<8x128xf32>
    %c127_i32_144 = arith.constant 127 : i32
    %151 = tpu.dynamic_rotate %150 by %c127_i32_144 dim 1 : vector<8x128xf32>, i32 -> vector<8x128xf32>
    %c40_145 = arith.constant 40 : index
    %c0_146 = arith.constant 0 : index
    %152 = vector.load %arg12[%c40_145, %c0_146] : memref<128x128xf32, #tpu.memory_space<vmem>>, vector<8x128xf32>
    tpu.vector_store %arg12[%c40_145, %c0_146], %151 {strides = array<i32>} : memref<128x128xf32, #tpu.memory_space<vmem>>, vector<8x128xf32>,
    %153 = vector.extract_strided_slice %136 {offsets = [8, 0], sizes = [8, 128], strides = [1, 1]} : vector<32x128xf32> to vector<8x128xf32>
    %c120_i32_147 = arith.constant 120 : i32
    %154 = tpu.dynamic_rotate %153 by %c120_i32_147 dim 1 : vector<8x128xf32>, i32 -> vector<8x128xf32>
    %c48_148 = arith.constant 48 : index
    %c0_149 = arith.constant 0 : index
    %155 = vector.load %arg12[%c48_148, %c0_149] : memref<128x128xf32, #tpu.memory_space<vmem>>, vector<8x128xf32>
    tpu.vector_store %arg12[%c48_148, %c0_149], %154 {strides = array<i32>} : memref<128x128xf32, #tpu.memory_space<vmem>>, vector<8x128xf32>,
    %156 = vector.extract_strided_slice %136 {offsets = [8, 0], sizes = [8, 128], strides = [1, 1]} : vector<32x128xf32> to vector<8x128xf32>
    %c119_i32_150 = arith.constant 119 : i32
    %157 = tpu.dynamic_rotate %156 by %c119_i32_150 dim 1 : vector<8x128xf32>, i32 -> vector<8x128xf32>
    %c56_151 = arith.constant 56 : index
    %c0_152 = arith.constant 0 : index
    %158 = vector.load %arg12[%c56_151, %c0_152] : memref<128x128xf32, #tpu.memory_space<vmem>>, vector<8x128xf32>
    tpu.vector_store %arg12[%c56_151, %c0_152], %157 {strides = array<i32>} : memref<128x128xf32, #tpu.memory_space<vmem>>, vector<8x128xf32>,
    %159 = vector.extract_strided_slice %136 {offsets = [16, 0], sizes = [8, 128], strides = [1, 1]} : vector<32x128xf32> to vector<8x128xf32>
    %c64_153 = arith.constant 64 : index
    %c0_154 = arith.constant 0 : index
    %160 = vector.load %arg12[%c64_153, %c0_154] : memref<128x128xf32, #tpu.memory_space<vmem>>, vector<8x128xf32>
    tpu.vector_store %arg12[%c64_153, %c0_154], %159 {strides = array<i32>} : memref<128x128xf32, #tpu.memory_space<vmem>>, vector<8x128xf32>,
    %161 = vector.extract_strided_slice %136 {offsets = [16, 0], sizes = [8, 128], strides = [1, 1]} : vector<32x128xf32> to vector<8x128xf32>
    %c127_i32_155 = arith.constant 127 : i32
    %162 = tpu.dynamic_rotate %161 by %c127_i32_155 dim 1 : vector<8x128xf32>, i32 -> vector<8x128xf32>
    %c72_156 = arith.constant 72 : index
    %c0_157 = arith.constant 0 : index
    %163 = vector.load %arg12[%c72_156, %c0_157] : memref<128x128xf32, #tpu.memory_space<vmem>>, vector<8x128xf32>
    tpu.vector_store %arg12[%c72_156, %c0_157], %162 {strides = array<i32>} : memref<128x128xf32, #tpu.memory_space<vmem>>, vector<8x128xf32>,
    %164 = vector.extract_strided_slice %136 {offsets = [16, 0], sizes = [8, 128], strides = [1, 1]} : vector<32x128xf32> to vector<8x128xf32>
    %c120_i32_158 = arith.constant 120 : i32
    %165 = tpu.dynamic_rotate %164 by %c120_i32_158 dim 1 : vector<8x128xf32>, i32 -> vector<8x128xf32>
    %c80_159 = arith.constant 80 : index
    %c0_160 = arith.constant 0 : index
    %166 = vector.load %arg12[%c80_159, %c0_160] : memref<128x128xf32, #tpu.memory_space<vmem>>, vector<8x128xf32>
    tpu.vector_store %arg12[%c80_159, %c0_160], %165 {strides = array<i32>} : memref<128x128xf32, #tpu.memory_space<vmem>>, vector<8x128xf32>,
    %167 = vector.extract_strided_slice %136 {offsets = [16, 0], sizes = [8, 128], strides = [1, 1]} : vector<32x128xf32> to vector<8x128xf32>
    %c119_i32_161 = arith.constant 119 : i32
    %168 = tpu.dynamic_rotate %167 by %c119_i32_161 dim 1 : vector<8x128xf32>, i32 -> vector<8x128xf32>
    %c88_162 = arith.constant 88 : index
    %c0_163 = arith.constant 0 : index
    %169 = vector.load %arg12[%c88_162, %c0_163] : memref<128x128xf32, #tpu.memory_space<vmem>>, vector<8x128xf32>
    tpu.vector_store %arg12[%c88_162, %c0_163], %168 {strides = array<i32>} : memref<128x128xf32, #tpu.memory_space<vmem>>, vector<8x128xf32>,
    %170 = vector.extract_strided_slice %136 {offsets = [24, 0], sizes = [8, 128], strides = [1, 1]} : vector<32x128xf32> to vector<8x128xf32>
    %c96_164 = arith.constant 96 : index
    %c0_165 = arith.constant 0 : index
    %171 = vector.load %arg12[%c96_164, %c0_165] : memref<128x128xf32, #tpu.memory_space<vmem>>, vector<8x128xf32>
    tpu.vector_store %arg12[%c96_164, %c0_165], %170 {strides = array<i32>} : memref<128x128xf32, #tpu.memory_space<vmem>>, vector<8x128xf32>,
    %172 = vector.extract_strided_slice %136 {offsets = [24, 0], sizes = [8, 128], strides = [1, 1]} : vector<32x128xf32> to vector<8x128xf32>
    %c127_i32_166 = arith.constant 127 : i32
    %173 = tpu.dynamic_rotate %172 by %c127_i32_166 dim 1 : vector<8x128xf32>, i32 -> vector<8x128xf32>
    %c104_167 = arith.constant 104 : index
    %c0_168 = arith.constant 0 : index
    %174 = vector.load %arg12[%c104_167, %c0_168] : memref<128x128xf32, #tpu.memory_space<vmem>>, vector<8x128xf32>
    tpu.vector_store %arg12[%c104_167, %c0_168], %173 {strides = array<i32>} : memref<128x128xf32, #tpu.memory_space<vmem>>, vector<8x128xf32>,
    %175 = vector.extract_strided_slice %136 {offsets = [24, 0], sizes = [8, 128], strides = [1, 1]} : vector<32x128xf32> to vector<8x128xf32>
    %c120_i32_169 = arith.constant 120 : i32
    %176 = tpu.dynamic_rotate %175 by %c120_i32_169 dim 1 : vector<8x128xf32>, i32 -> vector<8x128xf32>
    %c112_170 = arith.constant 112 : index
    %c0_171 = arith.constant 0 : index
    %177 = vector.load %arg12[%c112_170, %c0_171] : memref<128x128xf32, #tpu.memory_space<vmem>>, vector<8x128xf32>
    tpu.vector_store %arg12[%c112_170, %c0_171], %176 {strides = array<i32>} : memref<128x128xf32, #tpu.memory_space<vmem>>, vector<8x128xf32>,
    %178 = vector.extract_strided_slice %136 {offsets = [24, 0], sizes = [8, 128], strides = [1, 1]} : vector<32x128xf32> to vector<8x128xf32>
    %c119_i32_172 = arith.constant 119 : i32
    %179 = tpu.dynamic_rotate %178 by %c119_i32_172 dim 1 : vector<8x128xf32>, i32 -> vector<8x128xf32>
    %c120_173 = arith.constant 120 : index
    %c0_174 = arith.constant 0 : index
    %180 = vector.load %arg12[%c120_173, %c0_174] : memref<128x128xf32, #tpu.memory_space<vmem>>, vector<8x128xf32>
    tpu.vector_store %arg12[%c120_173, %c0_174], %179 {strides = array<i32>} : memref<128x128xf32, #tpu.memory_space<vmem>>, vector<8x128xf32>,
    %c0_175 = arith.constant 0 : index
    %c0_176 = arith.constant 0 : index
    %181 = vector.load %arg7[%c0_175, %c0_176] : memref<32x128xbf16, #tpu.memory_space<vmem>>, vector<32x128xbf16>
    %c0_177 = arith.constant 0 : index
    %c0_178 = arith.constant 0 : index
    %182 = vector.load %arg12[%c0_177, %c0_178] : memref<128x128xf32, #tpu.memory_space<vmem>>, vector<128x128xf32>
    %183 = arith.truncf %182 : vector<128x128xf32> to vector<128x128xbf16>
    %cst_179 = arith.constant dense<0.000000e+00> : vector<32x128xf32>
    %184 = tpu.matmul %181, %183, %cst_179 {dimension_numbers = #tpu.dot_dimension_numbers<[1], [0], [0], [1], [0, 0, 1, 1], [], []>} : vector<32x128xbf16>, vector<128x128xbf16>, vector<32x128xf32> -> vector<32x128xf32>
    %c0_180 = arith.constant 0 : index
    %c0_181 = arith.constant 0 : index
    %185 = vector.load %arg8[%c0_180, %c0_181] : memref<32x1xf32, #tpu.memory_space<vmem>>, vector<32x1xf32>
    %186 = vector.broadcast %185 : vector<32x1xf32> to vector<32x128xf32>
    %187 = arith.addf %184, %186 : vector<32x128xf32>
    %cst_182 = arith.constant 0.000000e+00 : f32
    %188 = vector.broadcast %cst_182 : f32 to vector<32x128xf32>
    %189 = arith.maximumf %187, %188 : vector<32x128xf32>
    %c0_183 = arith.constant 0 : index
    %c0_184 = arith.constant 0 : index
    %190 = vector.load %arg9[%c0_183, %c0_184] : memref<32x128xf32, #tpu.memory_space<vmem>>, vector<32x128xf32>
    tpu.vector_store %arg9[%c0_183, %c0_184], %189 {strides = array<i32>} : memref<32x128xf32, #tpu.memory_space<vmem>>, vector<32x128xf32>,
    return
  }
  func.func @transform_0(%arg0: i32) -> (i32, i32) {
    %c0_i32 = arith.constant 0 : i32
    %c0_i32_0 = arith.constant 0 : i32
    %c0_i32_1 = arith.constant 0 : i32
    return %c0_i32, %c0_i32_0 : i32, i32
  }
  func.func @transform_1(%arg0: i32) -> (i32, i32, i32) {
    %c0_i32 = arith.constant 0 : i32
    %c0_i32_0 = arith.constant 0 : i32
    %c0_i32_1 = arith.constant 0 : i32
    %c0_i32_2 = arith.constant 0 : i32
    return %c0_i32, %c0_i32_0, %c0_i32_1 : i32, i32, i32
  }
  func.func @transform_2(%arg0: i32) -> (i32, i32) {
    %c0_i32 = arith.constant 0 : i32
    %c0_i32_0 = arith.constant 0 : i32
    %c0_i32_1 = arith.constant 0 : i32
    return %c0_i32, %c0_i32_0 : i32, i32
  }
  func.func @transform_3(%arg0: i32) -> (i32, i32) {
    %c0_i32 = arith.constant 0 : i32
    %c0_i32_0 = arith.constant 0 : i32
    %c0_i32_1 = arith.constant 0 : i32
    return %c0_i32, %c0_i32_0 : i32, i32
  }
  func.func @transform_4(%arg0: i32) -> (i32, i32) {
    %c0_i32 = arith.constant 0 : i32
    %c0_i32_0 = arith.constant 0 : i32
    %c0_i32_1 = arith.constant 0 : i32
    return %c0_i32, %c0_i32_0 : i32, i32
  }
  func.func @transform_5(%arg0: i32) -> (i32, i32) {
    %c0_i32 = arith.constant 0 : i32
    %c0_i32_0 = arith.constant 0 : i32
    %c0_i32_1 = arith.constant 0 : i32
    return %c0_i32, %c0_i32_0 : i32, i32
  }
  func.func @transform_6(%arg0: i32) -> (i32, i32) {
    %c0_i32 = arith.constant 0 : i32
    %c0_i32_0 = arith.constant 0 : i32
    %c0_i32_1 = arith.constant 0 : i32
    return %c0_i32, %c0_i32_0 : i32, i32
  }
  func.func @transform_7(%arg0: i32) -> (i32, i32) {
    %c0_i32 = arith.constant 0 : i32
    %c0_i32_0 = arith.constant 0 : i32
    %c0_i32_1 = arith.constant 0 : i32
    return %c0_i32, %c0_i32_0 : i32, i32
  }
  func.func @transform_8(%arg0: i32) -> (i32, i32) {
    %c0_i32 = arith.constant 0 : i32
    %c0_i32_0 = arith.constant 0 : i32
    %c0_i32_1 = arith.constant 0 : i32
    return %c0_i32, %c0_i32_0 : i32, i32
  }
}

module attributes {stable_mosaic.version = 11 : i64} {
  func.func @kernel(%arg0: i32, %arg1: memref<8x288xbf16, #tpu.memory_space<vmem>>, %arg2: memref<4x4x288xbf16, #tpu.memory_space<vmem>>, %arg3: memref<16x8xbf16, #tpu.memory_space<vmem>>, %arg4: memref<16x64xbf16, #tpu.memory_space<vmem>>, %arg5: memref<16x64xbf16, #tpu.memory_space<vmem>>, %arg6: memref<16x1xf32, #tpu.memory_space<vmem>>, %arg7: memref<16x64xbf16, #tpu.memory_space<vmem>>, %arg8: memref<16x1xf32, #tpu.memory_space<vmem>>, %arg9: memref<16x288xf32, #tpu.memory_space<vmem>>, %arg10: memref<64x288xf32, #tpu.memory_space<vmem>>, %arg11: memref<64x288xf32, #tpu.memory_space<vmem>>, %arg12: memref<64x288xf32, #tpu.memory_space<vmem>>) attributes {dimension_semantics = [#tpu.dimension_semantics<arbitrary>], iteration_bounds = array<i64: 1>, scalar_prefetch = 0 : i64, scratch_operands = 3 : i64, tpu.core_type = #tpu.core_type<tc>, window_params = [{pipeline_mode = #tpu.pipeline_mode<synchronous>, transform_indices = @transform_0, window_bounds = array<i64: 8, 288>}, {pipeline_mode = #tpu.pipeline_mode<synchronous>, transform_indices = @transform_1, window_bounds = array<i64: 4, 4, 288>}, {pipeline_mode = #tpu.pipeline_mode<synchronous>, transform_indices = @transform_2, window_bounds = array<i64: 16, 8>}, {pipeline_mode = #tpu.pipeline_mode<synchronous>, transform_indices = @transform_3, window_bounds = array<i64: 16, 64>}, {pipeline_mode = #tpu.pipeline_mode<synchronous>, transform_indices = @transform_4, window_bounds = array<i64: 16, 64>}, {pipeline_mode = #tpu.pipeline_mode<synchronous>, transform_indices = @transform_5, window_bounds = array<i64: 16, 1>}, {pipeline_mode = #tpu.pipeline_mode<synchronous>, transform_indices = @transform_6, window_bounds = array<i64: 16, 64>}, {pipeline_mode = #tpu.pipeline_mode<synchronous>, transform_indices = @transform_7, window_bounds = array<i64: 16, 1>}, {pipeline_mode = #tpu.pipeline_mode<synchronous>, transform_indices = @transform_8, window_bounds = array<i64: 16, 288>}]} {
    %c0 = arith.constant 0 : index
    %c0_0 = arith.constant 0 : index
    %0 = vector.load %arg3[%c0, %c0_0] : memref<16x8xbf16, #tpu.memory_space<vmem>>, vector<16x8xbf16>
    %c0_1 = arith.constant 0 : index
    %c0_2 = arith.constant 0 : index
    %1 = vector.load %arg1[%c0_1, %c0_2] : memref<8x288xbf16, #tpu.memory_space<vmem>>, vector<8x288xbf16>
    %cst = arith.constant dense<0.000000e+00> : vector<16x288xf32>
    %2 = tpu.matmul %0, %1, %cst {dimension_numbers = #tpu.dot_dimension_numbers<[1], [0], [0], [1], [0, 0, 1, 1], [], []>} : vector<16x8xbf16>, vector<8x288xbf16>, vector<16x288xf32> -> vector<16x288xf32>
    %c0_3 = arith.constant 0 : index
    %c0_4 = arith.constant 0 : index
    %c0_5 = arith.constant 0 : index
    %3 = vector.load %arg2[%c0_3, %c0_4, %c0_5] : memref<4x4x288xbf16, #tpu.memory_space<vmem>>, vector<1x4x288xbf16>
    %4 = vector.shape_cast %3 : vector<1x4x288xbf16> to vector<4x288xbf16>
    %5 = arith.extf %4 : vector<4x288xbf16> to vector<4x288xf32>
    %c0_6 = arith.constant 0 : index
    %c0_7 = arith.constant 0 : index
    %6 = vector.load %arg10[%c0_6, %c0_7] : memref<64x288xf32, #tpu.memory_space<vmem>>, vector<4x288xf32>
    tpu.vector_store %arg10[%c0_6, %c0_7], %5 {strides = array<i32>} : memref<64x288xf32, #tpu.memory_space<vmem>>, vector<4x288xf32>,
    %7 = vector.extract_strided_slice %2 {offsets = [0, 0], sizes = [4, 288], strides = [1, 1]} : vector<16x288xf32> to vector<4x288xf32>
    %c0_8 = arith.constant 0 : index
    %c0_9 = arith.constant 0 : index
    %8 = vector.load %arg11[%c0_8, %c0_9] : memref<64x288xf32, #tpu.memory_space<vmem>>, vector<4x288xf32>
    tpu.vector_store %arg11[%c0_8, %c0_9], %7 {strides = array<i32>} : memref<64x288xf32, #tpu.memory_space<vmem>>, vector<4x288xf32>,
    %c0_10 = arith.constant 0 : index
    %c0_11 = arith.constant 0 : index
    %c0_12 = arith.constant 0 : index
    %9 = vector.load %arg2[%c0_10, %c0_11, %c0_12] : memref<4x4x288xbf16, #tpu.memory_space<vmem>>, vector<1x4x288xbf16>
    %10 = vector.shape_cast %9 : vector<1x4x288xbf16> to vector<4x288xbf16>
    %11 = arith.extf %10 : vector<4x288xbf16> to vector<4x288xf32>
    %c287_i32 = arith.constant 287 : i32
    %12 = tpu.dynamic_rotate %11 by %c287_i32 dim 1 : vector<4x288xf32>, i32 -> vector<4x288xf32>
    %c4 = arith.constant 4 : index
    %c0_13 = arith.constant 0 : index
    %13 = vector.load %arg10[%c4, %c0_13] : memref<64x288xf32, #tpu.memory_space<vmem>>, vector<4x288xf32>
    tpu.vector_store %arg10[%c4, %c0_13], %12 {strides = array<i32>} : memref<64x288xf32, #tpu.memory_space<vmem>>, vector<4x288xf32>,
    %14 = vector.extract_strided_slice %2 {offsets = [0, 0], sizes = [4, 288], strides = [1, 1]} : vector<16x288xf32> to vector<4x288xf32>
    %c287_i32_14 = arith.constant 287 : i32
    %15 = tpu.dynamic_rotate %14 by %c287_i32_14 dim 1 : vector<4x288xf32>, i32 -> vector<4x288xf32>
    %c4_15 = arith.constant 4 : index
    %c0_16 = arith.constant 0 : index
    %16 = vector.load %arg11[%c4_15, %c0_16] : memref<64x288xf32, #tpu.memory_space<vmem>>, vector<4x288xf32>
    tpu.vector_store %arg11[%c4_15, %c0_16], %15 {strides = array<i32>} : memref<64x288xf32, #tpu.memory_space<vmem>>, vector<4x288xf32>,
    %c0_17 = arith.constant 0 : index
    %c0_18 = arith.constant 0 : index
    %c0_19 = arith.constant 0 : index
    %17 = vector.load %arg2[%c0_17, %c0_18, %c0_19] : memref<4x4x288xbf16, #tpu.memory_space<vmem>>, vector<1x4x288xbf16>
    %18 = vector.shape_cast %17 : vector<1x4x288xbf16> to vector<4x288xbf16>
    %19 = arith.extf %18 : vector<4x288xbf16> to vector<4x288xf32>
    %c276_i32 = arith.constant 276 : i32
    %20 = tpu.dynamic_rotate %19 by %c276_i32 dim 1 : vector<4x288xf32>, i32 -> vector<4x288xf32>
    %c8 = arith.constant 8 : index
    %c0_20 = arith.constant 0 : index
    %21 = vector.load %arg10[%c8, %c0_20] : memref<64x288xf32, #tpu.memory_space<vmem>>, vector<4x288xf32>
    tpu.vector_store %arg10[%c8, %c0_20], %20 {strides = array<i32>} : memref<64x288xf32, #tpu.memory_space<vmem>>, vector<4x288xf32>,
    %22 = vector.extract_strided_slice %2 {offsets = [0, 0], sizes = [4, 288], strides = [1, 1]} : vector<16x288xf32> to vector<4x288xf32>
    %c276_i32_21 = arith.constant 276 : i32
    %23 = tpu.dynamic_rotate %22 by %c276_i32_21 dim 1 : vector<4x288xf32>, i32 -> vector<4x288xf32>
    %c8_22 = arith.constant 8 : index
    %c0_23 = arith.constant 0 : index
    %24 = vector.load %arg11[%c8_22, %c0_23] : memref<64x288xf32, #tpu.memory_space<vmem>>, vector<4x288xf32>
    tpu.vector_store %arg11[%c8_22, %c0_23], %23 {strides = array<i32>} : memref<64x288xf32, #tpu.memory_space<vmem>>, vector<4x288xf32>,
    %c0_24 = arith.constant 0 : index
    %c0_25 = arith.constant 0 : index
    %c0_26 = arith.constant 0 : index
    %25 = vector.load %arg2[%c0_24, %c0_25, %c0_26] : memref<4x4x288xbf16, #tpu.memory_space<vmem>>, vector<1x4x288xbf16>
    %26 = vector.shape_cast %25 : vector<1x4x288xbf16> to vector<4x288xbf16>
    %27 = arith.extf %26 : vector<4x288xbf16> to vector<4x288xf32>
    %c275_i32 = arith.constant 275 : i32
    %28 = tpu.dynamic_rotate %27 by %c275_i32 dim 1 : vector<4x288xf32>, i32 -> vector<4x288xf32>
    %c12 = arith.constant 12 : index
    %c0_27 = arith.constant 0 : index
    %29 = vector.load %arg10[%c12, %c0_27] : memref<64x288xf32, #tpu.memory_space<vmem>>, vector<4x288xf32>
    tpu.vector_store %arg10[%c12, %c0_27], %28 {strides = array<i32>} : memref<64x288xf32, #tpu.memory_space<vmem>>, vector<4x288xf32>,
    %30 = vector.extract_strided_slice %2 {offsets = [0, 0], sizes = [4, 288], strides = [1, 1]} : vector<16x288xf32> to vector<4x288xf32>
    %c275_i32_28 = arith.constant 275 : i32
    %31 = tpu.dynamic_rotate %30 by %c275_i32_28 dim 1 : vector<4x288xf32>, i32 -> vector<4x288xf32>
    %c12_29 = arith.constant 12 : index
    %c0_30 = arith.constant 0 : index
    %32 = vector.load %arg11[%c12_29, %c0_30] : memref<64x288xf32, #tpu.memory_space<vmem>>, vector<4x288xf32>
    tpu.vector_store %arg11[%c12_29, %c0_30], %31 {strides = array<i32>} : memref<64x288xf32, #tpu.memory_space<vmem>>, vector<4x288xf32>,
    %c1 = arith.constant 1 : index
    %c0_31 = arith.constant 0 : index
    %c0_32 = arith.constant 0 : index
    %33 = vector.load %arg2[%c1, %c0_31, %c0_32] : memref<4x4x288xbf16, #tpu.memory_space<vmem>>, vector<1x4x288xbf16>
    %34 = vector.shape_cast %33 : vector<1x4x288xbf16> to vector<4x288xbf16>
    %35 = arith.extf %34 : vector<4x288xbf16> to vector<4x288xf32>
    %c16 = arith.constant 16 : index
    %c0_33 = arith.constant 0 : index
    %36 = vector.load %arg10[%c16, %c0_33] : memref<64x288xf32, #tpu.memory_space<vmem>>, vector<4x288xf32>
    tpu.vector_store %arg10[%c16, %c0_33], %35 {strides = array<i32>} : memref<64x288xf32, #tpu.memory_space<vmem>>, vector<4x288xf32>,
    %37 = vector.extract_strided_slice %2 {offsets = [4, 0], sizes = [4, 288], strides = [1, 1]} : vector<16x288xf32> to vector<4x288xf32>
    %c16_34 = arith.constant 16 : index
    %c0_35 = arith.constant 0 : index
    %38 = vector.load %arg11[%c16_34, %c0_35] : memref<64x288xf32, #tpu.memory_space<vmem>>, vector<4x288xf32>
    tpu.vector_store %arg11[%c16_34, %c0_35], %37 {strides = array<i32>} : memref<64x288xf32, #tpu.memory_space<vmem>>, vector<4x288xf32>,
    %c1_36 = arith.constant 1 : index
    %c0_37 = arith.constant 0 : index
    %c0_38 = arith.constant 0 : index
    %39 = vector.load %arg2[%c1_36, %c0_37, %c0_38] : memref<4x4x288xbf16, #tpu.memory_space<vmem>>, vector<1x4x288xbf16>
    %40 = vector.shape_cast %39 : vector<1x4x288xbf16> to vector<4x288xbf16>
    %41 = arith.extf %40 : vector<4x288xbf16> to vector<4x288xf32>
    %c287_i32_39 = arith.constant 287 : i32
    %42 = tpu.dynamic_rotate %41 by %c287_i32_39 dim 1 : vector<4x288xf32>, i32 -> vector<4x288xf32>
    %c20 = arith.constant 20 : index
    %c0_40 = arith.constant 0 : index
    %43 = vector.load %arg10[%c20, %c0_40] : memref<64x288xf32, #tpu.memory_space<vmem>>, vector<4x288xf32>
    tpu.vector_store %arg10[%c20, %c0_40], %42 {strides = array<i32>} : memref<64x288xf32, #tpu.memory_space<vmem>>, vector<4x288xf32>,
    %44 = vector.extract_strided_slice %2 {offsets = [4, 0], sizes = [4, 288], strides = [1, 1]} : vector<16x288xf32> to vector<4x288xf32>
    %c287_i32_41 = arith.constant 287 : i32
    %45 = tpu.dynamic_rotate %44 by %c287_i32_41 dim 1 : vector<4x288xf32>, i32 -> vector<4x288xf32>
    %c20_42 = arith.constant 20 : index
    %c0_43 = arith.constant 0 : index
    %46 = vector.load %arg11[%c20_42, %c0_43] : memref<64x288xf32, #tpu.memory_space<vmem>>, vector<4x288xf32>
    tpu.vector_store %arg11[%c20_42, %c0_43], %45 {strides = array<i32>} : memref<64x288xf32, #tpu.memory_space<vmem>>, vector<4x288xf32>,
    %c1_44 = arith.constant 1 : index
    %c0_45 = arith.constant 0 : index
    %c0_46 = arith.constant 0 : index
    %47 = vector.load %arg2[%c1_44, %c0_45, %c0_46] : memref<4x4x288xbf16, #tpu.memory_space<vmem>>, vector<1x4x288xbf16>
    %48 = vector.shape_cast %47 : vector<1x4x288xbf16> to vector<4x288xbf16>
    %49 = arith.extf %48 : vector<4x288xbf16> to vector<4x288xf32>
    %c276_i32_47 = arith.constant 276 : i32
    %50 = tpu.dynamic_rotate %49 by %c276_i32_47 dim 1 : vector<4x288xf32>, i32 -> vector<4x288xf32>
    %c24 = arith.constant 24 : index
    %c0_48 = arith.constant 0 : index
    %51 = vector.load %arg10[%c24, %c0_48] : memref<64x288xf32, #tpu.memory_space<vmem>>, vector<4x288xf32>
    tpu.vector_store %arg10[%c24, %c0_48], %50 {strides = array<i32>} : memref<64x288xf32, #tpu.memory_space<vmem>>, vector<4x288xf32>,
    %52 = vector.extract_strided_slice %2 {offsets = [4, 0], sizes = [4, 288], strides = [1, 1]} : vector<16x288xf32> to vector<4x288xf32>
    %c276_i32_49 = arith.constant 276 : i32
    %53 = tpu.dynamic_rotate %52 by %c276_i32_49 dim 1 : vector<4x288xf32>, i32 -> vector<4x288xf32>
    %c24_50 = arith.constant 24 : index
    %c0_51 = arith.constant 0 : index
    %54 = vector.load %arg11[%c24_50, %c0_51] : memref<64x288xf32, #tpu.memory_space<vmem>>, vector<4x288xf32>
    tpu.vector_store %arg11[%c24_50, %c0_51], %53 {strides = array<i32>} : memref<64x288xf32, #tpu.memory_space<vmem>>, vector<4x288xf32>,
    %c1_52 = arith.constant 1 : index
    %c0_53 = arith.constant 0 : index
    %c0_54 = arith.constant 0 : index
    %55 = vector.load %arg2[%c1_52, %c0_53, %c0_54] : memref<4x4x288xbf16, #tpu.memory_space<vmem>>, vector<1x4x288xbf16>
    %56 = vector.shape_cast %55 : vector<1x4x288xbf16> to vector<4x288xbf16>
    %57 = arith.extf %56 : vector<4x288xbf16> to vector<4x288xf32>
    %c275_i32_55 = arith.constant 275 : i32
    %58 = tpu.dynamic_rotate %57 by %c275_i32_55 dim 1 : vector<4x288xf32>, i32 -> vector<4x288xf32>
    %c28 = arith.constant 28 : index
    %c0_56 = arith.constant 0 : index
    %59 = vector.load %arg10[%c28, %c0_56] : memref<64x288xf32, #tpu.memory_space<vmem>>, vector<4x288xf32>
    tpu.vector_store %arg10[%c28, %c0_56], %58 {strides = array<i32>} : memref<64x288xf32, #tpu.memory_space<vmem>>, vector<4x288xf32>,
    %60 = vector.extract_strided_slice %2 {offsets = [4, 0], sizes = [4, 288], strides = [1, 1]} : vector<16x288xf32> to vector<4x288xf32>
    %c275_i32_57 = arith.constant 275 : i32
    %61 = tpu.dynamic_rotate %60 by %c275_i32_57 dim 1 : vector<4x288xf32>, i32 -> vector<4x288xf32>
    %c28_58 = arith.constant 28 : index
    %c0_59 = arith.constant 0 : index
    %62 = vector.load %arg11[%c28_58, %c0_59] : memref<64x288xf32, #tpu.memory_space<vmem>>, vector<4x288xf32>
    tpu.vector_store %arg11[%c28_58, %c0_59], %61 {strides = array<i32>} : memref<64x288xf32, #tpu.memory_space<vmem>>, vector<4x288xf32>,
    %c2 = arith.constant 2 : index
    %c0_60 = arith.constant 0 : index
    %c0_61 = arith.constant 0 : index
    %63 = vector.load %arg2[%c2, %c0_60, %c0_61] : memref<4x4x288xbf16, #tpu.memory_space<vmem>>, vector<1x4x288xbf16>
    %64 = vector.shape_cast %63 : vector<1x4x288xbf16> to vector<4x288xbf16>
    %65 = arith.extf %64 : vector<4x288xbf16> to vector<4x288xf32>
    %c32 = arith.constant 32 : index
    %c0_62 = arith.constant 0 : index
    %66 = vector.load %arg10[%c32, %c0_62] : memref<64x288xf32, #tpu.memory_space<vmem>>, vector<4x288xf32>
    tpu.vector_store %arg10[%c32, %c0_62], %65 {strides = array<i32>} : memref<64x288xf32, #tpu.memory_space<vmem>>, vector<4x288xf32>,
    %67 = vector.extract_strided_slice %2 {offsets = [8, 0], sizes = [4, 288], strides = [1, 1]} : vector<16x288xf32> to vector<4x288xf32>
    %c32_63 = arith.constant 32 : index
    %c0_64 = arith.constant 0 : index
    %68 = vector.load %arg11[%c32_63, %c0_64] : memref<64x288xf32, #tpu.memory_space<vmem>>, vector<4x288xf32>
    tpu.vector_store %arg11[%c32_63, %c0_64], %67 {strides = array<i32>} : memref<64x288xf32, #tpu.memory_space<vmem>>, vector<4x288xf32>,
    %c2_65 = arith.constant 2 : index
    %c0_66 = arith.constant 0 : index
    %c0_67 = arith.constant 0 : index
    %69 = vector.load %arg2[%c2_65, %c0_66, %c0_67] : memref<4x4x288xbf16, #tpu.memory_space<vmem>>, vector<1x4x288xbf16>
    %70 = vector.shape_cast %69 : vector<1x4x288xbf16> to vector<4x288xbf16>
    %71 = arith.extf %70 : vector<4x288xbf16> to vector<4x288xf32>
    %c287_i32_68 = arith.constant 287 : i32
    %72 = tpu.dynamic_rotate %71 by %c287_i32_68 dim 1 : vector<4x288xf32>, i32 -> vector<4x288xf32>
    %c36 = arith.constant 36 : index
    %c0_69 = arith.constant 0 : index
    %73 = vector.load %arg10[%c36, %c0_69] : memref<64x288xf32, #tpu.memory_space<vmem>>, vector<4x288xf32>
    tpu.vector_store %arg10[%c36, %c0_69], %72 {strides = array<i32>} : memref<64x288xf32, #tpu.memory_space<vmem>>, vector<4x288xf32>,
    %74 = vector.extract_strided_slice %2 {offsets = [8, 0], sizes = [4, 288], strides = [1, 1]} : vector<16x288xf32> to vector<4x288xf32>
    %c287_i32_70 = arith.constant 287 : i32
    %75 = tpu.dynamic_rotate %74 by %c287_i32_70 dim 1 : vector<4x288xf32>, i32 -> vector<4x288xf32>
    %c36_71 = arith.constant 36 : index
    %c0_72 = arith.constant 0 : index
    %76 = vector.load %arg11[%c36_71, %c0_72] : memref<64x288xf32, #tpu.memory_space<vmem>>, vector<4x288xf32>
    tpu.vector_store %arg11[%c36_71, %c0_72], %75 {strides = array<i32>} : memref<64x288xf32, #tpu.memory_space<vmem>>, vector<4x288xf32>,
    %c2_73 = arith.constant 2 : index
    %c0_74 = arith.constant 0 : index
    %c0_75 = arith.constant 0 : index
    %77 = vector.load %arg2[%c2_73, %c0_74, %c0_75] : memref<4x4x288xbf16, #tpu.memory_space<vmem>>, vector<1x4x288xbf16>
    %78 = vector.shape_cast %77 : vector<1x4x288xbf16> to vector<4x288xbf16>
    %79 = arith.extf %78 : vector<4x288xbf16> to vector<4x288xf32>
    %c276_i32_76 = arith.constant 276 : i32
    %80 = tpu.dynamic_rotate %79 by %c276_i32_76 dim 1 : vector<4x288xf32>, i32 -> vector<4x288xf32>
    %c40 = arith.constant 40 : index
    %c0_77 = arith.constant 0 : index
    %81 = vector.load %arg10[%c40, %c0_77] : memref<64x288xf32, #tpu.memory_space<vmem>>, vector<4x288xf32>
    tpu.vector_store %arg10[%c40, %c0_77], %80 {strides = array<i32>} : memref<64x288xf32, #tpu.memory_space<vmem>>, vector<4x288xf32>,
    %82 = vector.extract_strided_slice %2 {offsets = [8, 0], sizes = [4, 288], strides = [1, 1]} : vector<16x288xf32> to vector<4x288xf32>
    %c276_i32_78 = arith.constant 276 : i32
    %83 = tpu.dynamic_rotate %82 by %c276_i32_78 dim 1 : vector<4x288xf32>, i32 -> vector<4x288xf32>
    %c40_79 = arith.constant 40 : index
    %c0_80 = arith.constant 0 : index
    %84 = vector.load %arg11[%c40_79, %c0_80] : memref<64x288xf32, #tpu.memory_space<vmem>>, vector<4x288xf32>
    tpu.vector_store %arg11[%c40_79, %c0_80], %83 {strides = array<i32>} : memref<64x288xf32, #tpu.memory_space<vmem>>, vector<4x288xf32>,
    %c2_81 = arith.constant 2 : index
    %c0_82 = arith.constant 0 : index
    %c0_83 = arith.constant 0 : index
    %85 = vector.load %arg2[%c2_81, %c0_82, %c0_83] : memref<4x4x288xbf16, #tpu.memory_space<vmem>>, vector<1x4x288xbf16>
    %86 = vector.shape_cast %85 : vector<1x4x288xbf16> to vector<4x288xbf16>
    %87 = arith.extf %86 : vector<4x288xbf16> to vector<4x288xf32>
    %c275_i32_84 = arith.constant 275 : i32
    %88 = tpu.dynamic_rotate %87 by %c275_i32_84 dim 1 : vector<4x288xf32>, i32 -> vector<4x288xf32>
    %c44 = arith.constant 44 : index
    %c0_85 = arith.constant 0 : index
    %89 = vector.load %arg10[%c44, %c0_85] : memref<64x288xf32, #tpu.memory_space<vmem>>, vector<4x288xf32>
    tpu.vector_store %arg10[%c44, %c0_85], %88 {strides = array<i32>} : memref<64x288xf32, #tpu.memory_space<vmem>>, vector<4x288xf32>,
    %90 = vector.extract_strided_slice %2 {offsets = [8, 0], sizes = [4, 288], strides = [1, 1]} : vector<16x288xf32> to vector<4x288xf32>
    %c275_i32_86 = arith.constant 275 : i32
    %91 = tpu.dynamic_rotate %90 by %c275_i32_86 dim 1 : vector<4x288xf32>, i32 -> vector<4x288xf32>
    %c44_87 = arith.constant 44 : index
    %c0_88 = arith.constant 0 : index
    %92 = vector.load %arg11[%c44_87, %c0_88] : memref<64x288xf32, #tpu.memory_space<vmem>>, vector<4x288xf32>
    tpu.vector_store %arg11[%c44_87, %c0_88], %91 {strides = array<i32>} : memref<64x288xf32, #tpu.memory_space<vmem>>, vector<4x288xf32>,
    %c3 = arith.constant 3 : index
    %c0_89 = arith.constant 0 : index
    %c0_90 = arith.constant 0 : index
    %93 = vector.load %arg2[%c3, %c0_89, %c0_90] : memref<4x4x288xbf16, #tpu.memory_space<vmem>>, vector<1x4x288xbf16>
    %94 = vector.shape_cast %93 : vector<1x4x288xbf16> to vector<4x288xbf16>
    %95 = arith.extf %94 : vector<4x288xbf16> to vector<4x288xf32>
    %c48 = arith.constant 48 : index
    %c0_91 = arith.constant 0 : index
    %96 = vector.load %arg10[%c48, %c0_91] : memref<64x288xf32, #tpu.memory_space<vmem>>, vector<4x288xf32>
    tpu.vector_store %arg10[%c48, %c0_91], %95 {strides = array<i32>} : memref<64x288xf32, #tpu.memory_space<vmem>>, vector<4x288xf32>,
    %97 = vector.extract_strided_slice %2 {offsets = [12, 0], sizes = [4, 288], strides = [1, 1]} : vector<16x288xf32> to vector<4x288xf32>
    %c48_92 = arith.constant 48 : index
    %c0_93 = arith.constant 0 : index
    %98 = vector.load %arg11[%c48_92, %c0_93] : memref<64x288xf32, #tpu.memory_space<vmem>>, vector<4x288xf32>
    tpu.vector_store %arg11[%c48_92, %c0_93], %97 {strides = array<i32>} : memref<64x288xf32, #tpu.memory_space<vmem>>, vector<4x288xf32>,
    %c3_94 = arith.constant 3 : index
    %c0_95 = arith.constant 0 : index
    %c0_96 = arith.constant 0 : index
    %99 = vector.load %arg2[%c3_94, %c0_95, %c0_96] : memref<4x4x288xbf16, #tpu.memory_space<vmem>>, vector<1x4x288xbf16>
    %100 = vector.shape_cast %99 : vector<1x4x288xbf16> to vector<4x288xbf16>
    %101 = arith.extf %100 : vector<4x288xbf16> to vector<4x288xf32>
    %c287_i32_97 = arith.constant 287 : i32
    %102 = tpu.dynamic_rotate %101 by %c287_i32_97 dim 1 : vector<4x288xf32>, i32 -> vector<4x288xf32>
    %c52 = arith.constant 52 : index
    %c0_98 = arith.constant 0 : index
    %103 = vector.load %arg10[%c52, %c0_98] : memref<64x288xf32, #tpu.memory_space<vmem>>, vector<4x288xf32>
    tpu.vector_store %arg10[%c52, %c0_98], %102 {strides = array<i32>} : memref<64x288xf32, #tpu.memory_space<vmem>>, vector<4x288xf32>,
    %104 = vector.extract_strided_slice %2 {offsets = [12, 0], sizes = [4, 288], strides = [1, 1]} : vector<16x288xf32> to vector<4x288xf32>
    %c287_i32_99 = arith.constant 287 : i32
    %105 = tpu.dynamic_rotate %104 by %c287_i32_99 dim 1 : vector<4x288xf32>, i32 -> vector<4x288xf32>
    %c52_100 = arith.constant 52 : index
    %c0_101 = arith.constant 0 : index
    %106 = vector.load %arg11[%c52_100, %c0_101] : memref<64x288xf32, #tpu.memory_space<vmem>>, vector<4x288xf32>
    tpu.vector_store %arg11[%c52_100, %c0_101], %105 {strides = array<i32>} : memref<64x288xf32, #tpu.memory_space<vmem>>, vector<4x288xf32>,
    %c3_102 = arith.constant 3 : index
    %c0_103 = arith.constant 0 : index
    %c0_104 = arith.constant 0 : index
    %107 = vector.load %arg2[%c3_102, %c0_103, %c0_104] : memref<4x4x288xbf16, #tpu.memory_space<vmem>>, vector<1x4x288xbf16>
    %108 = vector.shape_cast %107 : vector<1x4x288xbf16> to vector<4x288xbf16>
    %109 = arith.extf %108 : vector<4x288xbf16> to vector<4x288xf32>
    %c276_i32_105 = arith.constant 276 : i32
    %110 = tpu.dynamic_rotate %109 by %c276_i32_105 dim 1 : vector<4x288xf32>, i32 -> vector<4x288xf32>
    %c56 = arith.constant 56 : index
    %c0_106 = arith.constant 0 : index
    %111 = vector.load %arg10[%c56, %c0_106] : memref<64x288xf32, #tpu.memory_space<vmem>>, vector<4x288xf32>
    tpu.vector_store %arg10[%c56, %c0_106], %110 {strides = array<i32>} : memref<64x288xf32, #tpu.memory_space<vmem>>, vector<4x288xf32>,
    %112 = vector.extract_strided_slice %2 {offsets = [12, 0], sizes = [4, 288], strides = [1, 1]} : vector<16x288xf32> to vector<4x288xf32>
    %c276_i32_107 = arith.constant 276 : i32
    %113 = tpu.dynamic_rotate %112 by %c276_i32_107 dim 1 : vector<4x288xf32>, i32 -> vector<4x288xf32>
    %c56_108 = arith.constant 56 : index
    %c0_109 = arith.constant 0 : index
    %114 = vector.load %arg11[%c56_108, %c0_109] : memref<64x288xf32, #tpu.memory_space<vmem>>, vector<4x288xf32>
    tpu.vector_store %arg11[%c56_108, %c0_109], %113 {strides = array<i32>} : memref<64x288xf32, #tpu.memory_space<vmem>>, vector<4x288xf32>,
    %c3_110 = arith.constant 3 : index
    %c0_111 = arith.constant 0 : index
    %c0_112 = arith.constant 0 : index
    %115 = vector.load %arg2[%c3_110, %c0_111, %c0_112] : memref<4x4x288xbf16, #tpu.memory_space<vmem>>, vector<1x4x288xbf16>
    %116 = vector.shape_cast %115 : vector<1x4x288xbf16> to vector<4x288xbf16>
    %117 = arith.extf %116 : vector<4x288xbf16> to vector<4x288xf32>
    %c275_i32_113 = arith.constant 275 : i32
    %118 = tpu.dynamic_rotate %117 by %c275_i32_113 dim 1 : vector<4x288xf32>, i32 -> vector<4x288xf32>
    %c60 = arith.constant 60 : index
    %c0_114 = arith.constant 0 : index
    %119 = vector.load %arg10[%c60, %c0_114] : memref<64x288xf32, #tpu.memory_space<vmem>>, vector<4x288xf32>
    tpu.vector_store %arg10[%c60, %c0_114], %118 {strides = array<i32>} : memref<64x288xf32, #tpu.memory_space<vmem>>, vector<4x288xf32>,
    %120 = vector.extract_strided_slice %2 {offsets = [12, 0], sizes = [4, 288], strides = [1, 1]} : vector<16x288xf32> to vector<4x288xf32>
    %c275_i32_115 = arith.constant 275 : i32
    %121 = tpu.dynamic_rotate %120 by %c275_i32_115 dim 1 : vector<4x288xf32>, i32 -> vector<4x288xf32>
    %c60_116 = arith.constant 60 : index
    %c0_117 = arith.constant 0 : index
    %122 = vector.load %arg11[%c60_116, %c0_117] : memref<64x288xf32, #tpu.memory_space<vmem>>, vector<4x288xf32>
    tpu.vector_store %arg11[%c60_116, %c0_117], %121 {strides = array<i32>} : memref<64x288xf32, #tpu.memory_space<vmem>>, vector<4x288xf32>,
    %c0_118 = arith.constant 0 : index
    %c0_119 = arith.constant 0 : index
    %123 = vector.load %arg4[%c0_118, %c0_119] : memref<16x64xbf16, #tpu.memory_space<vmem>>, vector<16x64xbf16>
    %c0_120 = arith.constant 0 : index
    %c0_121 = arith.constant 0 : index
    %124 = vector.load %arg10[%c0_120, %c0_121] : memref<64x288xf32, #tpu.memory_space<vmem>>, vector<64x288xf32>
    %125 = arith.truncf %124 : vector<64x288xf32> to vector<64x288xbf16>
    %cst_122 = arith.constant dense<0.000000e+00> : vector<16x288xf32>
    %126 = tpu.matmul %123, %125, %cst_122 {dimension_numbers = #tpu.dot_dimension_numbers<[1], [0], [0], [1], [0, 0, 1, 1], [], []>} : vector<16x64xbf16>, vector<64x288xbf16>, vector<16x288xf32> -> vector<16x288xf32>
    %c0_123 = arith.constant 0 : index
    %c0_124 = arith.constant 0 : index
    %127 = vector.load %arg5[%c0_123, %c0_124] : memref<16x64xbf16, #tpu.memory_space<vmem>>, vector<16x64xbf16>
    %c0_125 = arith.constant 0 : index
    %c0_126 = arith.constant 0 : index
    %128 = vector.load %arg11[%c0_125, %c0_126] : memref<64x288xf32, #tpu.memory_space<vmem>>, vector<64x288xf32>
    %129 = arith.truncf %128 : vector<64x288xf32> to vector<64x288xbf16>
    %cst_127 = arith.constant dense<0.000000e+00> : vector<16x288xf32>
    %130 = tpu.matmul %127, %129, %cst_127 {dimension_numbers = #tpu.dot_dimension_numbers<[1], [0], [0], [1], [0, 0, 1, 1], [], []>} : vector<16x64xbf16>, vector<64x288xbf16>, vector<16x288xf32> -> vector<16x288xf32>
    %131 = arith.addf %126, %130 : vector<16x288xf32>
    %c0_128 = arith.constant 0 : index
    %c0_129 = arith.constant 0 : index
    %132 = vector.load %arg6[%c0_128, %c0_129] : memref<16x1xf32, #tpu.memory_space<vmem>>, vector<16x1xf32>
    %133 = vector.broadcast %132 : vector<16x1xf32> to vector<16x288xf32>
    %134 = arith.addf %131, %133 : vector<16x288xf32>
    %cst_130 = arith.constant 0.000000e+00 : f32
    %135 = vector.broadcast %cst_130 : f32 to vector<16x288xf32>
    %136 = arith.maximumf %134, %135 : vector<16x288xf32>
    %137 = vector.extract_strided_slice %136 {offsets = [0, 0], sizes = [4, 288], strides = [1, 1]} : vector<16x288xf32> to vector<4x288xf32>
    %c0_131 = arith.constant 0 : index
    %c0_132 = arith.constant 0 : index
    %138 = vector.load %arg12[%c0_131, %c0_132] : memref<64x288xf32, #tpu.memory_space<vmem>>, vector<4x288xf32>
    tpu.vector_store %arg12[%c0_131, %c0_132], %137 {strides = array<i32>} : memref<64x288xf32, #tpu.memory_space<vmem>>, vector<4x288xf32>,
    %139 = vector.extract_strided_slice %136 {offsets = [0, 0], sizes = [4, 288], strides = [1, 1]} : vector<16x288xf32> to vector<4x288xf32>
    %c287_i32_133 = arith.constant 287 : i32
    %140 = tpu.dynamic_rotate %139 by %c287_i32_133 dim 1 : vector<4x288xf32>, i32 -> vector<4x288xf32>
    %c4_134 = arith.constant 4 : index
    %c0_135 = arith.constant 0 : index
    %141 = vector.load %arg12[%c4_134, %c0_135] : memref<64x288xf32, #tpu.memory_space<vmem>>, vector<4x288xf32>
    tpu.vector_store %arg12[%c4_134, %c0_135], %140 {strides = array<i32>} : memref<64x288xf32, #tpu.memory_space<vmem>>, vector<4x288xf32>,
    %142 = vector.extract_strided_slice %136 {offsets = [0, 0], sizes = [4, 288], strides = [1, 1]} : vector<16x288xf32> to vector<4x288xf32>
    %c276_i32_136 = arith.constant 276 : i32
    %143 = tpu.dynamic_rotate %142 by %c276_i32_136 dim 1 : vector<4x288xf32>, i32 -> vector<4x288xf32>
    %c8_137 = arith.constant 8 : index
    %c0_138 = arith.constant 0 : index
    %144 = vector.load %arg12[%c8_137, %c0_138] : memref<64x288xf32, #tpu.memory_space<vmem>>, vector<4x288xf32>
    tpu.vector_store %arg12[%c8_137, %c0_138], %143 {strides = array<i32>} : memref<64x288xf32, #tpu.memory_space<vmem>>, vector<4x288xf32>,
    %145 = vector.extract_strided_slice %136 {offsets = [0, 0], sizes = [4, 288], strides = [1, 1]} : vector<16x288xf32> to vector<4x288xf32>
    %c275_i32_139 = arith.constant 275 : i32
    %146 = tpu.dynamic_rotate %145 by %c275_i32_139 dim 1 : vector<4x288xf32>, i32 -> vector<4x288xf32>
    %c12_140 = arith.constant 12 : index
    %c0_141 = arith.constant 0 : index
    %147 = vector.load %arg12[%c12_140, %c0_141] : memref<64x288xf32, #tpu.memory_space<vmem>>, vector<4x288xf32>
    tpu.vector_store %arg12[%c12_140, %c0_141], %146 {strides = array<i32>} : memref<64x288xf32, #tpu.memory_space<vmem>>, vector<4x288xf32>,
    %148 = vector.extract_strided_slice %136 {offsets = [4, 0], sizes = [4, 288], strides = [1, 1]} : vector<16x288xf32> to vector<4x288xf32>
    %c16_142 = arith.constant 16 : index
    %c0_143 = arith.constant 0 : index
    %149 = vector.load %arg12[%c16_142, %c0_143] : memref<64x288xf32, #tpu.memory_space<vmem>>, vector<4x288xf32>
    tpu.vector_store %arg12[%c16_142, %c0_143], %148 {strides = array<i32>} : memref<64x288xf32, #tpu.memory_space<vmem>>, vector<4x288xf32>,
    %150 = vector.extract_strided_slice %136 {offsets = [4, 0], sizes = [4, 288], strides = [1, 1]} : vector<16x288xf32> to vector<4x288xf32>
    %c287_i32_144 = arith.constant 287 : i32
    %151 = tpu.dynamic_rotate %150 by %c287_i32_144 dim 1 : vector<4x288xf32>, i32 -> vector<4x288xf32>
    %c20_145 = arith.constant 20 : index
    %c0_146 = arith.constant 0 : index
    %152 = vector.load %arg12[%c20_145, %c0_146] : memref<64x288xf32, #tpu.memory_space<vmem>>, vector<4x288xf32>
    tpu.vector_store %arg12[%c20_145, %c0_146], %151 {strides = array<i32>} : memref<64x288xf32, #tpu.memory_space<vmem>>, vector<4x288xf32>,
    %153 = vector.extract_strided_slice %136 {offsets = [4, 0], sizes = [4, 288], strides = [1, 1]} : vector<16x288xf32> to vector<4x288xf32>
    %c276_i32_147 = arith.constant 276 : i32
    %154 = tpu.dynamic_rotate %153 by %c276_i32_147 dim 1 : vector<4x288xf32>, i32 -> vector<4x288xf32>
    %c24_148 = arith.constant 24 : index
    %c0_149 = arith.constant 0 : index
    %155 = vector.load %arg12[%c24_148, %c0_149] : memref<64x288xf32, #tpu.memory_space<vmem>>, vector<4x288xf32>
    tpu.vector_store %arg12[%c24_148, %c0_149], %154 {strides = array<i32>} : memref<64x288xf32, #tpu.memory_space<vmem>>, vector<4x288xf32>,
    %156 = vector.extract_strided_slice %136 {offsets = [4, 0], sizes = [4, 288], strides = [1, 1]} : vector<16x288xf32> to vector<4x288xf32>
    %c275_i32_150 = arith.constant 275 : i32
    %157 = tpu.dynamic_rotate %156 by %c275_i32_150 dim 1 : vector<4x288xf32>, i32 -> vector<4x288xf32>
    %c28_151 = arith.constant 28 : index
    %c0_152 = arith.constant 0 : index
    %158 = vector.load %arg12[%c28_151, %c0_152] : memref<64x288xf32, #tpu.memory_space<vmem>>, vector<4x288xf32>
    tpu.vector_store %arg12[%c28_151, %c0_152], %157 {strides = array<i32>} : memref<64x288xf32, #tpu.memory_space<vmem>>, vector<4x288xf32>,
    %159 = vector.extract_strided_slice %136 {offsets = [8, 0], sizes = [4, 288], strides = [1, 1]} : vector<16x288xf32> to vector<4x288xf32>
    %c32_153 = arith.constant 32 : index
    %c0_154 = arith.constant 0 : index
    %160 = vector.load %arg12[%c32_153, %c0_154] : memref<64x288xf32, #tpu.memory_space<vmem>>, vector<4x288xf32>
    tpu.vector_store %arg12[%c32_153, %c0_154], %159 {strides = array<i32>} : memref<64x288xf32, #tpu.memory_space<vmem>>, vector<4x288xf32>,
    %161 = vector.extract_strided_slice %136 {offsets = [8, 0], sizes = [4, 288], strides = [1, 1]} : vector<16x288xf32> to vector<4x288xf32>
    %c287_i32_155 = arith.constant 287 : i32
    %162 = tpu.dynamic_rotate %161 by %c287_i32_155 dim 1 : vector<4x288xf32>, i32 -> vector<4x288xf32>
    %c36_156 = arith.constant 36 : index
    %c0_157 = arith.constant 0 : index
    %163 = vector.load %arg12[%c36_156, %c0_157] : memref<64x288xf32, #tpu.memory_space<vmem>>, vector<4x288xf32>
    tpu.vector_store %arg12[%c36_156, %c0_157], %162 {strides = array<i32>} : memref<64x288xf32, #tpu.memory_space<vmem>>, vector<4x288xf32>,
    %164 = vector.extract_strided_slice %136 {offsets = [8, 0], sizes = [4, 288], strides = [1, 1]} : vector<16x288xf32> to vector<4x288xf32>
    %c276_i32_158 = arith.constant 276 : i32
    %165 = tpu.dynamic_rotate %164 by %c276_i32_158 dim 1 : vector<4x288xf32>, i32 -> vector<4x288xf32>
    %c40_159 = arith.constant 40 : index
    %c0_160 = arith.constant 0 : index
    %166 = vector.load %arg12[%c40_159, %c0_160] : memref<64x288xf32, #tpu.memory_space<vmem>>, vector<4x288xf32>
    tpu.vector_store %arg12[%c40_159, %c0_160], %165 {strides = array<i32>} : memref<64x288xf32, #tpu.memory_space<vmem>>, vector<4x288xf32>,
    %167 = vector.extract_strided_slice %136 {offsets = [8, 0], sizes = [4, 288], strides = [1, 1]} : vector<16x288xf32> to vector<4x288xf32>
    %c275_i32_161 = arith.constant 275 : i32
    %168 = tpu.dynamic_rotate %167 by %c275_i32_161 dim 1 : vector<4x288xf32>, i32 -> vector<4x288xf32>
    %c44_162 = arith.constant 44 : index
    %c0_163 = arith.constant 0 : index
    %169 = vector.load %arg12[%c44_162, %c0_163] : memref<64x288xf32, #tpu.memory_space<vmem>>, vector<4x288xf32>
    tpu.vector_store %arg12[%c44_162, %c0_163], %168 {strides = array<i32>} : memref<64x288xf32, #tpu.memory_space<vmem>>, vector<4x288xf32>,
    %170 = vector.extract_strided_slice %136 {offsets = [12, 0], sizes = [4, 288], strides = [1, 1]} : vector<16x288xf32> to vector<4x288xf32>
    %c48_164 = arith.constant 48 : index
    %c0_165 = arith.constant 0 : index
    %171 = vector.load %arg12[%c48_164, %c0_165] : memref<64x288xf32, #tpu.memory_space<vmem>>, vector<4x288xf32>
    tpu.vector_store %arg12[%c48_164, %c0_165], %170 {strides = array<i32>} : memref<64x288xf32, #tpu.memory_space<vmem>>, vector<4x288xf32>,
    %172 = vector.extract_strided_slice %136 {offsets = [12, 0], sizes = [4, 288], strides = [1, 1]} : vector<16x288xf32> to vector<4x288xf32>
    %c287_i32_166 = arith.constant 287 : i32
    %173 = tpu.dynamic_rotate %172 by %c287_i32_166 dim 1 : vector<4x288xf32>, i32 -> vector<4x288xf32>
    %c52_167 = arith.constant 52 : index
    %c0_168 = arith.constant 0 : index
    %174 = vector.load %arg12[%c52_167, %c0_168] : memref<64x288xf32, #tpu.memory_space<vmem>>, vector<4x288xf32>
    tpu.vector_store %arg12[%c52_167, %c0_168], %173 {strides = array<i32>} : memref<64x288xf32, #tpu.memory_space<vmem>>, vector<4x288xf32>,
    %175 = vector.extract_strided_slice %136 {offsets = [12, 0], sizes = [4, 288], strides = [1, 1]} : vector<16x288xf32> to vector<4x288xf32>
    %c276_i32_169 = arith.constant 276 : i32
    %176 = tpu.dynamic_rotate %175 by %c276_i32_169 dim 1 : vector<4x288xf32>, i32 -> vector<4x288xf32>
    %c56_170 = arith.constant 56 : index
    %c0_171 = arith.constant 0 : index
    %177 = vector.load %arg12[%c56_170, %c0_171] : memref<64x288xf32, #tpu.memory_space<vmem>>, vector<4x288xf32>
    tpu.vector_store %arg12[%c56_170, %c0_171], %176 {strides = array<i32>} : memref<64x288xf32, #tpu.memory_space<vmem>>, vector<4x288xf32>,
    %178 = vector.extract_strided_slice %136 {offsets = [12, 0], sizes = [4, 288], strides = [1, 1]} : vector<16x288xf32> to vector<4x288xf32>
    %c275_i32_172 = arith.constant 275 : i32
    %179 = tpu.dynamic_rotate %178 by %c275_i32_172 dim 1 : vector<4x288xf32>, i32 -> vector<4x288xf32>
    %c60_173 = arith.constant 60 : index
    %c0_174 = arith.constant 0 : index
    %180 = vector.load %arg12[%c60_173, %c0_174] : memref<64x288xf32, #tpu.memory_space<vmem>>, vector<4x288xf32>
    tpu.vector_store %arg12[%c60_173, %c0_174], %179 {strides = array<i32>} : memref<64x288xf32, #tpu.memory_space<vmem>>, vector<4x288xf32>,
    %c0_175 = arith.constant 0 : index
    %c0_176 = arith.constant 0 : index
    %181 = vector.load %arg7[%c0_175, %c0_176] : memref<16x64xbf16, #tpu.memory_space<vmem>>, vector<16x64xbf16>
    %c0_177 = arith.constant 0 : index
    %c0_178 = arith.constant 0 : index
    %182 = vector.load %arg12[%c0_177, %c0_178] : memref<64x288xf32, #tpu.memory_space<vmem>>, vector<64x288xf32>
    %183 = arith.truncf %182 : vector<64x288xf32> to vector<64x288xbf16>
    %cst_179 = arith.constant dense<0.000000e+00> : vector<16x288xf32>
    %184 = tpu.matmul %181, %183, %cst_179 {dimension_numbers = #tpu.dot_dimension_numbers<[1], [0], [0], [1], [0, 0, 1, 1], [], []>} : vector<16x64xbf16>, vector<64x288xbf16>, vector<16x288xf32> -> vector<16x288xf32>
    %c0_180 = arith.constant 0 : index
    %c0_181 = arith.constant 0 : index
    %185 = vector.load %arg8[%c0_180, %c0_181] : memref<16x1xf32, #tpu.memory_space<vmem>>, vector<16x1xf32>
    %186 = vector.broadcast %185 : vector<16x1xf32> to vector<16x288xf32>
    %187 = arith.addf %184, %186 : vector<16x288xf32>
    %cst_182 = arith.constant 0.000000e+00 : f32
    %188 = vector.broadcast %cst_182 : f32 to vector<16x288xf32>
    %189 = arith.maximumf %187, %188 : vector<16x288xf32>
    %c0_183 = arith.constant 0 : index
    %c0_184 = arith.constant 0 : index
    %190 = vector.load %arg9[%c0_183, %c0_184] : memref<16x288xf32, #tpu.memory_space<vmem>>, vector<16x288xf32>
    tpu.vector_store %arg9[%c0_183, %c0_184], %189 {strides = array<i32>} : memref<16x288xf32, #tpu.memory_space<vmem>>, vector<16x288xf32>,
    return
  }
  func.func @transform_0(%arg0: i32) -> (i32, i32) {
    %c0_i32 = arith.constant 0 : i32
    %c0_i32_0 = arith.constant 0 : i32
    %c0_i32_1 = arith.constant 0 : i32
    return %c0_i32, %c0_i32_0 : i32, i32
  }
  func.func @transform_1(%arg0: i32) -> (i32, i32, i32) {
    %c0_i32 = arith.constant 0 : i32
    %c0_i32_0 = arith.constant 0 : i32
    %c0_i32_1 = arith.constant 0 : i32
    %c0_i32_2 = arith.constant 0 : i32
    return %c0_i32, %c0_i32_0, %c0_i32_1 : i32, i32, i32
  }
  func.func @transform_2(%arg0: i32) -> (i32, i32) {
    %c0_i32 = arith.constant 0 : i32
    %c0_i32_0 = arith.constant 0 : i32
    %c0_i32_1 = arith.constant 0 : i32
    return %c0_i32, %c0_i32_0 : i32, i32
  }
  func.func @transform_3(%arg0: i32) -> (i32, i32) {
    %c0_i32 = arith.constant 0 : i32
    %c0_i32_0 = arith.constant 0 : i32
    %c0_i32_1 = arith.constant 0 : i32
    return %c0_i32, %c0_i32_0 : i32, i32
  }
  func.func @transform_4(%arg0: i32) -> (i32, i32) {
    %c0_i32 = arith.constant 0 : i32
    %c0_i32_0 = arith.constant 0 : i32
    %c0_i32_1 = arith.constant 0 : i32
    return %c0_i32, %c0_i32_0 : i32, i32
  }
  func.func @transform_5(%arg0: i32) -> (i32, i32) {
    %c0_i32 = arith.constant 0 : i32
    %c0_i32_0 = arith.constant 0 : i32
    %c0_i32_1 = arith.constant 0 : i32
    return %c0_i32, %c0_i32_0 : i32, i32
  }
  func.func @transform_6(%arg0: i32) -> (i32, i32) {
    %c0_i32 = arith.constant 0 : i32
    %c0_i32_0 = arith.constant 0 : i32
    %c0_i32_1 = arith.constant 0 : i32
    return %c0_i32, %c0_i32_0 : i32, i32
  }
  func.func @transform_7(%arg0: i32) -> (i32, i32) {
    %c0_i32 = arith.constant 0 : i32
    %c0_i32_0 = arith.constant 0 : i32
    %c0_i32_1 = arith.constant 0 : i32
    return %c0_i32, %c0_i32_0 : i32, i32
  }
  func.func @transform_8(%arg0: i32) -> (i32, i32) {
    %c0_i32 = arith.constant 0 : i32
    %c0_i32_0 = arith.constant 0 : i32
    %c0_i32_1 = arith.constant 0 : i32
    return %c0_i32, %c0_i32_0 : i32, i32
  }
}

</mosaic_0001>

<llo_original>
// kernel: unet_decoder_forward.2
$region0: #{unet_decoder_forward.2}
  #allocation0 [shape = 'u32[]', space=smem, size = 0x4, offset = 0x4, fixed_abs, tag = 'smem constant byte address 0x4 - core index']
  #allocation1 [shape = 'u32[144,128]{1,0:T(1,128)}', space=vmem, size = 0x12000, scoped, tag = 'internal scratch']
  #allocation2 [shape = 'f32[128,128]{1,0:T(8,128)}', space=vmem, size = 0x10000, scoped, tag = 'scratch operand']
  #allocation3 [shape = 'f32[128,128]{1,0:T(8,128)}', space=vmem, size = 0x10000, scoped, tag = 'scratch operand']
  #allocation4 [shape = 'f32[128,128]{1,0:T(8,128)}', space=vmem, size = 0x10000, scoped, tag = 'scratch operand']
  %s0 = inlined_call_operand.vmem [shape: bf16[16,128], index: 0, kind: input, shape index: {}]
  %s1 = inlined_call_operand.vmem [shape: bf16[4,8,128], index: 1, kind: input, shape index: {}]
  %s2 = inlined_call_operand.vmem [shape: bf16[32,16], index: 2, kind: input, shape index: {}]
  %s3 = inlined_call_operand.vmem [shape: bf16[32,128], index: 3, kind: input, shape index: {}]
  %s4 = inlined_call_operand.vmem [shape: bf16[32,128], index: 4, kind: input, shape index: {}]
  %s5 = inlined_call_operand.vmem [shape: f32[32,1], index: 5, kind: input, shape index: {}]
  %s6 = inlined_call_operand.vmem [shape: bf16[32,128], index: 6, kind: input, shape index: {}]
  %s7 = inlined_call_operand.vmem [shape: f32[32,1], index: 7, kind: input, shape index: {}]
  %s8 = inlined_call_operand.vmem [shape: f32[32,128], index: 8, kind: output, shape index: {}]
  %s9 = sld [smem:[#allocation0]]
  $region42: #{unet_decoder_forward.2} parent=0
    _
  %s11 = ssub.s32 1, %s9
  %s12 = scalar_select 0, %s11, %s9
  // Predicated region
  $region2: #{unet_decoder_forward.2} parent=0 // pred_check
    _
  $region3: #{unet_decoder_forward.2} parent=0 // pred_check_branch
    %14 = sbr.rel (0) target = $region5
  $region4: #{unet_decoder_forward.2} parent=0 // pred_region
    _
  $region5: #{unet_decoder_forward.2} parent=0 // pred_fallthru
    _
  // Predicated region
  $region6: #{unet_decoder_forward.2} parent=0 // pred_check
    _
  $region7: #{unet_decoder_forward.2} parent=0 // pred_check_branch
    %16 = sbr.rel (0) target = $region9
  $region8: #{unet_decoder_forward.2} parent=0 // pred_region
    _
  $region9: #{unet_decoder_forward.2} parent=0 // pred_fallthru
    _
  // Predicated region
  $region10: #{unet_decoder_forward.2} parent=0 // pred_check
    _
  $region11: #{unet_decoder_forward.2} parent=0 // pred_check_branch
    %18 = sbr.rel (0) target = $region13
  $region12: #{unet_decoder_forward.2} parent=0 // pred_region
    _
  $region13: #{unet_decoder_forward.2} parent=0 // pred_fallthru
    _
  // Predicated region
  $region14: #{unet_decoder_forward.2} parent=0 // pred_check
    _
  $region15: #{unet_decoder_forward.2} parent=0 // pred_check_branch
    %20 = sbr.rel (0) target = $region17
  $region16: #{unet_decoder_forward.2} parent=0 // pred_region
    _
  $region17: #{unet_decoder_forward.2} parent=0 // pred_fallthru
    _
  // Predicated region
  $region18: #{unet_decoder_forward.2} parent=0 // pred_check
    _
  $region19: #{unet_decoder_forward.2} parent=0 // pred_check_branch
    %22 = sbr.rel (0) target = $region21
  $region20: #{unet_decoder_forward.2} parent=0 // pred_region
    _
  $region21: #{unet_decoder_forward.2} parent=0 // pred_fallthru
    _
  // Predicated region
  $region22: #{unet_decoder_forward.2} parent=0 // pred_check
    _
  $region23: #{unet_decoder_forward.2} parent=0 // pred_check_branch
    %24 = sbr.rel (0) target = $region25
  $region24: #{unet_decoder_forward.2} parent=0 // pred_region
    _
  $region25: #{unet_decoder_forward.2} parent=0 // pred_fallthru
    _
  // Predicated region
  $region26: #{unet_decoder_forward.2} parent=0 // pred_check
    _
  $region27: #{unet_decoder_forward.2} parent=0 // pred_check_branch
    %26 = sbr.rel (0) target = $region29
  $region28: #{unet_decoder_forward.2} parent=0 // pred_region
    _
  $region29: #{unet_decoder_forward.2} parent=0 // pred_fallthru
    _
  // Predicated region
  $region30: #{unet_decoder_forward.2} parent=0 // pred_check
    _
  $region31: #{unet_decoder_forward.2} parent=0 // pred_check_branch
    %28 = sbr.rel (0) target = $region33
  $region32: #{unet_decoder_forward.2} parent=0 // pred_region
    _
  $region33: #{unet_decoder_forward.2} parent=0 // pred_fallthru
    _
  %v30 = vld [vmem:[%s2] sm:$0xf]
  %v31 = vld [vmem:[%s2 + $0x4] sm:$0xf]
  %v32 = vld [vmem:[%s2 + $0x8] sm:$0xf]
  %v33 = vld [vmem:[%s2 + $0xc] sm:$0xf]
  %v34 = vld [vmem:[%s0] sm:$0xf]
  %v35 = vld [vmem:[%s0 + $0x4] sm:$0xf]
  %v40 = vunpack.c.l.b16 %v30
  %v41 = vunpack.c.l.b16 %v31
  %v42 = vunpack.c.l.b16 %v32
  %v43 = vunpack.c.l.b16 %v33
  %v44 = vpack.c.b16 %v41, %v40
  %v45 = vpack.c.b16 %v43, %v42
  %v48 = vunpack.c.l.b16 %v34
  %v49 = vunpack.c.l.b16 %v35
  %v50 = vpack.c.b16 %v49, %v48
  %vm52 = vcmask 130048
  %v54 = vsel %vm52, %v44, 0
  %v57 = vsel %vm52, %v45, 0
  %59 = vmatprep.subr.bf16.mxu0 0
  %60 = vmatpush1.bf16.msra.mxu0 %v50
  %61 = vmatprep.subr.bf16.mxu0 0
  %62 = vmatpush1.bf16.msra.mxu0 0
  %63 = vmatprep.subr.bf16.mxu0 0
  %64 = vmatpush1.bf16.msra.mxu0 0
  %65 = vmatprep.subr.bf16.mxu0 0
  %66 = vmatpush1.bf16.msra.mxu0 0
  %67 = vmatprep.subr.bf16.mxu0 0
  %68 = vmatpush1.bf16.msra.mxu0 0
  %69 = vmatprep.subr.bf16.mxu0 0
  %70 = vmatpush1.bf16.msra.mxu0 0
  %71 = vmatprep.subr.bf16.mxu0 0
  %72 = vmatpush1.bf16.msra.mxu0 0
  %73 = vmatprep.subr.bf16.mxu0 0
  %74 = vmatpush1.bf16.msra.mxu0 0
  %75 = vmatprep.subr.bf16.mxu0 0
  %76 = vmatpush1.bf16.msra.mxu0 0
  %77 = vmatprep.subr.bf16.mxu0 0
  %78 = vmatpush1.bf16.msra.mxu0 0
  %79 = vmatprep.subr.bf16.mxu0 0
  %80 = vmatpush1.bf16.msra.mxu0 0
  %81 = vmatprep.subr.bf16.mxu0 0
  %82 = vmatpush1.bf16.msra.mxu0 0
  %83 = vmatprep.subr.bf16.mxu0 0
  %84 = vmatpush1.bf16.msra.mxu0 0
  %85 = vmatprep.subr.bf16.mxu0 0
  %86 = vmatpush1.bf16.msra.mxu0 0
  %87 = vmatprep.subr.bf16.mxu0 0
  %88 = vmatpush1.bf16.msra.mxu0 0
  %89 = vmatprep.subr.bf16.mxu0 0
  %90 = vmatpush1.bf16.msra.mxu0 0
  %91 = vmatprep.mubr.bf16.mxu0 0
  %92 = vmatmul.mubr.bf16.gmra.mrb[0].mxu0 %v54
  %v93 = vpop.f32.mrb[0].mxu0
  %v94 = vadd.f32 0.0, %v93
  %v95 = vpop.f32.mrb[0].mxu0
  %v96 = vpop.f32.mrb[0].mxu0
  %v97 = vadd.f32 0.0, %v96
  %v98 = vpop.f32.mrb[0].mxu0
  %99 = vmatprep.mubr.bf16.mxu0 0
  %100 = vmatmul.mubr.bf16.gmra.mrb[0].mxu0 %v57
  %v101 = vpop.f32.mrb[0].mxu0
  %v102 = vadd.f32 0.0, %v101
  %v103 = vpop.f32.mrb[0].mxu0
  %v104 = vpop.f32.mrb[0].mxu0
  %v105 = vadd.f32 0.0, %v104
  %v106 = vpop.f32.mrb[0].mxu0
  %107 = vdwg.mxu0
  %v108 = vld [vmem:[%s1] sm:$0xf]
  %v109 = vunpack.c.l.bf16 %v108
  %110 = vst [vmem:[#allocation2] sm:$0xff] %v109
  %111 = vst [vmem:[#allocation3] sm:$0xff] %v94
  %v112 = vld [vmem:[%s1] sm:$0xf]
  %v113 = vunpack.c.l.bf16 %v112
  %114 = vrot.lane.b32.xlu0 %v113, 127
  %v115 = vpop.permute.xlu0 %114
  %116 = vst [vmem:[#allocation2 + $0x8] sm:$0xff] %v115
  %117 = vrot.lane.b32.xlu0 %v94, 127
  %v118 = vpop.permute.xlu0 %117
  %119 = vst [vmem:[#allocation3 + $0x8] sm:$0xff] %v118
  %v120 = vld [vmem:[%s1] sm:$0xf]
  %v121 = vunpack.c.l.bf16 %v120
  %122 = vrot.lane.b32.xlu0 %v121, 120
  %v123 = vpop.permute.xlu0 %122
  %124 = vst [vmem:[#allocation2 + $0x10] sm:$0xff] %v123
  %125 = vrot.lane.b32.xlu0 %v94, 120
  %v126 = vpop.permute.xlu0 %125
  %127 = vst [vmem:[#allocation3 + $0x10] sm:$0xff] %v126
  %v128 = vld [vmem:[%s1] sm:$0xf]
  %v129 = vunpack.c.l.bf16 %v128
  %130 = vrot.lane.b32.xlu0 %v129, 119
  %v131 = vpop.permute.xlu0 %130
  %132 = vst [vmem:[#allocation2 + $0x18] sm:$0xff] %v131
  %133 = vrot.lane.b32.xlu0 %v94, 119
  %v134 = vpop.permute.xlu0 %133
  %135 = vst [vmem:[#allocation3 + $0x18] sm:$0xff] %v134
  %s136 = scalar_lea.vmem %s1, 4
  %v137 = vld [vmem:[%s136] sm:$0xf]
  %v138 = vunpack.c.l.bf16 %v137
  %139 = vst [vmem:[#allocation2 + $0x20] sm:$0xff] %v138
  %140 = vst [vmem:[#allocation3 + $0x20] sm:$0xff] %v97
  %v141 = vld [vmem:[%s136] sm:$0xf]
  %v142 = vunpack.c.l.bf16 %v141
  %143 = vrot.lane.b32.xlu0 %v142, 127
  %v144 = vpop.permute.xlu0 %143
  %145 = vst [vmem:[#allocation2 + $0x28] sm:$0xff] %v144
  %146 = vrot.lane.b32.xlu0 %v97, 127
  %v147 = vpop.permute.xlu0 %146
  %148 = vst [vmem:[#allocation3 + $0x28] sm:$0xff] %v147
  %v149 = vld [vmem:[%s136] sm:$0xf]
  %v150 = vunpack.c.l.bf16 %v149
  %151 = vrot.lane.b32.xlu0 %v150, 120
  %v152 = vpop.permute.xlu0 %151
  %153 = vst [vmem:[#allocation2 + $0x30] sm:$0xff] %v152
  %154 = vrot.lane.b32.xlu0 %v97, 120
  %v155 = vpop.permute.xlu0 %154
  %156 = vst [vmem:[#allocation3 + $0x30] sm:$0xff] %v155
  %v157 = vld [vmem:[%s136] sm:$0xf]
  %v158 = vunpack.c.l.bf16 %v157
  %159 = vrot.lane.b32.xlu0 %v158, 119
  %v160 = vpop.permute.xlu0 %159
  %161 = vst [vmem:[#allocation2 + $0x38] sm:$0xff] %v160
  %162 = vrot.lane.b32.xlu0 %v97, 119
  %v163 = vpop.permute.xlu0 %162
  %164 = vst [vmem:[#allocation3 + $0x38] sm:$0xff] %v163
  %s165 = scalar_lea.vmem %s1, 8
  %v166 = vld [vmem:[%s165] sm:$0xf]
  %v167 = vunpack.c.l.bf16 %v166
  %168 = vst [vmem:[#allocation2 + $0x40] sm:$0xff] %v167
  %169 = vst [vmem:[#allocation3 + $0x40] sm:$0xff] %v102
  %v170 = vld [vmem:[%s165] sm:$0xf]
  %v171 = vunpack.c.l.bf16 %v170
  %172 = vrot.lane.b32.xlu0 %v171, 127
  %v173 = vpop.permute.xlu0 %172
  %174 = vst [vmem:[#allocation2 + $0x48] sm:$0xff] %v173
  %175 = vrot.lane.b32.xlu0 %v102, 127
  %v176 = vpop.permute.xlu0 %175
  %177 = vst [vmem:[#allocation3 + $0x48] sm:$0xff] %v176
  %v178 = vld [vmem:[%s165] sm:$0xf]
  %v179 = vunpack.c.l.bf16 %v178
  %180 = vrot.lane.b32.xlu0 %v179, 120
  %v181 = vpop.permute.xlu0 %180
  %182 = vst [vmem:[#allocation2 + $0x50] sm:$0xff] %v181
  %183 = vrot.lane.b32.xlu0 %v102, 120
  %v184 = vpop.permute.xlu0 %183
  %185 = vst [vmem:[#allocation3 + $0x50] sm:$0xff] %v184
  %v186 = vld [vmem:[%s165] sm:$0xf]
  %v187 = vunpack.c.l.bf16 %v186
  %188 = vrot.lane.b32.xlu0 %v187, 119
  %v189 = vpop.permute.xlu0 %188
  %190 = vst [vmem:[#allocation2 + $0x58] sm:$0xff] %v189
  %191 = vrot.lane.b32.xlu0 %v102, 119
  %v192 = vpop.permute.xlu0 %191
  %193 = vst [vmem:[#allocation3 + $0x58] sm:$0xff] %v192
  %s194 = scalar_lea.vmem %s1, 12
  %v195 = vld [vmem:[%s194] sm:$0xf]
  %v196 = vunpack.c.l.bf16 %v195
  %197 = vst [vmem:[#allocation2 + $0x60] sm:$0xff] %v196
  %198 = vst [vmem:[#allocation3 + $0x60] sm:$0xff] %v105
  %v199 = vld [vmem:[%s194] sm:$0xf]
  %v200 = vunpack.c.l.bf16 %v199
  %201 = vrot.lane.b32.xlu0 %v200, 127
  %v202 = vpop.permute.xlu0 %201
  %203 = vst [vmem:[#allocation2 + $0x68] sm:$0xff] %v202
  %204 = vrot.lane.b32.xlu0 %v105, 127
  %v205 = vpop.permute.xlu0 %204
  %206 = vst [vmem:[#allocation3 + $0x68] sm:$0xff] %v205
  %v207 = vld [vmem:[%s194] sm:$0xf]
  %v208 = vunpack.c.l.bf16 %v207
  %209 = vrot.lane.b32.xlu0 %v208, 120
  %v210 = vpop.permute.xlu0 %209
  %211 = vst [vmem:[#allocation2 + $0x70] sm:$0xff] %v210
  %212 = vrot.lane.b32.xlu0 %v105, 120
  %v213 = vpop.permute.xlu0 %212
  %214 = vst [vmem:[#allocation3 + $0x70] sm:$0xff] %v213
  %v215 = vld [vmem:[%s194] sm:$0xf]
  %v216 = vunpack.c.l.bf16 %v215
  %217 = vrot.lane.b32.xlu0 %v216, 119
  %v218 = vpop.permute.xlu0 %217
  %219 = vst [vmem:[#allocation2 + $0x78] sm:$0xff] %v218
  %220 = vrot.lane.b32.xlu0 %v105, 119
  %v221 = vpop.permute.xlu0 %220
  %222 = vst [vmem:[#allocation3 + $0x78] sm:$0xff] %v221
  %v223 = vld [vmem:[%s3] sm:$0xf]
  %v224 = vld [vmem:[%s3 + $0x4] sm:$0xf]
  %v225 = vld [vmem:[%s3 + $0x8] sm:$0xf]
  %v226 = vld [vmem:[%s3 + $0xc] sm:$0xf]
  %v227 = vld [vmem:[#allocation2] sm:$0xff]
  %v228 = vld [vmem:[#allocation2 + $0x8] sm:$0xff]
  %v229 = vld [vmem:[#allocation2 + $0x10] sm:$0xff]
  %v230 = vld [vmem:[#allocation2 + $0x18] sm:$0xff]
  %v231 = vld [vmem:[#allocation2 + $0x20] sm:$0xff]
  %v232 = vld [vmem:[#allocation2 + $0x28] sm:$0xff]
  %v233 = vld [vmem:[#allocation2 + $0x30] sm:$0xff]
  %v234 = vld [vmem:[#allocation2 + $0x38] sm:$0xff]
  %v235 = vld [vmem:[#allocation2 + $0x40] sm:$0xff]
  %v236 = vld [vmem:[#allocation2 + $0x48] sm:$0xff]
  %v237 = vld [vmem:[#allocation2 + $0x50] sm:$0xff]
  %v238 = vld [vmem:[#allocation2 + $0x58] sm:$0xff]
  %v239 = vld [vmem:[#allocation2 + $0x60] sm:$0xff]
  %v240 = vld [vmem:[#allocation2 + $0x68] sm:$0xff]
  %v241 = vld [vmem:[#allocation2 + $0x70] sm:$0xff]
  %v242 = vld [vmem:[#allocation2 + $0x78] sm:$0xff]
  %v243 = vpack.c.bf16 %v228, %v227
  %v244 = vpack.c.bf16 %v230, %v229
  %v245 = vpack.c.bf16 %v232, %v231
  %v246 = vpack.c.bf16 %v234, %v233
  %v247 = vpack.c.bf16 %v236, %v235
  %v248 = vpack.c.bf16 %v238, %v237
  %v249 = vpack.c.bf16 %v240, %v239
  %v250 = vpack.c.bf16 %v242, %v241
  %v251 = vld [vmem:[%s4] sm:$0xf]
  %v252 = vld [vmem:[%s4 + $0x4] sm:$0xf]
  %v253 = vld [vmem:[%s4 + $0x8] sm:$0xf]
  %v254 = vld [vmem:[%s4 + $0xc] sm:$0xf]
  %v255 = vld [vmem:[#allocation3] sm:$0xff]
  %v256 = vld [vmem:[#allocation3 + $0x8] sm:$0xff]
  %v257 = vld [vmem:[#allocation3 + $0x10] sm:$0xff]
  %v258 = vld [vmem:[#allocation3 + $0x18] sm:$0xff]
  %v259 = vld [vmem:[#allocation3 + $0x20] sm:$0xff]
  %v260 = vld [vmem:[#allocation3 + $0x28] sm:$0xff]
  %v261 = vld [vmem:[#allocation3 + $0x30] sm:$0xff]
  %v262 = vld [vmem:[#allocation3 + $0x38] sm:$0xff]
  %v263 = vld [vmem:[#allocation3 + $0x40] sm:$0xff]
  %v264 = vld [vmem:[#allocation3 + $0x48] sm:$0xff]
  %v265 = vld [vmem:[#allocation3 + $0x50] sm:$0xff]
  %v266 = vld [vmem:[#allocation3 + $0x58] sm:$0xff]
  %v267 = vld [vmem:[#allocation3 + $0x60] sm:$0xff]
  %v268 = vld [vmem:[#allocation3 + $0x68] sm:$0xff]
  %v269 = vld [vmem:[#allocation3 + $0x70] sm:$0xff]
  %v270 = vld [vmem:[#allocation3 + $0x78] sm:$0xff]
  %v271 = vpack.c.bf16 %v256, %v255
  %v272 = vpack.c.bf16 %v258, %v257
  %v273 = vpack.c.bf16 %v260, %v259
  %v274 = vpack.c.bf16 %v262, %v261
  %v275 = vpack.c.bf16 %v264, %v263
  %v276 = vpack.c.bf16 %v266, %v265
  %v277 = vpack.c.bf16 %v268, %v267
  %v278 = vpack.c.bf16 %v270, %v269
  %v283 = vunpack.c.l.b16 %v251
  %v284 = vunpack.c.l.b16 %v252
  %v285 = vunpack.c.l.b16 %v253
  %v286 = vunpack.c.l.b16 %v254
  %v287 = vpack.c.b16 %v284, %v283
  %v288 = vpack.c.b16 %v286, %v285
  %291 = vmatprep.subr.bf16.mxu0 0
  %292 = vmatpush1.bf16.msra.mxu0 %v271
  %293 = vmatprep.subr.bf16.mxu0 0
  %294 = vmatpush1.bf16.msra.mxu0 %v272
  %295 = vmatprep.subr.bf16.mxu0 0
  %296 = vmatpush1.bf16.msra.mxu0 %v273
  %297 = vmatprep.subr.bf16.mxu0 0
  %298 = vmatpush1.bf16.msra.mxu0 %v274
  %299 = vmatprep.subr.bf16.mxu0 0
  %300 = vmatpush1.bf16.msra.mxu0 %v275
  %301 = vmatprep.subr.bf16.mxu0 0
  %302 = vmatpush1.bf16.msra.mxu0 %v276
  %303 = vmatprep.subr.bf16.mxu0 0
  %304 = vmatpush1.bf16.msra.mxu0 %v277
  %305 = vmatprep.subr.bf16.mxu0 0
  %306 = vmatpush1.bf16.msra.mxu0 %v278
  %307 = vmatprep.subr.bf16.mxu0 0
  %308 = vmatpush1.bf16.msra.mxu0 0
  %309 = vmatprep.subr.bf16.mxu0 0
  %310 = vmatpush1.bf16.msra.mxu0 0
  %311 = vmatprep.subr.bf16.mxu0 0
  %312 = vmatpush1.bf16.msra.mxu0 0
  %313 = vmatprep.subr.bf16.mxu0 0
  %314 = vmatpush1.bf16.msra.mxu0 0
  %315 = vmatprep.subr.bf16.mxu0 0
  %316 = vmatpush1.bf16.msra.mxu0 0
  %317 = vmatprep.subr.bf16.mxu0 0
  %318 = vmatpush1.bf16.msra.mxu0 0
  %319 = vmatprep.subr.bf16.mxu0 0
  %320 = vmatpush1.bf16.msra.mxu0 0
  %321 = vmatprep.subr.bf16.mxu0 0
  %322 = vmatpush1.bf16.msra.mxu0 0
  %323 = vmatprep.mubr.bf16.mxu0 0
  %324 = vmatmul.mubr.bf16.gmra.mrb[0].mxu0 %v287
  %v325 = vpop.f32.mrb[0].mxu0
  %v326 = vadd.f32 0.0, %v325
  %v327 = vpop.f32.mrb[0].mxu0
  %v328 = vpop.f32.mrb[0].mxu0
  %v329 = vadd.f32 0.0, %v328
  %v330 = vpop.f32.mrb[0].mxu0
  %331 = vmatprep.mubr.bf16.mxu0 0
  %332 = vmatmul.mubr.bf16.gmra.mrb[0].mxu0 %v288
  %v333 = vpop.f32.mrb[0].mxu0
  %v334 = vadd.f32 0.0, %v333
  %v335 = vpop.f32.mrb[0].mxu0
  %v336 = vpop.f32.mrb[0].mxu0
  %v337 = vadd.f32 0.0, %v336
  %v338 = vpop.f32.mrb[0].mxu0
  %339 = vdwg.mxu0
  %v344 = vunpack.c.l.b16 %v223
  %v345 = vunpack.c.l.b16 %v224
  %v346 = vunpack.c.l.b16 %v225
  %v347 = vunpack.c.l.b16 %v226
  %v348 = vpack.c.b16 %v345, %v344
  %v349 = vpack.c.b16 %v347, %v346
  %352 = vmatprep.subr.bf16.mxu0 0
  %353 = vmatpush1.bf16.msra.mxu0 %v243
  %354 = vmatprep.subr.bf16.mxu0 0
  %355 = vmatpush1.bf16.msra.mxu0 %v244
  %356 = vmatprep.subr.bf16.mxu0 0
  %357 = vmatpush1.bf16.msra.mxu0 %v245
  %358 = vmatprep.subr.bf16.mxu0 0
  %359 = vmatpush1.bf16.msra.mxu0 %v246
  %360 = vmatprep.subr.bf16.mxu0 0
  %361 = vmatpush1.bf16.msra.mxu0 %v247
  %362 = vmatprep.subr.bf16.mxu0 0
  %363 = vmatpush1.bf16.msra.mxu0 %v248
  %364 = vmatprep.subr.bf16.mxu0 0
  %365 = vmatpush1.bf16.msra.mxu0 %v249
  %366 = vmatprep.subr.bf16.mxu0 0
  %367 = vmatpush1.bf16.msra.mxu0 %v250
  %368 = vmatprep.subr.bf16.mxu0 0
  %369 = vmatpush1.bf16.msra.mxu0 0
  %370 = vmatprep.subr.bf16.mxu0 0
  %371 = vmatpush1.bf16.msra.mxu0 0
  %372 = vmatprep.subr.bf16.mxu0 0
  %373 = vmatpush1.bf16.msra.mxu0 0
  %374 = vmatprep.subr.bf16.mxu0 0
  %375 = vmatpush1.bf16.msra.mxu0 0
  %376 = vmatprep.subr.bf16.mxu0 0
  %377 = vmatpush1.bf16.msra.mxu0 0
  %378 = vmatprep.subr.bf16.mxu0 0
  %379 = vmatpush1.bf16.msra.mxu0 0
  %380 = vmatprep.subr.bf16.mxu0 0
  %381 = vmatpush1.bf16.msra.mxu0 0
  %382 = vmatprep.subr.bf16.mxu0 0
  %383 = vmatpush1.bf16.msra.mxu0 0
  %384 = vmatprep.mubr.bf16.mxu0 0
  %385 = vmatmul.mubr.bf16.gmra.mrb[0].mxu0 %v348
  %v386 = vpop.f32.mrb[0].mxu0
  %v387 = vadd.f32 %v326, %v386
  %v388 = vpop.f32.mrb[0].mxu0
  %v389 = vpop.f32.mrb[0].mxu0
  %v390 = vadd.f32 %v329, %v389
  %v391 = vpop.f32.mrb[0].mxu0
  %392 = vmatprep.mubr.bf16.mxu0 0
  %393 = vmatmul.mubr.bf16.gmra.mrb[0].mxu0 %v349
  %v394 = vpop.f32.mrb[0].mxu0
  %v395 = vadd.f32 %v334, %v394
  %v396 = vpop.f32.mrb[0].mxu0
  %v397 = vpop.f32.mrb[0].mxu0
  %v398 = vadd.f32 %v337, %v397
  %v399 = vpop.f32.mrb[0].mxu0
  %400 = vdwg.mxu0
  %v401 = vld [vmem:[%s5] sm:$0xff]
  %v402 = vld [vmem:[%s5 + $0x8] sm:$0xff]
  %v403 = vld [vmem:[%s5 + $0x10] sm:$0xff]
  %v404 = vld [vmem:[%s5 + $0x18] sm:$0xff]
  %406 = vset.pattern.permute.xlu0 0
  %407 = vperm.xlu0 %406, %v401
  %v408 = vpop.permute.xlu0 %407
  %411 = vset.pattern.permute.xlu0 0
  %412 = vperm.xlu0 %411, %v402
  %v413 = vpop.permute.xlu0 %412
  %416 = vset.pattern.permute.xlu0 0
  %417 = vperm.xlu0 %416, %v403
  %v418 = vpop.permute.xlu0 %417
  %421 = vset.pattern.permute.xlu0 0
  %422 = vperm.xlu0 %421, %v404
  %v423 = vpop.permute.xlu0 %422
  %v425 = vadd.f32 %v387, %v408
  %v426 = vadd.f32 %v390, %v413
  %v427 = vadd.f32 %v395, %v418
  %v428 = vadd.f32 %v398, %v423
  %v429 = vmax.f32 %v425, 0.0
  %v430 = vmax.f32 %v426, 0.0
  %v431 = vmax.f32 %v427, 0.0
  %v432 = vmax.f32 %v428, 0.0
  %433 = vst [vmem:[#allocation4] sm:$0xff] %v429
  %434 = vrot.lane.b32.xlu0 %v429, 127
  %v435 = vpop.permute.xlu0 %434
  %436 = vst [vmem:[#allocation4 + $0x8] sm:$0xff] %v435
  %437 = vrot.lane.b32.xlu0 %v429, 120
  %v438 = vpop.permute.xlu0 %437
  %439 = vst [vmem:[#allocation4 + $0x10] sm:$0xff] %v438
  %440 = vrot.lane.b32.xlu0 %v429, 119
  %v441 = vpop.permute.xlu0 %440
  %442 = vst [vmem:[#allocation4 + $0x18] sm:$0xff] %v441
  %443 = vst [vmem:[#allocation4 + $0x20] sm:$0xff] %v430
  %444 = vrot.lane.b32.xlu0 %v430, 127
  %v445 = vpop.permute.xlu0 %444
  %446 = vst [vmem:[#allocation4 + $0x28] sm:$0xff] %v445
  %447 = vrot.lane.b32.xlu0 %v430, 120
  %v448 = vpop.permute.xlu0 %447
  %449 = vst [vmem:[#allocation4 + $0x30] sm:$0xff] %v448
  %450 = vrot.lane.b32.xlu0 %v430, 119
  %v451 = vpop.permute.xlu0 %450
  %452 = vst [vmem:[#allocation4 + $0x38] sm:$0xff] %v451
  %453 = vst [vmem:[#allocation4 + $0x40] sm:$0xff] %v431
  %454 = vrot.lane.b32.xlu0 %v431, 127
  %v455 = vpop.permute.xlu0 %454
  %456 = vst [vmem:[#allocation4 + $0x48] sm:$0xff] %v455
  %457 = vrot.lane.b32.xlu0 %v431, 120
  %v458 = vpop.permute.xlu0 %457
  %459 = vst [vmem:[#allocation4 + $0x50] sm:$0xff] %v458
  %460 = vrot.lane.b32.xlu0 %v431, 119
  %v461 = vpop.permute.xlu0 %460
  %462 = vst [vmem:[#allocation4 + $0x58] sm:$0xff] %v461
  %463 = vst [vmem:[#allocation4 + $0x60] sm:$0xff] %v432
  %464 = vrot.lane.b32.xlu0 %v432, 127
  %v465 = vpop.permute.xlu0 %464
  %466 = vst [vmem:[#allocation4 + $0x68] sm:$0xff] %v465
  %467 = vrot.lane.b32.xlu0 %v432, 120
  %v468 = vpop.permute.xlu0 %467
  %469 = vst [vmem:[#allocation4 + $0x70] sm:$0xff] %v468
  %470 = vrot.lane.b32.xlu0 %v432, 119
  %v471 = vpop.permute.xlu0 %470
  %472 = vst [vmem:[#allocation4 + $0x78] sm:$0xff] %v471
  %v473 = vld [vmem:[%s6] sm:$0xf]
  %v474 = vld [vmem:[%s6 + $0x4] sm:$0xf]
  %v475 = vld [vmem:[%s6 + $0x8] sm:$0xf]
  %v476 = vld [vmem:[%s6 + $0xc] sm:$0xf]
  %v477 = vld [vmem:[#allocation4] sm:$0xff]
  %v478 = vld [vmem:[#allocation4 + $0x8] sm:$0xff]
  %v479 = vld [vmem:[#allocation4 + $0x10] sm:$0xff]
  %v480 = vld [vmem:[#allocation4 + $0x18] sm:$0xff]
  %v481 = vld [vmem:[#allocation4 + $0x20] sm:$0xff]
  %v482 = vld [vmem:[#allocation4 + $0x28] sm:$0xff]
  %v483 = vld [vmem:[#allocation4 + $0x30] sm:$0xff]
  %v484 = vld [vmem:[#allocation4 + $0x38] sm:$0xff]
  %v485 = vld [vmem:[#allocation4 + $0x40] sm:$0xff]
  %v486 = vld [vmem:[#allocation4 + $0x48] sm:$0xff]
  %v487 = vld [vmem:[#allocation4 + $0x50] sm:$0xff]
  %v488 = vld [vmem:[#allocation4 + $0x58] sm:$0xff]
  %v489 = vld [vmem:[#allocation4 + $0x60] sm:$0xff]
  %v490 = vld [vmem:[#allocation4 + $0x68] sm:$0xff]
  %v491 = vld [vmem:[#allocation4 + $0x70] sm:$0xff]
  %v492 = vld [vmem:[#allocation4 + $0x78] sm:$0xff]
  %v493 = vpack.c.bf16 %v478, %v477
  %v494 = vpack.c.bf16 %v480, %v479
  %v495 = vpack.c.bf16 %v482, %v481
  %v496 = vpack.c.bf16 %v484, %v483
  %v497 = vpack.c.bf16 %v486, %v485
  %v498 = vpack.c.bf16 %v488, %v487
  %v499 = vpack.c.bf16 %v490, %v489
  %v500 = vpack.c.bf16 %v492, %v491
  %v501 = vld [vmem:[%s7] sm:$0xff]
  %v502 = vld [vmem:[%s7 + $0x8] sm:$0xff]
  %v503 = vld [vmem:[%s7 + $0x10] sm:$0xff]
  %v504 = vld [vmem:[%s7 + $0x18] sm:$0xff]
  %506 = vset.pattern.permute.xlu0 0
  %507 = vperm.xlu0 %506, %v501
  %v508 = vpop.permute.xlu0 %507
  %511 = vset.pattern.permute.xlu0 0
  %512 = vperm.xlu0 %511, %v502
  %v513 = vpop.permute.xlu0 %512
  %516 = vset.pattern.permute.xlu0 0
  %517 = vperm.xlu0 %516, %v503
  %v518 = vpop.permute.xlu0 %517
  %521 = vset.pattern.permute.xlu0 0
  %522 = vperm.xlu0 %521, %v504
  %v523 = vpop.permute.xlu0 %522
  %v529 = vunpack.c.l.b16 %v473
  %v530 = vunpack.c.l.b16 %v474
  %v531 = vunpack.c.l.b16 %v475
  %v532 = vunpack.c.l.b16 %v476
  %v533 = vpack.c.b16 %v530, %v529
  %v534 = vpack.c.b16 %v532, %v531
  %537 = vmatprep.subr.bf16.mxu0 0
  %538 = vmatpush1.bf16.msra.mxu0 %v493
  %539 = vmatprep.subr.bf16.mxu0 0
  %540 = vmatpush1.bf16.msra.mxu0 %v494
  %541 = vmatprep.subr.bf16.mxu0 0
  %542 = vmatpush1.bf16.msra.mxu0 %v495
  %543 = vmatprep.subr.bf16.mxu0 0
  %544 = vmatpush1.bf16.msra.mxu0 %v496
  %545 = vmatprep.subr.bf16.mxu0 0
  %546 = vmatpush1.bf16.msra.mxu0 %v497
  %547 = vmatprep.subr.bf16.mxu0 0
  %548 = vmatpush1.bf16.msra.mxu0 %v498
  %549 = vmatprep.subr.bf16.mxu0 0
  %550 = vmatpush1.bf16.msra.mxu0 %v499
  %551 = vmatprep.subr.bf16.mxu0 0
  %552 = vmatpush1.bf16.msra.mxu0 %v500
  %553 = vmatprep.subr.bf16.mxu0 0
  %554 = vmatpush1.bf16.msra.mxu0 0
  %555 = vmatprep.subr.bf16.mxu0 0
  %556 = vmatpush1.bf16.msra.mxu0 0
  %557 = vmatprep.subr.bf16.mxu0 0
  %558 = vmatpush1.bf16.msra.mxu0 0
  %559 = vmatprep.subr.bf16.mxu0 0
  %560 = vmatpush1.bf16.msra.mxu0 0
  %561 = vmatprep.subr.bf16.mxu0 0
  %562 = vmatpush1.bf16.msra.mxu0 0
  %563 = vmatprep.subr.bf16.mxu0 0
  %564 = vmatpush1.bf16.msra.mxu0 0
  %565 = vmatprep.subr.bf16.mxu0 0
  %566 = vmatpush1.bf16.msra.mxu0 0
  %567 = vmatprep.subr.bf16.mxu0 0
  %568 = vmatpush1.bf16.msra.mxu0 0
  %569 = vmatprep.mubr.bf16.mxu0 0
  %570 = vmatmul.mubr.bf16.gmra.mrb[0].mxu0 %v533
  %v571 = vpop.f32.mrb[0].mxu0
  %v572 = vadd.f32 %v508, %v571
  %v573 = vpop.f32.mrb[0].mxu0
  %v574 = vpop.f32.mrb[0].mxu0
  %v575 = vadd.f32 %v513, %v574
  %v576 = vpop.f32.mrb[0].mxu0
  %577 = vmatprep.mubr.bf16.mxu0 0
  %578 = vmatmul.mubr.bf16.gmra.mrb[0].mxu0 %v534
  %v579 = vpop.f32.mrb[0].mxu0
  %v580 = vadd.f32 %v518, %v579
  %v581 = vpop.f32.mrb[0].mxu0
  %v582 = vpop.f32.mrb[0].mxu0
  %v583 = vadd.f32 %v523, %v582
  %v584 = vpop.f32.mrb[0].mxu0
  %585 = vdwg.mxu0
  %v586 = vmax.f32 %v572, 0.0
  %v587 = vmax.f32 %v575, 0.0
  %v588 = vmax.f32 %v580, 0.0
  %v589 = vmax.f32 %v583, 0.0
  %590 = vst [vmem:[%s8] sm:$0xff] %v586
  %591 = vst [vmem:[%s8 + $0x8] sm:$0xff] %v587
  %592 = vst [vmem:[%s8 + $0x10] sm:$0xff] %v588
  %593 = vst [vmem:[%s8 + $0x18] sm:$0xff] %v589
  // Predicated region
  $region34: #{unet_decoder_forward.2} parent=0 // pred_check
    _
  $region35: #{unet_decoder_forward.2} parent=0 // pred_check_branch
    %595 = sbr.rel (0) target = $region37
  $region36: #{unet_decoder_forward.2} parent=0 // pred_region
    _
  $region37: #{unet_decoder_forward.2} parent=0 // pred_fallthru
    _
  // Predicated region
  $region38: #{unet_decoder_forward.2} parent=0 // pred_check
    _
  $region39: #{unet_decoder_forward.2} parent=0 // pred_check_branch
    %597 = sbr.rel (0) target = $region41
  $region40: #{unet_decoder_forward.2} parent=0 // pred_region
    _
  $region41: #{unet_decoder_forward.2} parent=0 // pred_fallthru
    _

// kernel: unet_decoder_forward.3
$region0: #{unet_decoder_forward.3}
  #allocation0 [shape = 'u32[]', space=smem, size = 0x4, offset = 0x4, fixed_abs, tag = 'smem constant byte address 0x4 - core index']
  #allocation1 [shape = 'u32[144,128]{1,0:T(1,128)}', space=vmem, size = 0x12000, scoped, tag = 'internal scratch']
  #allocation2 [shape = 'f32[64,288]{1,0:T(8,128)}', space=vmem, size = 0x18000, scoped, tag = 'scratch operand']
  #allocation3 [shape = 'f32[64,288]{1,0:T(8,128)}', space=vmem, size = 0x18000, scoped, tag = 'scratch operand']
  #allocation4 [shape = 'f32[64,288]{1,0:T(8,128)}', space=vmem, size = 0x18000, scoped, tag = 'scratch operand']
  %s0 = inlined_call_operand.vmem [shape: bf16[8,288], index: 0, kind: input, shape index: {}]
  %s1 = inlined_call_operand.vmem [shape: bf16[4,4,288], index: 1, kind: input, shape index: {}]
  %s2 = inlined_call_operand.vmem [shape: bf16[16,8], index: 2, kind: input, shape index: {}]
  %s3 = inlined_call_operand.vmem [shape: bf16[16,64], index: 3, kind: input, shape index: {}]
  %s4 = inlined_call_operand.vmem [shape: bf16[16,64], index: 4, kind: input, shape index: {}]
  %s5 = inlined_call_operand.vmem [shape: f32[16,1], index: 5, kind: input, shape index: {}]
  %s6 = inlined_call_operand.vmem [shape: bf16[16,64], index: 6, kind: input, shape index: {}]
  %s7 = inlined_call_operand.vmem [shape: f32[16,1], index: 7, kind: input, shape index: {}]
  %s8 = inlined_call_operand.vmem [shape: f32[16,288], index: 8, kind: output, shape index: {}]
  %s9 = sld [smem:[#allocation0]]
  $region42: #{unet_decoder_forward.3} parent=0
    _
  %s11 = ssub.s32 1, %s9
  %s12 = scalar_select 0, %s11, %s9
  // Predicated region
  $region2: #{unet_decoder_forward.3} parent=0 // pred_check
    _
  $region3: #{unet_decoder_forward.3} parent=0 // pred_check_branch
    %14 = sbr.rel (0) target = $region5
  $region4: #{unet_decoder_forward.3} parent=0 // pred_region
    _
  $region5: #{unet_decoder_forward.3} parent=0 // pred_fallthru
    _
  // Predicated region
  $region6: #{unet_decoder_forward.3} parent=0 // pred_check
    _
  $region7: #{unet_decoder_forward.3} parent=0 // pred_check_branch
    %16 = sbr.rel (0) target = $region9
  $region8: #{unet_decoder_forward.3} parent=0 // pred_region
    _
  $region9: #{unet_decoder_forward.3} parent=0 // pred_fallthru
    _
  // Predicated region
  $region10: #{unet_decoder_forward.3} parent=0 // pred_check
    _
  $region11: #{unet_decoder_forward.3} parent=0 // pred_check_branch
    %18 = sbr.rel (0) target = $region13
  $region12: #{unet_decoder_forward.3} parent=0 // pred_region
    _
  $region13: #{unet_decoder_forward.3} parent=0 // pred_fallthru
    _
  // Predicated region
  $region14: #{unet_decoder_forward.3} parent=0 // pred_check
    _
  $region15: #{unet_decoder_forward.3} parent=0 // pred_check_branch
    %20 = sbr.rel (0) target = $region17
  $region16: #{unet_decoder_forward.3} parent=0 // pred_region
    _
  $region17: #{unet_decoder_forward.3} parent=0 // pred_fallthru
    _
  // Predicated region
  $region18: #{unet_decoder_forward.3} parent=0 // pred_check
    _
  $region19: #{unet_decoder_forward.3} parent=0 // pred_check_branch
    %22 = sbr.rel (0) target = $region21
  $region20: #{unet_decoder_forward.3} parent=0 // pred_region
    _
  $region21: #{unet_decoder_forward.3} parent=0 // pred_fallthru
    _
  // Predicated region
  $region22: #{unet_decoder_forward.3} parent=0 // pred_check
    _
  $region23: #{unet_decoder_forward.3} parent=0 // pred_check_branch
    %24 = sbr.rel (0) target = $region25
  $region24: #{unet_decoder_forward.3} parent=0 // pred_region
    _
  $region25: #{unet_decoder_forward.3} parent=0 // pred_fallthru
    _
  // Predicated region
  $region26: #{unet_decoder_forward.3} parent=0 // pred_check
    _
  $region27: #{unet_decoder_forward.3} parent=0 // pred_check_branch
    %26 = sbr.rel (0) target = $region29
  $region28: #{unet_decoder_forward.3} parent=0 // pred_region
    _
  $region29: #{unet_decoder_forward.3} parent=0 // pred_fallthru
    _
  // Predicated region
  $region30: #{unet_decoder_forward.3} parent=0 // pred_check
    _
  $region31: #{unet_decoder_forward.3} parent=0 // pred_check_branch
    %28 = sbr.rel (0) target = $region33
  $region32: #{unet_decoder_forward.3} parent=0 // pred_region
    _
  $region33: #{unet_decoder_forward.3} parent=0 // pred_fallthru
    _
  %v30 = vld [vmem:[%s2] sm:$0xf]
  %v31 = vld [vmem:[%s2 + $0x4] sm:$0xf]
  %v32 = vld [vmem:[%s0] sm:$0xff]
  %v33 = vld [vmem:[%s0 + $0x8] sm:$0xf]
  %v36 = vunpack.c.l.b16 %v30
  %v37 = vunpack.c.l.b16 %v31
  %v38 = vpack.c.b16 %v37, %v36
  %v41 = vunpack.c.l.b16 %v32
  %v42 = vunpack.c.h.b16 %v32
  %v43 = vunpack.c.l.b16 %v33
  %v44 = vpack.c.b16 %v41, %v41
  %v45 = vpack.c.b16 %v42, %v42
  %v46 = vpack.c.b16 %v43, %v43
  %vm47 = vcmask 64512
  %v49 = vsel %vm47, %v38, 0
  %vm51 = vcmask 1043456
  %v53 = vsel %vm51, %v44, 0
  %v56 = vsel %vm51, %v45, 0
  %v59 = vsel %vm51, %v46, 0
  %61 = vmatprep.subr.bf16.mxu0 %v56
  %62 = vmatpush1.bf16.msra.mxu0 %v53
  %63 = vmatprep.subr.bf16.mxu0 0
  %64 = vmatpush1.bf16.msra.mxu0 0
  %65 = vmatprep.subr.bf16.mxu0 0
  %66 = vmatpush1.bf16.msra.mxu0 0
  %67 = vmatprep.subr.bf16.mxu0 0
  %68 = vmatpush1.bf16.msra.mxu0 0
  %69 = vmatprep.subr.bf16.mxu0 0
  %70 = vmatpush1.bf16.msra.mxu0 0
  %71 = vmatprep.subr.bf16.mxu0 0
  %72 = vmatpush1.bf16.msra.mxu0 0
  %73 = vmatprep.subr.bf16.mxu0 0
  %74 = vmatpush1.bf16.msra.mxu0 0
  %75 = vmatprep.subr.bf16.mxu0 0
  %76 = vmatpush1.bf16.msra.mxu0 0
  %77 = vmatprep.subr.bf16.mxu0 0
  %78 = vmatpush1.bf16.msra.mxu0 0
  %79 = vmatprep.subr.bf16.mxu0 0
  %80 = vmatpush1.bf16.msra.mxu0 0
  %81 = vmatprep.subr.bf16.mxu0 0
  %82 = vmatpush1.bf16.msra.mxu0 0
  %83 = vmatprep.subr.bf16.mxu0 0
  %84 = vmatpush1.bf16.msra.mxu0 0
  %85 = vmatprep.subr.bf16.mxu0 0
  %86 = vmatpush1.bf16.msra.mxu0 0
  %87 = vmatprep.subr.bf16.mxu0 0
  %88 = vmatpush1.bf16.msra.mxu0 0
  %89 = vmatprep.subr.bf16.mxu0 0
  %90 = vmatpush1.bf16.msra.mxu0 0
  %91 = vmatprep.subr.bf16.mxu0 0
  %92 = vmatpush1.bf16.msra.mxu0 0
  %93 = vmatprep.mubr.bf16.mxu0 0
  %94 = vmatmul.mubr.bf16.gmra.mrb[0].mxu0 %v49
  %v95 = vpop.f32.mrb[0].mxu0
  %v96 = vadd.f32 0.0, %v95
  %v97 = vpop.f32.mrb[0].mxu0
  %v98 = vadd.f32 0.0, %v97
  %v99 = vpop.f32.mrb[0].mxu0
  %v100 = vadd.f32 0.0, %v99
  %v101 = vpop.f32.mrb[0].mxu0
  %v102 = vadd.f32 0.0, %v101
  %103 = vdwg.mxu0
  %104 = vmatprep.subr.bf16.mxu0 0
  %105 = vmatpush1.bf16.msra.mxu0 %v59
  %106 = vmatprep.subr.bf16.mxu0 0
  %107 = vmatpush1.bf16.msra.mxu0 0
  %108 = vmatprep.subr.bf16.mxu0 0
  %109 = vmatpush1.bf16.msra.mxu0 0
  %110 = vmatprep.subr.bf16.mxu0 0
  %111 = vmatpush1.bf16.msra.mxu0 0
  %112 = vmatprep.subr.bf16.mxu0 0
  %113 = vmatpush1.bf16.msra.mxu0 0
  %114 = vmatprep.subr.bf16.mxu0 0
  %115 = vmatpush1.bf16.msra.mxu0 0
  %116 = vmatprep.subr.bf16.mxu0 0
  %117 = vmatpush1.bf16.msra.mxu0 0
  %118 = vmatprep.subr.bf16.mxu0 0
  %119 = vmatpush1.bf16.msra.mxu0 0
  %120 = vmatprep.subr.bf16.mxu0 0
  %121 = vmatpush1.bf16.msra.mxu0 0
  %122 = vmatprep.subr.bf16.mxu0 0
  %123 = vmatpush1.bf16.msra.mxu0 0
  %124 = vmatprep.subr.bf16.mxu0 0
  %125 = vmatpush1.bf16.msra.mxu0 0
  %126 = vmatprep.subr.bf16.mxu0 0
  %127 = vmatpush1.bf16.msra.mxu0 0
  %128 = vmatprep.subr.bf16.mxu0 0
  %129 = vmatpush1.bf16.msra.mxu0 0
  %130 = vmatprep.subr.bf16.mxu0 0
  %131 = vmatpush1.bf16.msra.mxu0 0
  %132 = vmatprep.subr.bf16.mxu0 0
  %133 = vmatpush1.bf16.msra.mxu0 0
  %134 = vmatprep.subr.bf16.mxu0 0
  %135 = vmatpush1.bf16.msra.mxu0 0
  %136 = vmatprep.mubr.bf16.mxu0 0
  %137 = vmatmul.mubr.bf16.gmra.mrb[0].mxu0 %v49
  %v138 = vpop.f32.mrb[0].mxu0
  %v139 = vadd.f32 0.0, %v138
  %v140 = vpop.f32.mrb[0].mxu0
  %v141 = vpop.f32.mrb[0].mxu0
  %v142 = vadd.f32 0.0, %v141
  %v143 = vpop.f32.mrb[0].mxu0
  %144 = vdwg.mxu0
  %v145 = vld [vmem:[%s1] sm:$0x3f]
  %v146 = vunpack.c.l.bf16 %v145
  %v147 = vunpack.c.h.bf16 %v145
  %v149 = vcombine.high %v146, %v146
  %151 = vst [vmem:[#allocation2] sm:$0xf] %v146
  %152 = vst [vmem:[#allocation2 + $0x8] sm:$0xf] %v149
  %vm153 = vcmask 257024
  %154 = vst.msk [vmem:[#allocation2 + $0x10] sm:$0xf] %vm153, %v147
  %155 = vst [vmem:[#allocation3] sm:$0xf] %v96
  %156 = vst [vmem:[#allocation3 + $0x8] sm:$0xf] %v98
  %157 = vst.msk [vmem:[#allocation3 + $0x10] sm:$0xf] %vm153, %v139
  %v158 = vld [vmem:[%s1] sm:$0x3f]
  %v159 = vunpack.c.l.bf16 %v158
  %v160 = vunpack.c.h.bf16 %v158
  %v162 = vcombine.high %v159, %v159
  %vm163 = vcmask 1047808
  %164 = vrot.lane.b32.xlu0 %v159, 32
  %v165 = vpop.permute.xlu0 %164
  %v166 = vsel %vm163, %v165, %v160
  %v168 = vrot.slane %v159, 4
  %v169 = vrot.slane %v162, 4
  %v170 = vrot.slane %v166, 4
  %171 = vrot.lane.b32.xlu0 %v168, 127
  %v172 = vpop.permute.xlu0 %171
  %173 = vrot.lane.b32.xlu0 %v169, 127
  %v174 = vpop.permute.xlu0 %173
  %175 = vrot.lane.b32.xlu0 %v170, 127
  %v176 = vpop.permute.xlu0 %175
  %vm177 = vcmask 1039360
  %v178 = vsel %vm177, %v172, %v174
  %v179 = vsel %vm177, %v174, %v176
  %183 = vst [vmem:[#allocation2] sm:$0xf0] %v178
  %184 = vst [vmem:[#allocation2 + $0x8] sm:$0xf0] %v179
  %vm185 = vcmask 261124
  %186 = vst.msk [vmem:[#allocation2 + $0x10] sm:$0xf0] %vm185, %v176
  %187 = vrot.lane.b32.xlu0 %v96, 32
  %v188 = vpop.permute.xlu0 %187
  %v189 = vsel %vm163, %v188, %v139
  %v193 = vrot.slane %v96, 4
  %v194 = vrot.slane %v98, 4
  %v195 = vrot.slane %v189, 4
  %196 = vrot.lane.b32.xlu0 %v193, 127
  %v197 = vpop.permute.xlu0 %196
  %198 = vrot.lane.b32.xlu0 %v194, 127
  %v199 = vpop.permute.xlu0 %198
  %200 = vrot.lane.b32.xlu0 %v195, 127
  %v201 = vpop.permute.xlu0 %200
  %v202 = vsel %vm177, %v197, %v199
  %v203 = vsel %vm177, %v199, %v201
  %207 = vst [vmem:[#allocation3] sm:$0xf0] %v202
  %208 = vst [vmem:[#allocation3 + $0x8] sm:$0xf0] %v203
  %209 = vst.msk [vmem:[#allocation3 + $0x10] sm:$0xf0] %vm185, %v201
  %v210 = vld [vmem:[%s1] sm:$0x3f]
  %v211 = vunpack.c.l.bf16 %v210
  %v212 = vunpack.c.h.bf16 %v210
  %v214 = vcombine.high %v211, %v211
  %215 = vrot.lane.b32.xlu0 %v211, 32
  %v216 = vpop.permute.xlu0 %215
  %v217 = vsel %vm163, %v216, %v212
  %219 = vrot.lane.b32.xlu0 %v211, 116
  %v220 = vpop.permute.xlu0 %219
  %221 = vrot.lane.b32.xlu0 %v214, 116
  %v222 = vpop.permute.xlu0 %221
  %223 = vrot.lane.b32.xlu0 %v217, 116
  %v224 = vpop.permute.xlu0 %223
  %vm225 = vcmask 949248
  %v226 = vsel %vm225, %v220, %v222
  %v227 = vsel %vm225, %v222, %v224
  %231 = vst [vmem:[#allocation2 + $0x18] sm:$0xf] %v226
  %232 = vst [vmem:[#allocation2 + $0x20] sm:$0xf] %v227
  %233 = vst.msk [vmem:[#allocation2 + $0x28] sm:$0xf] %vm153, %v224
  %234 = vrot.lane.b32.xlu0 %v96, 116
  %v235 = vpop.permute.xlu0 %234
  %236 = vrot.lane.b32.xlu0 %v98, 116
  %v237 = vpop.permute.xlu0 %236
  %238 = vrot.lane.b32.xlu0 %v189, 116
  %v239 = vpop.permute.xlu0 %238
  %v240 = vsel %vm225, %v235, %v237
  %v241 = vsel %vm225, %v237, %v239
  %245 = vst [vmem:[#allocation3 + $0x18] sm:$0xf] %v240
  %246 = vst [vmem:[#allocation3 + $0x20] sm:$0xf] %v241
  %247 = vst.msk [vmem:[#allocation3 + $0x28] sm:$0xf] %vm153, %v239
  %v248 = vld [vmem:[%s1] sm:$0x3f]
  %v249 = vunpack.c.l.bf16 %v248
  %v250 = vunpack.c.h.bf16 %v248
  %v252 = vcombine.high %v249, %v249
  %253 = vrot.lane.b32.xlu0 %v249, 32
  %v254 = vpop.permute.xlu0 %253
  %v255 = vsel %vm163, %v254, %v250
  %v257 = vrot.slane %v249, 4
  %v258 = vrot.slane %v252, 4
  %v259 = vrot.slane %v255, 4
  %260 = vrot.lane.b32.xlu0 %v257, 115
  %v261 = vpop.permute.xlu0 %260
  %262 = vrot.lane.b32.xlu0 %v258, 115
  %v263 = vpop.permute.xlu0 %262
  %264 = vrot.lane.b32.xlu0 %v259, 115
  %v265 = vpop.permute.xlu0 %264
  %vm266 = vcmask 941056
  %v267 = vsel %vm266, %v261, %v263
  %v268 = vsel %vm266, %v263, %v265
  %272 = vst [vmem:[#allocation2 + $0x18] sm:$0xf0] %v267
  %273 = vst [vmem:[#allocation2 + $0x20] sm:$0xf0] %v268
  %274 = vst.msk [vmem:[#allocation2 + $0x28] sm:$0xf0] %vm185, %v265
  %275 = vrot.lane.b32.xlu0 %v193, 115
  %v276 = vpop.permute.xlu0 %275
  %277 = vrot.lane.b32.xlu0 %v194, 115
  %v278 = vpop.permute.xlu0 %277
  %279 = vrot.lane.b32.xlu0 %v195, 115
  %v280 = vpop.permute.xlu0 %279
  %v281 = vsel %vm266, %v276, %v278
  %v282 = vsel %vm266, %v278, %v280
  %286 = vst [vmem:[#allocation3 + $0x18] sm:$0xf0] %v281
  %287 = vst [vmem:[#allocation3 + $0x20] sm:$0xf0] %v282
  %288 = vst.msk [vmem:[#allocation3 + $0x28] sm:$0xf0] %vm185, %v280
  %s289 = scalar_lea.vmem %s1, 6
  %v290 = vld [vmem:[%s289] sm:$0x3f]
  %v291 = vunpack.c.l.bf16 %v290
  %v292 = vunpack.c.h.bf16 %v290
  %v294 = vcombine.high %v291, %v291
  %296 = vst [vmem:[#allocation2 + $0x30] sm:$0xf] %v291
  %297 = vst [vmem:[#allocation2 + $0x38] sm:$0xf] %v294
  %298 = vst.msk [vmem:[#allocation2 + $0x40] sm:$0xf] %vm153, %v292
  %v300 = vrot.slane %v139, 4
  %304 = vst [vmem:[#allocation3 + $0x30] sm:$0xf] %v193
  %305 = vst [vmem:[#allocation3 + $0x38] sm:$0xf] %v194
  %306 = vst.msk [vmem:[#allocation3 + $0x40] sm:$0xf] %vm153, %v300
  %v307 = vld [vmem:[%s289] sm:$0x3f]
  %v308 = vunpack.c.l.bf16 %v307
  %v309 = vunpack.c.h.bf16 %v307
  %v311 = vcombine.high %v308, %v308
  %312 = vrot.lane.b32.xlu0 %v308, 32
  %v313 = vpop.permute.xlu0 %312
  %v314 = vsel %vm163, %v313, %v309
  %v316 = vrot.slane %v308, 4
  %v317 = vrot.slane %v311, 4
  %v318 = vrot.slane %v314, 4
  %319 = vrot.lane.b32.xlu0 %v316, 127
  %v320 = vpop.permute.xlu0 %319
  %321 = vrot.lane.b32.xlu0 %v317, 127
  %v322 = vpop.permute.xlu0 %321
  %323 = vrot.lane.b32.xlu0 %v318, 127
  %v324 = vpop.permute.xlu0 %323
  %v325 = vsel %vm177, %v320, %v322
  %v326 = vsel %vm177, %v322, %v324
  %330 = vst [vmem:[#allocation2 + $0x30] sm:$0xf0] %v325
  %331 = vst [vmem:[#allocation2 + $0x38] sm:$0xf0] %v326
  %332 = vst.msk [vmem:[#allocation2 + $0x40] sm:$0xf0] %vm185, %v324
  %333 = vrot.lane.b32.xlu0 %v193, 32
  %v334 = vpop.permute.xlu0 %333
  %v335 = vsel %vm163, %v334, %v300
  %v337 = vrot.slane %v193, 4
  %v338 = vrot.slane %v194, 4
  %v339 = vrot.slane %v335, 4
  %340 = vrot.lane.b32.xlu0 %v337, 127
  %v341 = vpop.permute.xlu0 %340
  %342 = vrot.lane.b32.xlu0 %v338, 127
  %v343 = vpop.permute.xlu0 %342
  %344 = vrot.lane.b32.xlu0 %v339, 127
  %v345 = vpop.permute.xlu0 %344
  %v346 = vsel %vm177, %v341, %v343
  %v347 = vsel %vm177, %v343, %v345
  %351 = vst [vmem:[#allocation3 + $0x30] sm:$0xf0] %v346
  %352 = vst [vmem:[#allocation3 + $0x38] sm:$0xf0] %v347
  %353 = vst.msk [vmem:[#allocation3 + $0x40] sm:$0xf0] %vm185, %v345
  %v354 = vld [vmem:[%s289] sm:$0x3f]
  %v355 = vunpack.c.l.bf16 %v354
  %v356 = vunpack.c.h.bf16 %v354
  %v358 = vcombine.high %v355, %v355
  %359 = vrot.lane.b32.xlu0 %v355, 32
  %v360 = vpop.permute.xlu0 %359
  %v361 = vsel %vm163, %v360, %v356
  %363 = vrot.lane.b32.xlu0 %v355, 116
  %v364 = vpop.permute.xlu0 %363
  %365 = vrot.lane.b32.xlu0 %v358, 116
  %v366 = vpop.permute.xlu0 %365
  %367 = vrot.lane.b32.xlu0 %v361, 116
  %v368 = vpop.permute.xlu0 %367
  %v369 = vsel %vm225, %v364, %v366
  %v370 = vsel %vm225, %v366, %v368
  %374 = vst [vmem:[#allocation2 + $0x48] sm:$0xf] %v369
  %375 = vst [vmem:[#allocation2 + $0x50] sm:$0xf] %v370
  %376 = vst.msk [vmem:[#allocation2 + $0x58] sm:$0xf] %vm153, %v368
  %377 = vrot.lane.b32.xlu0 %v193, 116
  %v378 = vpop.permute.xlu0 %377
  %379 = vrot.lane.b32.xlu0 %v194, 116
  %v380 = vpop.permute.xlu0 %379
  %381 = vrot.lane.b32.xlu0 %v335, 116
  %v382 = vpop.permute.xlu0 %381
  %v383 = vsel %vm225, %v378, %v380
  %v384 = vsel %vm225, %v380, %v382
  %388 = vst [vmem:[#allocation3 + $0x48] sm:$0xf] %v383
  %389 = vst [vmem:[#allocation3 + $0x50] sm:$0xf] %v384
  %390 = vst.msk [vmem:[#allocation3 + $0x58] sm:$0xf] %vm153, %v382
  %v391 = vld [vmem:[%s289] sm:$0x3f]
  %v392 = vunpack.c.l.bf16 %v391
  %v393 = vunpack.c.h.bf16 %v391
  %v395 = vcombine.high %v392, %v392
  %396 = vrot.lane.b32.xlu0 %v392, 32
  %v397 = vpop.permute.xlu0 %396
  %v398 = vsel %vm163, %v397, %v393
  %v400 = vrot.slane %v392, 4
  %v401 = vrot.slane %v395, 4
  %v402 = vrot.slane %v398, 4
  %403 = vrot.lane.b32.xlu0 %v400, 115
  %v404 = vpop.permute.xlu0 %403
  %405 = vrot.lane.b32.xlu0 %v401, 115
  %v406 = vpop.permute.xlu0 %405
  %407 = vrot.lane.b32.xlu0 %v402, 115
  %v408 = vpop.permute.xlu0 %407
  %v409 = vsel %vm266, %v404, %v406
  %v410 = vsel %vm266, %v406, %v408
  %414 = vst [vmem:[#allocation2 + $0x48] sm:$0xf0] %v409
  %415 = vst [vmem:[#allocation2 + $0x50] sm:$0xf0] %v410
  %416 = vst.msk [vmem:[#allocation2 + $0x58] sm:$0xf0] %vm185, %v408
  %417 = vrot.lane.b32.xlu0 %v337, 115
  %v418 = vpop.permute.xlu0 %417
  %419 = vrot.lane.b32.xlu0 %v338, 115
  %v420 = vpop.permute.xlu0 %419
  %421 = vrot.lane.b32.xlu0 %v339, 115
  %v422 = vpop.permute.xlu0 %421
  %v423 = vsel %vm266, %v418, %v420
  %v424 = vsel %vm266, %v420, %v422
  %428 = vst [vmem:[#allocation3 + $0x48] sm:$0xf0] %v423
  %429 = vst [vmem:[#allocation3 + $0x50] sm:$0xf0] %v424
  %430 = vst.msk [vmem:[#allocation3 + $0x58] sm:$0xf0] %vm185, %v422
  %s431 = scalar_lea.vmem %s1, 12
  %v432 = vld [vmem:[%s431] sm:$0x3f]
  %v433 = vunpack.c.l.bf16 %v432
  %v434 = vunpack.c.h.bf16 %v432
  %v436 = vcombine.high %v433, %v433
  %438 = vst [vmem:[#allocation2 + $0x60] sm:$0xf] %v433
  %439 = vst [vmem:[#allocation2 + $0x68] sm:$0xf] %v436
  %440 = vst.msk [vmem:[#allocation2 + $0x70] sm:$0xf] %vm153, %v434
  %441 = vst [vmem:[#allocation3 + $0x60] sm:$0xf] %v100
  %442 = vst [vmem:[#allocation3 + $0x68] sm:$0xf] %v102
  %443 = vst.msk [vmem:[#allocation3 + $0x70] sm:$0xf] %vm153, %v142
  %v444 = vld [vmem:[%s431] sm:$0x3f]
  %v445 = vunpack.c.l.bf16 %v444
  %v446 = vunpack.c.h.bf16 %v444
  %v448 = vcombine.high %v445, %v445
  %449 = vrot.lane.b32.xlu0 %v445, 32
  %v450 = vpop.permute.xlu0 %449
  %v451 = vsel %vm163, %v450, %v446
  %v453 = vrot.slane %v445, 4
  %v454 = vrot.slane %v448, 4
  %v455 = vrot.slane %v451, 4
  %456 = vrot.lane.b32.xlu0 %v453, 127
  %v457 = vpop.permute.xlu0 %456
  %458 = vrot.lane.b32.xlu0 %v454, 127
  %v459 = vpop.permute.xlu0 %458
  %460 = vrot.lane.b32.xlu0 %v455, 127
  %v461 = vpop.permute.xlu0 %460
  %v462 = vsel %vm177, %v457, %v459
  %v463 = vsel %vm177, %v459, %v461
  %467 = vst [vmem:[#allocation2 + $0x60] sm:$0xf0] %v462
  %468 = vst [vmem:[#allocation2 + $0x68] sm:$0xf0] %v463
  %469 = vst.msk [vmem:[#allocation2 + $0x70] sm:$0xf0] %vm185, %v461
  %470 = vrot.lane.b32.xlu0 %v100, 32
  %v471 = vpop.permute.xlu0 %470
  %v472 = vsel %vm163, %v471, %v142
  %v476 = vrot.slane %v100, 4
  %v477 = vrot.slane %v102, 4
  %v478 = vrot.slane %v472, 4
  %479 = vrot.lane.b32.xlu0 %v476, 127
  %v480 = vpop.permute.xlu0 %479
  %481 = vrot.lane.b32.xlu0 %v477, 127
  %v482 = vpop.permute.xlu0 %481
  %483 = vrot.lane.b32.xlu0 %v478, 127
  %v484 = vpop.permute.xlu0 %483
  %v485 = vsel %vm177, %v480, %v482
  %v486 = vsel %vm177, %v482, %v484
  %490 = vst [vmem:[#allocation3 + $0x60] sm:$0xf0] %v485
  %491 = vst [vmem:[#allocation3 + $0x68] sm:$0xf0] %v486
  %492 = vst.msk [vmem:[#allocation3 + $0x70] sm:$0xf0] %vm185, %v484
  %v493 = vld [vmem:[%s431] sm:$0x3f]
  %v494 = vunpack.c.l.bf16 %v493
  %v495 = vunpack.c.h.bf16 %v493
  %v497 = vcombine.high %v494, %v494
  %498 = vrot.lane.b32.xlu0 %v494, 32
  %v499 = vpop.permute.xlu0 %498
  %v500 = vsel %vm163, %v499, %v495
  %502 = vrot.lane.b32.xlu0 %v494, 116
  %v503 = vpop.permute.xlu0 %502
  %504 = vrot.lane.b32.xlu0 %v497, 116
  %v505 = vpop.permute.xlu0 %504
  %506 = vrot.lane.b32.xlu0 %v500, 116
  %v507 = vpop.permute.xlu0 %506
  %v508 = vsel %vm225, %v503, %v505
  %v509 = vsel %vm225, %v505, %v507
  %513 = vst [vmem:[#allocation2 + $0x78] sm:$0xf] %v508
  %514 = vst [vmem:[#allocation2 + $0x80] sm:$0xf] %v509
  %515 = vst.msk [vmem:[#allocation2 + $0x88] sm:$0xf] %vm153, %v507
  %516 = vrot.lane.b32.xlu0 %v100, 116
  %v517 = vpop.permute.xlu0 %516
  %518 = vrot.lane.b32.xlu0 %v102, 116
  %v519 = vpop.permute.xlu0 %518
  %520 = vrot.lane.b32.xlu0 %v472, 116
  %v521 = vpop.permute.xlu0 %520
  %v522 = vsel %vm225, %v517, %v519
  %v523 = vsel %vm225, %v519, %v521
  %527 = vst [vmem:[#allocation3 + $0x78] sm:$0xf] %v522
  %528 = vst [vmem:[#allocation3 + $0x80] sm:$0xf] %v523
  %529 = vst.msk [vmem:[#allocation3 + $0x88] sm:$0xf] %vm153, %v521
  %v530 = vld [vmem:[%s431] sm:$0x3f]
  %v531 = vunpack.c.l.bf16 %v530
  %v532 = vunpack.c.h.bf16 %v530
  %v534 = vcombine.high %v531, %v531
  %535 = vrot.lane.b32.xlu0 %v531, 32
  %v536 = vpop.permute.xlu0 %535
  %v537 = vsel %vm163, %v536, %v532
  %v539 = vrot.slane %v531, 4
  %v540 = vrot.slane %v534, 4
  %v541 = vrot.slane %v537, 4
  %542 = vrot.lane.b32.xlu0 %v539, 115
  %v543 = vpop.permute.xlu0 %542
  %544 = vrot.lane.b32.xlu0 %v540, 115
  %v545 = vpop.permute.xlu0 %544
  %546 = vrot.lane.b32.xlu0 %v541, 115
  %v547 = vpop.permute.xlu0 %546
  %v548 = vsel %vm266, %v543, %v545
  %v549 = vsel %vm266, %v545, %v547
  %553 = vst [vmem:[#allocation2 + $0x78] sm:$0xf0] %v548
  %554 = vst [vmem:[#allocation2 + $0x80] sm:$0xf0] %v549
  %555 = vst.msk [vmem:[#allocation2 + $0x88] sm:$0xf0] %vm185, %v547
  %556 = vrot.lane.b32.xlu0 %v476, 115
  %v557 = vpop.permute.xlu0 %556
  %558 = vrot.lane.b32.xlu0 %v477, 115
  %v559 = vpop.permute.xlu0 %558
  %560 = vrot.lane.b32.xlu0 %v478, 115
  %v561 = vpop.permute.xlu0 %560
  %v562 = vsel %vm266, %v557, %v559
  %v563 = vsel %vm266, %v559, %v561
  %567 = vst [vmem:[#allocation3 + $0x78] sm:$0xf0] %v562
  %568 = vst [vmem:[#allocation3 + $0x80] sm:$0xf0] %v563
  %569 = vst.msk [vmem:[#allocation3 + $0x88] sm:$0xf0] %vm185, %v561
  %s570 = scalar_lea.vmem %s1, 18
  %v571 = vld [vmem:[%s570] sm:$0x3f]
  %v572 = vunpack.c.l.bf16 %v571
  %v573 = vunpack.c.h.bf16 %v571
  %v575 = vcombine.high %v572, %v572
  %577 = vst [vmem:[#allocation2 + $0x90] sm:$0xf] %v572
  %578 = vst [vmem:[#allocation2 + $0x98] sm:$0xf] %v575
  %579 = vst.msk [vmem:[#allocation2 + $0xa0] sm:$0xf] %vm153, %v573
  %v581 = vrot.slane %v142, 4
  %585 = vst [vmem:[#allocation3 + $0x90] sm:$0xf] %v476
  %586 = vst [vmem:[#allocation3 + $0x98] sm:$0xf] %v477
  %587 = vst.msk [vmem:[#allocation3 + $0xa0] sm:$0xf] %vm153, %v581
  %v588 = vld [vmem:[%s570] sm:$0x3f]
  %v589 = vunpack.c.l.bf16 %v588
  %v590 = vunpack.c.h.bf16 %v588
  %v592 = vcombine.high %v589, %v589
  %593 = vrot.lane.b32.xlu0 %v589, 32
  %v594 = vpop.permute.xlu0 %593
  %v595 = vsel %vm163, %v594, %v590
  %v597 = vrot.slane %v589, 4
  %v598 = vrot.slane %v592, 4
  %v599 = vrot.slane %v595, 4
  %600 = vrot.lane.b32.xlu0 %v597, 127
  %v601 = vpop.permute.xlu0 %600
  %602 = vrot.lane.b32.xlu0 %v598, 127
  %v603 = vpop.permute.xlu0 %602
  %604 = vrot.lane.b32.xlu0 %v599, 127
  %v605 = vpop.permute.xlu0 %604
  %v606 = vsel %vm177, %v601, %v603
  %v607 = vsel %vm177, %v603, %v605
  %611 = vst [vmem:[#allocation2 + $0x90] sm:$0xf0] %v606
  %612 = vst [vmem:[#allocation2 + $0x98] sm:$0xf0] %v607
  %613 = vst.msk [vmem:[#allocation2 + $0xa0] sm:$0xf0] %vm185, %v605
  %614 = vrot.lane.b32.xlu0 %v476, 32
  %v615 = vpop.permute.xlu0 %614
  %v616 = vsel %vm163, %v615, %v581
  %v618 = vrot.slane %v476, 4
  %v619 = vrot.slane %v477, 4
  %v620 = vrot.slane %v616, 4
  %621 = vrot.lane.b32.xlu0 %v618, 127
  %v622 = vpop.permute.xlu0 %621
  %623 = vrot.lane.b32.xlu0 %v619, 127
  %v624 = vpop.permute.xlu0 %623
  %625 = vrot.lane.b32.xlu0 %v620, 127
  %v626 = vpop.permute.xlu0 %625
  %v627 = vsel %vm177, %v622, %v624
  %v628 = vsel %vm177, %v624, %v626
  %632 = vst [vmem:[#allocation3 + $0x90] sm:$0xf0] %v627
  %633 = vst [vmem:[#allocation3 + $0x98] sm:$0xf0] %v628
  %634 = vst.msk [vmem:[#allocation3 + $0xa0] sm:$0xf0] %vm185, %v626
  %v635 = vld [vmem:[%s570] sm:$0x3f]
  %v636 = vunpack.c.l.bf16 %v635
  %v637 = vunpack.c.h.bf16 %v635
  %v639 = vcombine.high %v636, %v636
  %640 = vrot.lane.b32.xlu0 %v636, 32
  %v641 = vpop.permute.xlu0 %640
  %v642 = vsel %vm163, %v641, %v637
  %644 = vrot.lane.b32.xlu0 %v636, 116
  %v645 = vpop.permute.xlu0 %644
  %646 = vrot.lane.b32.xlu0 %v639, 116
  %v647 = vpop.permute.xlu0 %646
  %648 = vrot.lane.b32.xlu0 %v642, 116
  %v649 = vpop.permute.xlu0 %648
  %v650 = vsel %vm225, %v645, %v647
  %v651 = vsel %vm225, %v647, %v649
  %655 = vst [vmem:[#allocation2 + $0xa8] sm:$0xf] %v650
  %656 = vst [vmem:[#allocation2 + $0xb0] sm:$0xf] %v651
  %657 = vst.msk [vmem:[#allocation2 + $0xb8] sm:$0xf] %vm153, %v649
  %658 = vrot.lane.b32.xlu0 %v476, 116
  %v659 = vpop.permute.xlu0 %658
  %660 = vrot.lane.b32.xlu0 %v477, 116
  %v661 = vpop.permute.xlu0 %660
  %662 = vrot.lane.b32.xlu0 %v616, 116
  %v663 = vpop.permute.xlu0 %662
  %v664 = vsel %vm225, %v659, %v661
  %v665 = vsel %vm225, %v661, %v663
  %669 = vst [vmem:[#allocation3 + $0xa8] sm:$0xf] %v664
  %670 = vst [vmem:[#allocation3 + $0xb0] sm:$0xf] %v665
  %671 = vst.msk [vmem:[#allocation3 + $0xb8] sm:$0xf] %vm153, %v663
  %v672 = vld [vmem:[%s570] sm:$0x3f]
  %v673 = vunpack.c.l.bf16 %v672
  %v674 = vunpack.c.h.bf16 %v672
  %v676 = vcombine.high %v673, %v673
  %677 = vrot.lane.b32.xlu0 %v673, 32
  %v678 = vpop.permute.xlu0 %677
  %v679 = vsel %vm163, %v678, %v674
  %v681 = vrot.slane %v673, 4
  %v682 = vrot.slane %v676, 4
  %v683 = vrot.slane %v679, 4
  %684 = vrot.lane.b32.xlu0 %v681, 115
  %v685 = vpop.permute.xlu0 %684
  %686 = vrot.lane.b32.xlu0 %v682, 115
  %v687 = vpop.permute.xlu0 %686
  %688 = vrot.lane.b32.xlu0 %v683, 115
  %v689 = vpop.permute.xlu0 %688
  %v690 = vsel %vm266, %v685, %v687
  %v691 = vsel %vm266, %v687, %v689
  %695 = vst [vmem:[#allocation2 + $0xa8] sm:$0xf0] %v690
  %696 = vst [vmem:[#allocation2 + $0xb0] sm:$0xf0] %v691
  %697 = vst.msk [vmem:[#allocation2 + $0xb8] sm:$0xf0] %vm185, %v689
  %698 = vrot.lane.b32.xlu0 %v618, 115
  %v699 = vpop.permute.xlu0 %698
  %700 = vrot.lane.b32.xlu0 %v619, 115
  %v701 = vpop.permute.xlu0 %700
  %702 = vrot.lane.b32.xlu0 %v620, 115
  %v703 = vpop.permute.xlu0 %702
  %v704 = vsel %vm266, %v699, %v701
  %v705 = vsel %vm266, %v701, %v703
  %709 = vst [vmem:[#allocation3 + $0xa8] sm:$0xf0] %v704
  %710 = vst [vmem:[#allocation3 + $0xb0] sm:$0xf0] %v705
  %711 = vst.msk [vmem:[#allocation3 + $0xb8] sm:$0xf0] %vm185, %v703
  %v712 = vld [vmem:[%s3] sm:$0xf]
  %v713 = vld [vmem:[%s3 + $0x4] sm:$0xf]
  %v714 = vld [vmem:[#allocation2] sm:$0xff]
  %v715 = vld [vmem:[#allocation2 + $0x8] sm:$0xff]
  %v716 = vld [vmem:[#allocation2 + $0x10] sm:$0xff]
  %v717 = vld [vmem:[#allocation2 + $0x18] sm:$0xff]
  %v718 = vld [vmem:[#allocation2 + $0x20] sm:$0xff]
  %v719 = vld [vmem:[#allocation2 + $0x28] sm:$0xff]
  %v720 = vld [vmem:[#allocation2 + $0x30] sm:$0xff]
  %v721 = vld [vmem:[#allocation2 + $0x38] sm:$0xff]
  %v722 = vld [vmem:[#allocation2 + $0x40] sm:$0xff]
  %v723 = vld [vmem:[#allocation2 + $0x48] sm:$0xff]
  %v724 = vld [vmem:[#allocation2 + $0x50] sm:$0xff]
  %v725 = vld [vmem:[#allocation2 + $0x58] sm:$0xff]
  %v726 = vld [vmem:[#allocation2 + $0x60] sm:$0xff]
  %v727 = vld [vmem:[#allocation2 + $0x68] sm:$0xff]
  %v728 = vld [vmem:[#allocation2 + $0x70] sm:$0xff]
  %v729 = vld [vmem:[#allocation2 + $0x78] sm:$0xff]
  %v730 = vld [vmem:[#allocation2 + $0x80] sm:$0xff]
  %v731 = vld [vmem:[#allocation2 + $0x88] sm:$0xff]
  %v732 = vld [vmem:[#allocation2 + $0x90] sm:$0xff]
  %v733 = vld [vmem:[#allocation2 + $0x98] sm:$0xff]
  %v734 = vld [vmem:[#allocation2 + $0xa0] sm:$0xff]
  %v735 = vld [vmem:[#allocation2 + $0xa8] sm:$0xff]
  %v736 = vld [vmem:[#allocation2 + $0xb0] sm:$0xff]
  %v737 = vld [vmem:[#allocation2 + $0xb8] sm:$0xff]
  %v738 = vpack.c.bf16 %v717, %v714
  %v739 = vpack.c.bf16 %v718, %v715
  %v740 = vpack.c.bf16 %v719, %v716
  %v741 = vpack.c.bf16 %v723, %v720
  %v742 = vpack.c.bf16 %v724, %v721
  %v743 = vpack.c.bf16 %v725, %v722
  %v744 = vpack.c.bf16 %v729, %v726
  %v745 = vpack.c.bf16 %v730, %v727
  %v746 = vpack.c.bf16 %v731, %v728
  %v747 = vpack.c.bf16 %v735, %v732
  %v748 = vpack.c.bf16 %v736, %v733
  %v749 = vpack.c.bf16 %v737, %v734
  %v750 = vld [vmem:[%s4] sm:$0xf]
  %v751 = vld [vmem:[%s4 + $0x4] sm:$0xf]
  %v752 = vld [vmem:[#allocation3] sm:$0xff]
  %v753 = vld [vmem:[#allocation3 + $0x8] sm:$0xff]
  %v754 = vld [vmem:[#allocation3 + $0x10] sm:$0xff]
  %v755 = vld [vmem:[#allocation3 + $0x18] sm:$0xff]
  %v756 = vld [vmem:[#allocation3 + $0x20] sm:$0xff]
  %v757 = vld [vmem:[#allocation3 + $0x28] sm:$0xff]
  %v758 = vld [vmem:[#allocation3 + $0x30] sm:$0xff]
  %v759 = vld [vmem:[#allocation3 + $0x38] sm:$0xff]
  %v760 = vld [vmem:[#allocation3 + $0x40] sm:$0xff]
  %v761 = vld [vmem:[#allocation3 + $0x48] sm:$0xff]
  %v762 = vld [vmem:[#allocation3 + $0x50] sm:$0xff]
  %v763 = vld [vmem:[#allocation3 + $0x58] sm:$0xff]
  %v764 = vld [vmem:[#allocation3 + $0x60] sm:$0xff]
  %v765 = vld [vmem:[#allocation3 + $0x68] sm:$0xff]
  %v766 = vld [vmem:[#allocation3 + $0x70] sm:$0xff]
  %v767 = vld [vmem:[#allocation3 + $0x78] sm:$0xff]
  %v768 = vld [vmem:[#allocation3 + $0x80] sm:$0xff]
  %v769 = vld [vmem:[#allocation3 + $0x88] sm:$0xff]
  %v770 = vld [vmem:[#allocation3 + $0x90] sm:$0xff]
  %v771 = vld [vmem:[#allocation3 + $0x98] sm:$0xff]
  %v772 = vld [vmem:[#allocation3 + $0xa0] sm:$0xff]
  %v773 = vld [vmem:[#allocation3 + $0xa8] sm:$0xff]
  %v774 = vld [vmem:[#allocation3 + $0xb0] sm:$0xff]
  %v775 = vld [vmem:[#allocation3 + $0xb8] sm:$0xff]
  %v776 = vpack.c.bf16 %v755, %v752
  %v777 = vpack.c.bf16 %v756, %v753
  %v778 = vpack.c.bf16 %v757, %v754
  %v779 = vpack.c.bf16 %v761, %v758
  %v780 = vpack.c.bf16 %v762, %v759
  %v781 = vpack.c.bf16 %v763, %v760
  %v782 = vpack.c.bf16 %v767, %v764
  %v783 = vpack.c.bf16 %v768, %v765
  %v784 = vpack.c.bf16 %v769, %v766
  %v785 = vpack.c.bf16 %v773, %v770
  %v786 = vpack.c.bf16 %v774, %v771
  %v787 = vpack.c.bf16 %v775, %v772
  %v790 = vunpack.c.l.b16 %v750
  %v791 = vunpack.c.l.b16 %v751
  %v792 = vpack.c.b16 %v791, %v790
  %vm793 = vcmask 523264
  %v795 = vsel %vm793, %v792, 0
  %797 = vmatprep.subr.bf16.mxu0 %v777
  %798 = vmatpush1.bf16.msra.mxu0 %v776
  %799 = vmatprep.subr.bf16.mxu0 %v780
  %800 = vmatpush1.bf16.msra.mxu0 %v779
  %801 = vmatprep.subr.bf16.mxu0 %v783
  %802 = vmatpush1.bf16.msra.mxu0 %v782
  %803 = vmatprep.subr.bf16.mxu0 %v786
  %804 = vmatpush1.bf16.msra.mxu0 %v785
  %805 = vmatprep.subr.bf16.mxu0 0
  %806 = vmatpush1.bf16.msra.mxu0 0
  %807 = vmatprep.subr.bf16.mxu0 0
  %808 = vmatpush1.bf16.msra.mxu0 0
  %809 = vmatprep.subr.bf16.mxu0 0
  %810 = vmatpush1.bf16.msra.mxu0 0
  %811 = vmatprep.subr.bf16.mxu0 0
  %812 = vmatpush1.bf16.msra.mxu0 0
  %813 = vmatprep.subr.bf16.mxu0 0
  %814 = vmatpush1.bf16.msra.mxu0 0
  %815 = vmatprep.subr.bf16.mxu0 0
  %816 = vmatpush1.bf16.msra.mxu0 0
  %817 = vmatprep.subr.bf16.mxu0 0
  %818 = vmatpush1.bf16.msra.mxu0 0
  %819 = vmatprep.subr.bf16.mxu0 0
  %820 = vmatpush1.bf16.msra.mxu0 0
  %821 = vmatprep.subr.bf16.mxu0 0
  %822 = vmatpush1.bf16.msra.mxu0 0
  %823 = vmatprep.subr.bf16.mxu0 0
  %824 = vmatpush1.bf16.msra.mxu0 0
  %825 = vmatprep.subr.bf16.mxu0 0
  %826 = vmatpush1.bf16.msra.mxu0 0
  %827 = vmatprep.subr.bf16.mxu0 0
  %828 = vmatpush1.bf16.msra.mxu0 0
  %829 = vmatprep.mubr.bf16.mxu0 0
  %830 = vmatmul.mubr.bf16.gmra.mrb[0].mxu0 %v795
  %v831 = vpop.f32.mrb[0].mxu0
  %v832 = vadd.f32 0.0, %v831
  %v833 = vpop.f32.mrb[0].mxu0
  %v834 = vadd.f32 0.0, %v833
  %v835 = vpop.f32.mrb[0].mxu0
  %v836 = vadd.f32 0.0, %v835
  %v837 = vpop.f32.mrb[0].mxu0
  %v838 = vadd.f32 0.0, %v837
  %839 = vdwg.mxu0
  %840 = vmatprep.subr.bf16.mxu0 0
  %841 = vmatpush1.bf16.msra.mxu0 %v778
  %842 = vmatprep.subr.bf16.mxu0 0
  %843 = vmatpush1.bf16.msra.mxu0 %v781
  %844 = vmatprep.subr.bf16.mxu0 0
  %845 = vmatpush1.bf16.msra.mxu0 %v784
  %846 = vmatprep.subr.bf16.mxu0 0
  %847 = vmatpush1.bf16.msra.mxu0 %v787
  %848 = vmatprep.subr.bf16.mxu0 0
  %849 = vmatpush1.bf16.msra.mxu0 0
  %850 = vmatprep.subr.bf16.mxu0 0
  %851 = vmatpush1.bf16.msra.mxu0 0
  %852 = vmatprep.subr.bf16.mxu0 0
  %853 = vmatpush1.bf16.msra.mxu0 0
  %854 = vmatprep.subr.bf16.mxu0 0
  %855 = vmatpush1.bf16.msra.mxu0 0
  %856 = vmatprep.subr.bf16.mxu0 0
  %857 = vmatpush1.bf16.msra.mxu0 0
  %858 = vmatprep.subr.bf16.mxu0 0
  %859 = vmatpush1.bf16.msra.mxu0 0
  %860 = vmatprep.subr.bf16.mxu0 0
  %861 = vmatpush1.bf16.msra.mxu0 0
  %862 = vmatprep.subr.bf16.mxu0 0
  %863 = vmatpush1.bf16.msra.mxu0 0
  %864 = vmatprep.subr.bf16.mxu0 0
  %865 = vmatpush1.bf16.msra.mxu0 0
  %866 = vmatprep.subr.bf16.mxu0 0
  %867 = vmatpush1.bf16.msra.mxu0 0
  %868 = vmatprep.subr.bf16.mxu0 0
  %869 = vmatpush1.bf16.msra.mxu0 0
  %870 = vmatprep.subr.bf16.mxu0 0
  %871 = vmatpush1.bf16.msra.mxu0 0
  %872 = vmatprep.mubr.bf16.mxu0 0
  %873 = vmatmul.mubr.bf16.gmra.mrb[0].mxu0 %v795
  %v874 = vpop.f32.mrb[0].mxu0
  %v875 = vadd.f32 0.0, %v874
  %v876 = vpop.f32.mrb[0].mxu0
  %v877 = vpop.f32.mrb[0].mxu0
  %v878 = vadd.f32 0.0, %v877
  %v879 = vpop.f32.mrb[0].mxu0
  %880 = vdwg.mxu0
  %v883 = vunpack.c.l.b16 %v712
  %v884 = vunpack.c.l.b16 %v713
  %v885 = vpack.c.b16 %v884, %v883
  %v887 = vsel %vm793, %v885, 0
  %889 = vmatprep.subr.bf16.mxu0 %v739
  %890 = vmatpush1.bf16.msra.mxu0 %v738
  %891 = vmatprep.subr.bf16.mxu0 %v742
  %892 = vmatpush1.bf16.msra.mxu0 %v741
  %893 = vmatprep.subr.bf16.mxu0 %v745
  %894 = vmatpush1.bf16.msra.mxu0 %v744
  %895 = vmatprep.subr.bf16.mxu0 %v748
  %896 = vmatpush1.bf16.msra.mxu0 %v747
  %897 = vmatprep.subr.bf16.mxu0 0
  %898 = vmatpush1.bf16.msra.mxu0 0
  %899 = vmatprep.subr.bf16.mxu0 0
  %900 = vmatpush1.bf16.msra.mxu0 0
  %901 = vmatprep.subr.bf16.mxu0 0
  %902 = vmatpush1.bf16.msra.mxu0 0
  %903 = vmatprep.subr.bf16.mxu0 0
  %904 = vmatpush1.bf16.msra.mxu0 0
  %905 = vmatprep.subr.bf16.mxu0 0
  %906 = vmatpush1.bf16.msra.mxu0 0
  %907 = vmatprep.subr.bf16.mxu0 0
  %908 = vmatpush1.bf16.msra.mxu0 0
  %909 = vmatprep.subr.bf16.mxu0 0
  %910 = vmatpush1.bf16.msra.mxu0 0
  %911 = vmatprep.subr.bf16.mxu0 0
  %912 = vmatpush1.bf16.msra.mxu0 0
  %913 = vmatprep.subr.bf16.mxu0 0
  %914 = vmatpush1.bf16.msra.mxu0 0
  %915 = vmatprep.subr.bf16.mxu0 0
  %916 = vmatpush1.bf16.msra.mxu0 0
  %917 = vmatprep.subr.bf16.mxu0 0
  %918 = vmatpush1.bf16.msra.mxu0 0
  %919 = vmatprep.subr.bf16.mxu0 0
  %920 = vmatpush1.bf16.msra.mxu0 0
  %921 = vmatprep.mubr.bf16.mxu0 0
  %922 = vmatmul.mubr.bf16.gmra.mrb[0].mxu0 %v887
  %v923 = vpop.f32.mrb[0].mxu0
  %v924 = vadd.f32 %v832, %v923
  %v925 = vpop.f32.mrb[0].mxu0
  %v926 = vadd.f32 %v834, %v925
  %v927 = vpop.f32.mrb[0].mxu0
  %v928 = vadd.f32 %v836, %v927
  %v929 = vpop.f32.mrb[0].mxu0
  %v930 = vadd.f32 %v838, %v929
  %931 = vdwg.mxu0
  %932 = vmatprep.subr.bf16.mxu0 0
  %933 = vmatpush1.bf16.msra.mxu0 %v740
  %934 = vmatprep.subr.bf16.mxu0 0
  %935 = vmatpush1.bf16.msra.mxu0 %v743
  %936 = vmatprep.subr.bf16.mxu0 0
  %937 = vmatpush1.bf16.msra.mxu0 %v746
  %938 = vmatprep.subr.bf16.mxu0 0
  %939 = vmatpush1.bf16.msra.mxu0 %v749
  %940 = vmatprep.subr.bf16.mxu0 0
  %941 = vmatpush1.bf16.msra.mxu0 0
  %942 = vmatprep.subr.bf16.mxu0 0
  %943 = vmatpush1.bf16.msra.mxu0 0
  %944 = vmatprep.subr.bf16.mxu0 0
  %945 = vmatpush1.bf16.msra.mxu0 0
  %946 = vmatprep.subr.bf16.mxu0 0
  %947 = vmatpush1.bf16.msra.mxu0 0
  %948 = vmatprep.subr.bf16.mxu0 0
  %949 = vmatpush1.bf16.msra.mxu0 0
  %950 = vmatprep.subr.bf16.mxu0 0
  %951 = vmatpush1.bf16.msra.mxu0 0
  %952 = vmatprep.subr.bf16.mxu0 0
  %953 = vmatpush1.bf16.msra.mxu0 0
  %954 = vmatprep.subr.bf16.mxu0 0
  %955 = vmatpush1.bf16.msra.mxu0 0
  %956 = vmatprep.subr.bf16.mxu0 0
  %957 = vmatpush1.bf16.msra.mxu0 0
  %958 = vmatprep.subr.bf16.mxu0 0
  %959 = vmatpush1.bf16.msra.mxu0 0
  %960 = vmatprep.subr.bf16.mxu0 0
  %961 = vmatpush1.bf16.msra.mxu0 0
  %962 = vmatprep.subr.bf16.mxu0 0
  %963 = vmatpush1.bf16.msra.mxu0 0
  %964 = vmatprep.mubr.bf16.mxu0 0
  %965 = vmatmul.mubr.bf16.gmra.mrb[0].mxu0 %v887
  %v966 = vpop.f32.mrb[0].mxu0
  %v967 = vadd.f32 %v875, %v966
  %v968 = vpop.f32.mrb[0].mxu0
  %v969 = vpop.f32.mrb[0].mxu0
  %v970 = vadd.f32 %v878, %v969
  %v971 = vpop.f32.mrb[0].mxu0
  %972 = vdwg.mxu0
  %v973 = vld [vmem:[%s5] sm:$0xff]
  %v974 = vld [vmem:[%s5 + $0x8] sm:$0xff]
  %976 = vset.pattern.permute.xlu0 0
  %977 = vperm.xlu0 %976, %v973
  %v978 = vpop.permute.xlu0 %977
  %981 = vset.pattern.permute.xlu0 0
  %982 = vperm.xlu0 %981, %v974
  %v983 = vpop.permute.xlu0 %982
  %v985 = vadd.f32 %v924, %v978
  %v986 = vadd.f32 %v926, %v978
  %v987 = vadd.f32 %v967, %v978
  %v988 = vadd.f32 %v928, %v983
  %v989 = vadd.f32 %v930, %v983
  %v990 = vadd.f32 %v970, %v983
  %v991 = vmax.f32 %v985, 0.0
  %v992 = vmax.f32 %v986, 0.0
  %v993 = vmax.f32 %v987, 0.0
  %v994 = vmax.f32 %v988, 0.0
  %v995 = vmax.f32 %v989, 0.0
  %v996 = vmax.f32 %v990, 0.0
  %997 = vst [vmem:[#allocation4] sm:$0xf] %v991
  %998 = vst [vmem:[#allocation4 + $0x8] sm:$0xf] %v992
  %999 = vst.msk [vmem:[#allocation4 + $0x10] sm:$0xf] %vm153, %v993
  %1000 = vrot.lane.b32.xlu0 %v991, 32
  %v1001 = vpop.permute.xlu0 %1000
  %v1002 = vsel %vm163, %v1001, %v993
  %v1006 = vrot.slane %v991, 4
  %v1007 = vrot.slane %v992, 4
  %v1008 = vrot.slane %v1002, 4
  %1009 = vrot.lane.b32.xlu0 %v1006, 127
  %v1010 = vpop.permute.xlu0 %1009
  %1011 = vrot.lane.b32.xlu0 %v1007, 127
  %v1012 = vpop.permute.xlu0 %1011
  %1013 = vrot.lane.b32.xlu0 %v1008, 127
  %v1014 = vpop.permute.xlu0 %1013
  %v1015 = vsel %vm177, %v1010, %v1012
  %v1016 = vsel %vm177, %v1012, %v1014
  %1020 = vst [vmem:[#allocation4] sm:$0xf0] %v1015
  %1021 = vst [vmem:[#allocation4 + $0x8] sm:$0xf0] %v1016
  %1022 = vst.msk [vmem:[#allocation4 + $0x10] sm:$0xf0] %vm185, %v1014
  %1023 = vrot.lane.b32.xlu0 %v991, 116
  %v1024 = vpop.permute.xlu0 %1023
  %1025 = vrot.lane.b32.xlu0 %v992, 116
  %v1026 = vpop.permute.xlu0 %1025
  %1027 = vrot.lane.b32.xlu0 %v1002, 116
  %v1028 = vpop.permute.xlu0 %1027
  %v1029 = vsel %vm225, %v1024, %v1026
  %v1030 = vsel %vm225, %v1026, %v1028
  %1034 = vst [vmem:[#allocation4 + $0x18] sm:$0xf] %v1029
  %1035 = vst [vmem:[#allocation4 + $0x20] sm:$0xf] %v1030
  %1036 = vst.msk [vmem:[#allocation4 + $0x28] sm:$0xf] %vm153, %v1028
  %1037 = vrot.lane.b32.xlu0 %v1006, 115
  %v1038 = vpop.permute.xlu0 %1037
  %1039 = vrot.lane.b32.xlu0 %v1007, 115
  %v1040 = vpop.permute.xlu0 %1039
  %1041 = vrot.lane.b32.xlu0 %v1008, 115
  %v1042 = vpop.permute.xlu0 %1041
  %v1043 = vsel %vm266, %v1038, %v1040
  %v1044 = vsel %vm266, %v1040, %v1042
  %1048 = vst [vmem:[#allocation4 + $0x18] sm:$0xf0] %v1043
  %1049 = vst [vmem:[#allocation4 + $0x20] sm:$0xf0] %v1044
  %1050 = vst.msk [vmem:[#allocation4 + $0x28] sm:$0xf0] %vm185, %v1042
  %v1052 = vrot.slane %v993, 4
  %1056 = vst [vmem:[#allocation4 + $0x30] sm:$0xf] %v1006
  %1057 = vst [vmem:[#allocation4 + $0x38] sm:$0xf] %v1007
  %1058 = vst.msk [vmem:[#allocation4 + $0x40] sm:$0xf] %vm153, %v1052
  %1059 = vrot.lane.b32.xlu0 %v1006, 32
  %v1060 = vpop.permute.xlu0 %1059
  %v1061 = vsel %vm163, %v1060, %v1052
  %v1063 = vrot.slane %v1006, 4
  %v1064 = vrot.slane %v1007, 4
  %v1065 = vrot.slane %v1061, 4
  %1066 = vrot.lane.b32.xlu0 %v1063, 127
  %v1067 = vpop.permute.xlu0 %1066
  %1068 = vrot.lane.b32.xlu0 %v1064, 127
  %v1069 = vpop.permute.xlu0 %1068
  %1070 = vrot.lane.b32.xlu0 %v1065, 127
  %v1071 = vpop.permute.xlu0 %1070
  %v1072 = vsel %vm177, %v1067, %v1069
  %v1073 = vsel %vm177, %v1069, %v1071
  %1077 = vst [vmem:[#allocation4 + $0x30] sm:$0xf0] %v1072
  %1078 = vst [vmem:[#allocation4 + $0x38] sm:$0xf0] %v1073
  %1079 = vst.msk [vmem:[#allocation4 + $0x40] sm:$0xf0] %vm185, %v1071
  %1080 = vrot.lane.b32.xlu0 %v1006, 116
  %v1081 = vpop.permute.xlu0 %1080
  %1082 = vrot.lane.b32.xlu0 %v1007, 116
  %v1083 = vpop.permute.xlu0 %1082
  %1084 = vrot.lane.b32.xlu0 %v1061, 116
  %v1085 = vpop.permute.xlu0 %1084
  %v1086 = vsel %vm225, %v1081, %v1083
  %v1087 = vsel %vm225, %v1083, %v1085
  %1091 = vst [vmem:[#allocation4 + $0x48] sm:$0xf] %v1086
  %1092 = vst [vmem:[#allocation4 + $0x50] sm:$0xf] %v1087
  %1093 = vst.msk [vmem:[#allocation4 + $0x58] sm:$0xf] %vm153, %v1085
  %1094 = vrot.lane.b32.xlu0 %v1063, 115
  %v1095 = vpop.permute.xlu0 %1094
  %1096 = vrot.lane.b32.xlu0 %v1064, 115
  %v1097 = vpop.permute.xlu0 %1096
  %1098 = vrot.lane.b32.xlu0 %v1065, 115
  %v1099 = vpop.permute.xlu0 %1098
  %v1100 = vsel %vm266, %v1095, %v1097
  %v1101 = vsel %vm266, %v1097, %v1099
  %1105 = vst [vmem:[#allocation4 + $0x48] sm:$0xf0] %v1100
  %1106 = vst [vmem:[#allocation4 + $0x50] sm:$0xf0] %v1101
  %1107 = vst.msk [vmem:[#allocation4 + $0x58] sm:$0xf0] %vm185, %v1099
  %1108 = vst [vmem:[#allocation4 + $0x60] sm:$0xf] %v994
  %1109 = vst [vmem:[#allocation4 + $0x68] sm:$0xf] %v995
  %1110 = vst.msk [vmem:[#allocation4 + $0x70] sm:$0xf] %vm153, %v996
  %1111 = vrot.lane.b32.xlu0 %v994, 32
  %v1112 = vpop.permute.xlu0 %1111
  %v1113 = vsel %vm163, %v1112, %v996
  %v1117 = vrot.slane %v994, 4
  %v1118 = vrot.slane %v995, 4
  %v1119 = vrot.slane %v1113, 4
  %1120 = vrot.lane.b32.xlu0 %v1117, 127
  %v1121 = vpop.permute.xlu0 %1120
  %1122 = vrot.lane.b32.xlu0 %v1118, 127
  %v1123 = vpop.permute.xlu0 %1122
  %1124 = vrot.lane.b32.xlu0 %v1119, 127
  %v1125 = vpop.permute.xlu0 %1124
  %v1126 = vsel %vm177, %v1121, %v1123
  %v1127 = vsel %vm177, %v1123, %v1125
  %1131 = vst [vmem:[#allocation4 + $0x60] sm:$0xf0] %v1126
  %1132 = vst [vmem:[#allocation4 + $0x68] sm:$0xf0] %v1127
  %1133 = vst.msk [vmem:[#allocation4 + $0x70] sm:$0xf0] %vm185, %v1125
  %1134 = vrot.lane.b32.xlu0 %v994, 116
  %v1135 = vpop.permute.xlu0 %1134
  %1136 = vrot.lane.b32.xlu0 %v995, 116
  %v1137 = vpop.permute.xlu0 %1136
  %1138 = vrot.lane.b32.xlu0 %v1113, 116
  %v1139 = vpop.permute.xlu0 %1138
  %v1140 = vsel %vm225, %v1135, %v1137
  %v1141 = vsel %vm225, %v1137, %v1139
  %1145 = vst [vmem:[#allocation4 + $0x78] sm:$0xf] %v1140
  %1146 = vst [vmem:[#allocation4 + $0x80] sm:$0xf] %v1141
  %1147 = vst.msk [vmem:[#allocation4 + $0x88] sm:$0xf] %vm153, %v1139
  %1148 = vrot.lane.b32.xlu0 %v1117, 115
  %v1149 = vpop.permute.xlu0 %1148
  %1150 = vrot.lane.b32.xlu0 %v1118, 115
  %v1151 = vpop.permute.xlu0 %1150
  %1152 = vrot.lane.b32.xlu0 %v1119, 115
  %v1153 = vpop.permute.xlu0 %1152
  %v1154 = vsel %vm266, %v1149, %v1151
  %v1155 = vsel %vm266, %v1151, %v1153
  %1159 = vst [vmem:[#allocation4 + $0x78] sm:$0xf0] %v1154
  %1160 = vst [vmem:[#allocation4 + $0x80] sm:$0xf0] %v1155
  %1161 = vst.msk [vmem:[#allocation4 + $0x88] sm:$0xf0] %vm185, %v1153
  %v1163 = vrot.slane %v996, 4
  %1167 = vst [vmem:[#allocation4 + $0x90] sm:$0xf] %v1117
  %1168 = vst [vmem:[#allocation4 + $0x98] sm:$0xf] %v1118
  %1169 = vst.msk [vmem:[#allocation4 + $0xa0] sm:$0xf] %vm153, %v1163
  %1170 = vrot.lane.b32.xlu0 %v1117, 32
  %v1171 = vpop.permute.xlu0 %1170
  %v1172 = vsel %vm163, %v1171, %v1163
  %v1174 = vrot.slane %v1117, 4
  %v1175 = vrot.slane %v1118, 4
  %v1176 = vrot.slane %v1172, 4
  %1177 = vrot.lane.b32.xlu0 %v1174, 127
  %v1178 = vpop.permute.xlu0 %1177
  %1179 = vrot.lane.b32.xlu0 %v1175, 127
  %v1180 = vpop.permute.xlu0 %1179
  %1181 = vrot.lane.b32.xlu0 %v1176, 127
  %v1182 = vpop.permute.xlu0 %1181
  %v1183 = vsel %vm177, %v1178, %v1180
  %v1184 = vsel %vm177, %v1180, %v1182
  %1188 = vst [vmem:[#allocation4 + $0x90] sm:$0xf0] %v1183
  %1189 = vst [vmem:[#allocation4 + $0x98] sm:$0xf0] %v1184
  %1190 = vst.msk [vmem:[#allocation4 + $0xa0] sm:$0xf0] %vm185, %v1182
  %1191 = vrot.lane.b32.xlu0 %v1117, 116
  %v1192 = vpop.permute.xlu0 %1191
  %1193 = vrot.lane.b32.xlu0 %v1118, 116
  %v1194 = vpop.permute.xlu0 %1193
  %1195 = vrot.lane.b32.xlu0 %v1172, 116
  %v1196 = vpop.permute.xlu0 %1195
  %v1197 = vsel %vm225, %v1192, %v1194
  %v1198 = vsel %vm225, %v1194, %v1196
  %1202 = vst [vmem:[#allocation4 + $0xa8] sm:$0xf] %v1197
  %1203 = vst [vmem:[#allocation4 + $0xb0] sm:$0xf] %v1198
  %1204 = vst.msk [vmem:[#allocation4 + $0xb8] sm:$0xf] %vm153, %v1196
  %1205 = vrot.lane.b32.xlu0 %v1174, 115
  %v1206 = vpop.permute.xlu0 %1205
  %1207 = vrot.lane.b32.xlu0 %v1175, 115
  %v1208 = vpop.permute.xlu0 %1207
  %1209 = vrot.lane.b32.xlu0 %v1176, 115
  %v1210 = vpop.permute.xlu0 %1209
  %v1211 = vsel %vm266, %v1206, %v1208
  %v1212 = vsel %vm266, %v1208, %v1210
  %1216 = vst [vmem:[#allocation4 + $0xa8] sm:$0xf0] %v1211
  %1217 = vst [vmem:[#allocation4 + $0xb0] sm:$0xf0] %v1212
  %1218 = vst.msk [vmem:[#allocation4 + $0xb8] sm:$0xf0] %vm185, %v1210
  %v1219 = vld [vmem:[%s6] sm:$0xf]
  %v1220 = vld [vmem:[%s6 + $0x4] sm:$0xf]
  %v1221 = vld [vmem:[#allocation4] sm:$0xff]
  %v1222 = vld [vmem:[#allocation4 + $0x8] sm:$0xff]
  %v1223 = vld [vmem:[#allocation4 + $0x10] sm:$0xff]
  %v1224 = vld [vmem:[#allocation4 + $0x18] sm:$0xff]
  %v1225 = vld [vmem:[#allocation4 + $0x20] sm:$0xff]
  %v1226 = vld [vmem:[#allocation4 + $0x28] sm:$0xff]
  %v1227 = vld [vmem:[#allocation4 + $0x30] sm:$0xff]
  %v1228 = vld [vmem:[#allocation4 + $0x38] sm:$0xff]
  %v1229 = vld [vmem:[#allocation4 + $0x40] sm:$0xff]
  %v1230 = vld [vmem:[#allocation4 + $0x48] sm:$0xff]
  %v1231 = vld [vmem:[#allocation4 + $0x50] sm:$0xff]
  %v1232 = vld [vmem:[#allocation4 + $0x58] sm:$0xff]
  %v1233 = vld [vmem:[#allocation4 + $0x60] sm:$0xff]
  %v1234 = vld [vmem:[#allocation4 + $0x68] sm:$0xff]
  %v1235 = vld [vmem:[#allocation4 + $0x70] sm:$0xff]
  %v1236 = vld [vmem:[#allocation4 + $0x78] sm:$0xff]
  %v1237 = vld [vmem:[#allocation4 + $0x80] sm:$0xff]
  %v1238 = vld [vmem:[#allocation4 + $0x88] sm:$0xff]
  %v1239 = vld [vmem:[#allocation4 + $0x90] sm:$0xff]
  %v1240 = vld [vmem:[#allocation4 + $0x98] sm:$0xff]
  %v1241 = vld [vmem:[#allocation4 + $0xa0] sm:$0xff]
  %v1242 = vld [vmem:[#allocation4 + $0xa8] sm:$0xff]
  %v1243 = vld [vmem:[#allocation4 + $0xb0] sm:$0xff]
  %v1244 = vld [vmem:[#allocation4 + $0xb8] sm:$0xff]
  %v1245 = vpack.c.bf16 %v1224, %v1221
  %v1246 = vpack.c.bf16 %v1225, %v1222
  %v1247 = vpack.c.bf16 %v1226, %v1223
  %v1248 = vpack.c.bf16 %v1230, %v1227
  %v1249 = vpack.c.bf16 %v1231, %v1228
  %v1250 = vpack.c.bf16 %v1232, %v1229
  %v1251 = vpack.c.bf16 %v1236, %v1233
  %v1252 = vpack.c.bf16 %v1237, %v1234
  %v1253 = vpack.c.bf16 %v1238, %v1235
  %v1254 = vpack.c.bf16 %v1242, %v1239
  %v1255 = vpack.c.bf16 %v1243, %v1240
  %v1256 = vpack.c.bf16 %v1244, %v1241
  %v1257 = vld [vmem:[%s7] sm:$0xff]
  %v1258 = vld [vmem:[%s7 + $0x8] sm:$0xff]
  %1260 = vset.pattern.permute.xlu0 0
  %1261 = vperm.xlu0 %1260, %v1257
  %v1262 = vpop.permute.xlu0 %1261
  %1265 = vset.pattern.permute.xlu0 0
  %1266 = vperm.xlu0 %1265, %v1258
  %v1267 = vpop.permute.xlu0 %1266
  %v1271 = vunpack.c.l.b16 %v1219
  %v1272 = vunpack.c.l.b16 %v1220
  %v1273 = vpack.c.b16 %v1272, %v1271
  %v1275 = vsel %vm793, %v1273, 0
  %1277 = vmatprep.subr.bf16.mxu0 %v1246
  %1278 = vmatpush1.bf16.msra.mxu0 %v1245
  %1279 = vmatprep.subr.bf16.mxu0 %v1249
  %1280 = vmatpush1.bf16.msra.mxu0 %v1248
  %1281 = vmatprep.subr.bf16.mxu0 %v1252
  %1282 = vmatpush1.bf16.msra.mxu0 %v1251
  %1283 = vmatprep.subr.bf16.mxu0 %v1255
  %1284 = vmatpush1.bf16.msra.mxu0 %v1254
  %1285 = vmatprep.subr.bf16.mxu0 0
  %1286 = vmatpush1.bf16.msra.mxu0 0
  %1287 = vmatprep.subr.bf16.mxu0 0
  %1288 = vmatpush1.bf16.msra.mxu0 0
  %1289 = vmatprep.subr.bf16.mxu0 0
  %1290 = vmatpush1.bf16.msra.mxu0 0
  %1291 = vmatprep.subr.bf16.mxu0 0
  %1292 = vmatpush1.bf16.msra.mxu0 0
  %1293 = vmatprep.subr.bf16.mxu0 0
  %1294 = vmatpush1.bf16.msra.mxu0 0
  %1295 = vmatprep.subr.bf16.mxu0 0
  %1296 = vmatpush1.bf16.msra.mxu0 0
  %1297 = vmatprep.subr.bf16.mxu0 0
  %1298 = vmatpush1.bf16.msra.mxu0 0
  %1299 = vmatprep.subr.bf16.mxu0 0
  %1300 = vmatpush1.bf16.msra.mxu0 0
  %1301 = vmatprep.subr.bf16.mxu0 0
  %1302 = vmatpush1.bf16.msra.mxu0 0
  %1303 = vmatprep.subr.bf16.mxu0 0
  %1304 = vmatpush1.bf16.msra.mxu0 0
  %1305 = vmatprep.subr.bf16.mxu0 0
  %1306 = vmatpush1.bf16.msra.mxu0 0
  %1307 = vmatprep.subr.bf16.mxu0 0
  %1308 = vmatpush1.bf16.msra.mxu0 0
  %1309 = vmatprep.mubr.bf16.mxu0 0
  %1310 = vmatmul.mubr.bf16.gmra.mrb[0].mxu0 %v1275
  %v1311 = vpop.f32.mrb[0].mxu0
  %v1312 = vadd.f32 %v1262, %v1311
  %v1313 = vpop.f32.mrb[0].mxu0
  %v1314 = vadd.f32 %v1262, %v1313
  %v1315 = vpop.f32.mrb[0].mxu0
  %v1316 = vadd.f32 %v1267, %v1315
  %v1317 = vpop.f32.mrb[0].mxu0
  %v1318 = vadd.f32 %v1267, %v1317
  %1319 = vdwg.mxu0
  %1320 = vmatprep.subr.bf16.mxu0 0
  %1321 = vmatpush1.bf16.msra.mxu0 %v1247
  %1322 = vmatprep.subr.bf16.mxu0 0
  %1323 = vmatpush1.bf16.msra.mxu0 %v1250
  %1324 = vmatprep.subr.bf16.mxu0 0
  %1325 = vmatpush1.bf16.msra.mxu0 %v1253
  %1326 = vmatprep.subr.bf16.mxu0 0
  %1327 = vmatpush1.bf16.msra.mxu0 %v1256
  %1328 = vmatprep.subr.bf16.mxu0 0
  %1329 = vmatpush1.bf16.msra.mxu0 0
  %1330 = vmatprep.subr.bf16.mxu0 0
  %1331 = vmatpush1.bf16.msra.mxu0 0
  %1332 = vmatprep.subr.bf16.mxu0 0
  %1333 = vmatpush1.bf16.msra.mxu0 0
  %1334 = vmatprep.subr.bf16.mxu0 0
  %1335 = vmatpush1.bf16.msra.mxu0 0
  %1336 = vmatprep.subr.bf16.mxu0 0
  %1337 = vmatpush1.bf16.msra.mxu0 0
  %1338 = vmatprep.subr.bf16.mxu0 0
  %1339 = vmatpush1.bf16.msra.mxu0 0
  %1340 = vmatprep.subr.bf16.mxu0 0
  %1341 = vmatpush1.bf16.msra.mxu0 0
  %1342 = vmatprep.subr.bf16.mxu0 0
  %1343 = vmatpush1.bf16.msra.mxu0 0
  %1344 = vmatprep.subr.bf16.mxu0 0
  %1345 = vmatpush1.bf16.msra.mxu0 0
  %1346 = vmatprep.subr.bf16.mxu0 0
  %1347 = vmatpush1.bf16.msra.mxu0 0
  %1348 = vmatprep.subr.bf16.mxu0 0
  %1349 = vmatpush1.bf16.msra.mxu0 0
  %1350 = vmatprep.subr.bf16.mxu0 0
  %1351 = vmatpush1.bf16.msra.mxu0 0
  %1352 = vmatprep.mubr.bf16.mxu0 0
  %1353 = vmatmul.mubr.bf16.gmra.mrb[0].mxu0 %v1275
  %v1354 = vpop.f32.mrb[0].mxu0
  %v1355 = vadd.f32 %v1262, %v1354
  %v1356 = vpop.f32.mrb[0].mxu0
  %v1357 = vpop.f32.mrb[0].mxu0
  %v1358 = vadd.f32 %v1267, %v1357
  %v1359 = vpop.f32.mrb[0].mxu0
  %1360 = vdwg.mxu0
  %v1361 = vmax.f32 %v1312, 0.0
  %v1362 = vmax.f32 %v1314, 0.0
  %v1363 = vmax.f32 %v1355, 0.0
  %v1364 = vmax.f32 %v1316, 0.0
  %v1365 = vmax.f32 %v1318, 0.0
  %v1366 = vmax.f32 %v1358, 0.0
  %1367 = vst [vmem:[%s8] sm:$0xff] %v1361
  %1368 = vst [vmem:[%s8 + $0x8] sm:$0xff] %v1362
  %vm1369 = vcmask 261120
  %1370 = vst.msk [vmem:[%s8 + $0x10] sm:$0xff] %vm1369, %v1363
  %1371 = vst [vmem:[%s8 + $0x18] sm:$0xff] %v1364
  %1372 = vst [vmem:[%s8 + $0x20] sm:$0xff] %v1365
  %1373 = vst.msk [vmem:[%s8 + $0x28] sm:$0xff] %vm1369, %v1366
  // Predicated region
  $region34: #{unet_decoder_forward.3} parent=0 // pred_check
    _
  $region35: #{unet_decoder_forward.3} parent=0 // pred_check_branch
    %1375 = sbr.rel (0) target = $region37
  $region36: #{unet_decoder_forward.3} parent=0 // pred_region
    _
  $region37: #{unet_decoder_forward.3} parent=0 // pred_fallthru
    _
  // Predicated region
  $region38: #{unet_decoder_forward.3} parent=0 // pred_check
    _
  $region39: #{unet_decoder_forward.3} parent=0 // pred_check_branch
    %1377 = sbr.rel (0) target = $region41
  $region40: #{unet_decoder_forward.3} parent=0 // pred_region
    _
  $region41: #{unet_decoder_forward.3} parent=0 // pred_fallthru
    _

</llo_original>
